<compile_context>
chip_gen: v7x
topology: tpu7x:2x2x1
jax: 0.10.0
libtpu: 0.0.40
codegen_flags: <defaults>
</compile_context>

<pallas_src>
import functools

import jax
import jax.numpy as jnp
from jax.experimental import pallas as pl
from jax.experimental.pallas import tpu as pltpu

_LANES = 128  # lane-dense output-channel padding


def _conv_taps_kernel(xf_ref, w_ref, b_ref, o_ref, *, wq, mfull, kh2, kw2):
    """One sample of a stride-1 (space-to-depth'd) conv + bias + ReLU.

    xf_ref: (1, Hq*Wq, C2)      bf16  flattened padded input (one sample)
    w_ref:  (KH2*KW2, C2, OCP)  bf16  per-tap weight matrices (grid-resident)
    b_ref:  (1, OCP)            f32
    o_ref:  (1, Mfull, OCP)     Mfull = (OH-1)*Wq + OW (garbage cols sliced outside)
    """
    ocp = o_ref.shape[-1]
    acc = jnp.zeros((mfull, ocp), jnp.float32)
    for t in range(kh2 * kw2):
        # Static tap offset in the flattened (row-major, width Wq) spatial space.
        off = (t // kw2) * wq + (t % kw2)
        lhs = xf_ref[0, pl.ds(off, mfull), :]                 # (Mfull, C2) bf16
        acc = acc + jnp.dot(lhs, w_ref[t],
                            preferred_element_type=jnp.float32)
    acc = jnp.maximum(acc + b_ref[...], 0.0)                  # fused bias + ReLU (f32)
    o_ref[0] = acc.astype(o_ref.dtype)


def _conv_relu_layer(x_nhwc, w, b, *, stride, pad, out_dtype):
    """Replicate-padded Conv2d + ReLU.  NHWC in / NHWC out (channels padded to 128)."""
    N, H, W, Cp = x_nhwc.shape
    OC, Cin, KH, KW = w.shape
    s = stride
    # TODO(synk): kernels whose size is not a multiple of the stride would need the
    # im2col fallback; not needed for this module (8/4, 4/2, 3/1).
    assert KH % s == 0 and KW % s == 0, "kernel size must be a multiple of stride"
    ocp = ((OC + _LANES - 1) // _LANES) * _LANES

    # Zero-pad weight input channels to the (lane-padded) activation width.
    if Cp > Cin:
        w = jnp.pad(w, ((0, 0), (0, Cp - Cin), (0, 0), (0, 0)))

    # padding_mode='replicate' == edge padding.
    xp = jnp.pad(x_nhwc, ((0, 0), (pad, pad), (pad, pad), (0, 0)), mode="edge")
    Hp, Wp = H + 2 * pad, W + 2 * pad
    OH = (Hp - KH) // s + 1
    OW = (Wp - KW) // s + 1

    # Space-to-depth relayout (no duplication) -> stride-1 conv with KH2*KW2 taps.
    KH2, KW2 = KH // s, KW // s
    Hq, Wq = (Hp + s - 1) // s, (Wp + s - 1) // s
    if s > 1:
        xp = jnp.pad(xp, ((0, 0), (0, Hq * s - Hp), (0, Wq * s - Wp), (0, 0)),
                     mode="edge")
        xp = xp.reshape(N, Hq, s, Wq, s, Cp).transpose(0, 1, 3, 2, 4, 5)
    C2 = s * s * Cp
    xf = xp.reshape(N, Hq * Wq, C2).astype(jnp.bfloat16)

    # Per-tap weight matrices; K ordered (p, q, c) to match the space-to-depth layout.
    w2 = jnp.transpose(w, (2, 3, 1, 0))                       # (KH, KW, Cp, OC)
    w2 = w2.reshape(KH2, s, KW2, s, Cp, OC)
    w2 = jnp.transpose(w2, (0, 2, 1, 3, 4, 5))                # (kh2, kw2, p, q, c, oc)
    w2 = w2.reshape(KH2 * KW2, C2, OC)
    w2 = jnp.pad(w2, ((0, 0), (0, 0), (0, ocp - OC))).astype(jnp.bfloat16)
    b2 = jnp.pad(b, (0, ocp - OC)).reshape(1, ocp).astype(jnp.float32)

    # Output rows laid out with stride Wq; columns OW..Wq-1 are garbage, sliced below.
    mfull = (OH - 1) * Wq + OW

    out = pl.pallas_call(
        functools.partial(_conv_taps_kernel, wq=Wq, mfull=mfull, kh2=KH2, kw2=KW2),
        out_shape=jax.ShapeDtypeStruct((N, mfull, ocp), out_dtype),
        grid=(N,),
        in_specs=[
            pl.BlockSpec((1, Hq * Wq, C2), lambda n: (n, 0, 0)),      # per-sample input
            pl.BlockSpec((KH2 * KW2, C2, ocp), lambda n: (0, 0, 0)),  # resident weights
            pl.BlockSpec((1, ocp), lambda n: (0, 0)),                 # resident bias
        ],
        out_specs=pl.BlockSpec((1, mfull, ocp), lambda n: (n, 0, 0)),
        compiler_params=pltpu.CompilerParams(
            dimension_semantics=("parallel",),
            vmem_limit_bytes=32 * 1024 * 1024,
        ),
    )(xf, w2, b2)

    # (N, Mfull, OCP) -> (N, OH, OW, OCP); keep channels 128-wide for the next layer.
    out = jnp.pad(out, ((0, 0), (0, OH * Wq - mfull), (0, 0)))
    out = out.reshape(N, OH, Wq, ocp)[:, :, :OW, :]
    return out, OC


def init_params(key, in_ch, filters=32):
    """Deterministic init matching PyTorch Conv2d parameter shapes."""
    specs = [
        (filters,     in_ch,       8, 8),
        (filters * 2, filters,     4, 4),
        (filters * 2, filters * 2, 3, 3),
    ]
    params = []
    for oc, ic, kh, kw in specs:
        key, kw_key, kb_key = jax.random.split(key, 3)
        fan_in = ic * kh * kw
        bound = 1.0 / (fan_in ** 0.5)
        w = jax.random.uniform(kw_key, (oc, ic, kh, kw), jnp.float32, -bound, bound)
        b = jax.random.uniform(kb_key, (oc,), jnp.float32, -bound, bound)
        params.append((w, b))
    return params


def dqn_image_block(x, params, enable_time_distributed_layer=False):
    if enable_time_distributed_layer:
        bsz, seq, c, h, w = x.shape
        x = x.reshape(bsz * seq, c, h, w)
    # NCHW -> NHWC once; activations stay NHWC + 128-lane padded between layers.
    x = jnp.transpose(x, (0, 2, 3, 1))
    (w1, b1), (w2, b2), (w3, b3) = params
    x, _ = _conv_relu_layer(x, w1, b1, stride=4, pad=3, out_dtype=jnp.bfloat16)
    x, _ = _conv_relu_layer(x, w2, b2, stride=2, pad=2, out_dtype=jnp.bfloat16)
    x, oc = _conv_relu_layer(x, w3, b3, stride=1, pad=1, out_dtype=jnp.float32)
    x = x[..., :oc]                        # drop lane padding
    x = jnp.transpose(x, (0, 3, 1, 2))     # back to NCHW at the block boundary
    if enable_time_distributed_layer:
        n, c, h, w = x.shape
        x = x.reshape(bsz, seq, c, h, w)
    return x


# ---------------- pure-JAX reference (f32 im2col) for correctness check ----------------
def _conv_relu_reference(x_nchw, w, b, *, stride, pad):
    N, C, H, W = x_nchw.shape
    OC, _, KH, KW = w.shape
    xp = jnp.pad(x_nchw, ((0, 0), (0, 0), (pad, pad), (pad, pad)), mode="edge")
    Hp, Wp = H + 2 * pad, W + 2 * pad
    OH = (Hp - KH) // stride + 1
    OW = (Wp - KW) // stride + 1
    cols = []
    for i in range(KH):
        for j in range(KW):
            cols.append(xp[:, :, i:i + stride * OH:stride, j:j + stride * OW:stride])
    p = jnp.stack(cols, axis=2).reshape(N, C * KH * KW, OH, OW)
    p = p.transpose(0, 2, 3, 1).reshape(N * OH * OW, C * KH * KW)
    out = jnp.dot(p, w.reshape(OC, -1).T, precision=jax.lax.Precision.HIGHEST)
    out = jnp.maximum(out + b[None, :], 0.0)
    return out.reshape(N, OH, OW, OC).transpose(0, 3, 1, 2)


def dqn_image_block_reference(x, params):
    (w1, b1), (w2, b2), (w3, b3) = params
    x = _conv_relu_reference(x, w1, b1, stride=4, pad=3)
    x = _conv_relu_reference(x, w2, b2, stride=2, pad=2)
    x = _conv_relu_reference(x, w3, b3, stride=1, pad=1)
    return x


if __name__ == "__main__":
    key = jax.random.PRNGKey(0)
    kx, kp = jax.random.split(key)

    # NCHW, batch=2, channels=4, spatial=16
    x = jax.random.normal(kx, (2, 4, 16, 16), jnp.float32)
    params = init_params(kp, in_ch=4, filters=32)

    fwd = jax.jit(functools.partial(dqn_image_block, params=params))
    y = jax.block_until_ready(fwd(x))

    # 16 -> conv(k8,s4,p3) -> 4 -> conv(k4,s2,p2) -> 3 -> conv(k3,s1,p1) -> 3
    assert y.shape == (2, 64, 3, 3), y.shape
    assert bool(jnp.all(y >= 0.0))  # ReLU output

    # Numerical check against the f32 im2col reference (bf16 MXU inputs -> loose tol).
    y_ref = jax.jit(functools.partial(dqn_image_block_reference, params=params))(x)
    y_ref = jax.block_until_ready(y_ref)
    err = float(jnp.max(jnp.abs(y - y_ref)))
    assert err < 0.1, f"max abs err vs reference: {err}"

    print("KERNEL_OK")
</pallas_src>

<mosaic_0001>
module attributes {stable_mosaic.version = 11 : i64} {
  func.func @_conv_taps_kernel(%arg0: i32, %arg1: memref<1x36x64xbf16, #tpu.memory_space<vmem>>, %arg2: memref<4x64x128xbf16, #tpu.memory_space<vmem>>, %arg3: memref<1x128xf32, #tpu.memory_space<vmem>>, %arg4: memref<1x22x128xbf16, #tpu.memory_space<vmem>>) attributes {dimension_semantics = [#tpu.dimension_semantics<parallel>], iteration_bounds = array<i64: 2>, scalar_prefetch = 0 : i64, scratch_operands = 0 : i64, tpu.core_type = #tpu.core_type<tc>, window_params = [{transform_indices = @transform_0, window_bounds = array<i64: 1, 36, 64>}, {pipeline_mode = #tpu.pipeline_mode<synchronous>, transform_indices = @transform_1, window_bounds = array<i64: 4, 64, 128>}, {pipeline_mode = #tpu.pipeline_mode<synchronous>, transform_indices = @transform_2, window_bounds = array<i64: 1, 128>}, {transform_indices = @transform_3, window_bounds = array<i64: 1, 22, 128>}]} {
    %cst = arith.constant 0.000000e+00 : f32
    %0 = vector.broadcast %cst : f32 to vector<22x128xf32>
    %c0 = arith.constant 0 : index
    %c0_0 = arith.constant 0 : index
    %c0_1 = arith.constant 0 : index
    %1 = vector.load %arg1[%c0, %c0_0, %c0_1] : memref<1x36x64xbf16, #tpu.memory_space<vmem>>, vector<1x22x64xbf16>
    %2 = vector.shape_cast %1 : vector<1x22x64xbf16> to vector<22x64xbf16>
    %c0_2 = arith.constant 0 : index
    %c0_3 = arith.constant 0 : index
    %c0_4 = arith.constant 0 : index
    %3 = vector.load %arg2[%c0_2, %c0_3, %c0_4] : memref<4x64x128xbf16, #tpu.memory_space<vmem>>, vector<1x64x128xbf16>
    %4 = vector.shape_cast %3 : vector<1x64x128xbf16> to vector<64x128xbf16>
    %cst_5 = arith.constant dense<0.000000e+00> : vector<22x128xf32>
    %5 = tpu.matmul %2, %4, %cst_5 {dimension_numbers = #tpu.dot_dimension_numbers<[1], [0], [0], [1], [0, 0, 1, 1], [], []>} : vector<22x64xbf16>, vector<64x128xbf16>, vector<22x128xf32> -> vector<22x128xf32>
    %6 = arith.addf %0, %5 : vector<22x128xf32>
    %c0_6 = arith.constant 0 : index
    %c1 = arith.constant 1 : index
    %c0_7 = arith.constant 0 : index
    %7 = vector.load %arg1[%c0_6, %c1, %c0_7] : memref<1x36x64xbf16, #tpu.memory_space<vmem>>, vector<1x22x64xbf16>
    %8 = vector.shape_cast %7 : vector<1x22x64xbf16> to vector<22x64xbf16>
    %c1_8 = arith.constant 1 : index
    %c0_9 = arith.constant 0 : index
    %c0_10 = arith.constant 0 : index
    %9 = vector.load %arg2[%c1_8, %c0_9, %c0_10] : memref<4x64x128xbf16, #tpu.memory_space<vmem>>, vector<1x64x128xbf16>
    %10 = vector.shape_cast %9 : vector<1x64x128xbf16> to vector<64x128xbf16>
    %cst_11 = arith.constant dense<0.000000e+00> : vector<22x128xf32>
    %11 = tpu.matmul %8, %10, %cst_11 {dimension_numbers = #tpu.dot_dimension_numbers<[1], [0], [0], [1], [0, 0, 1, 1], [], []>} : vector<22x64xbf16>, vector<64x128xbf16>, vector<22x128xf32> -> vector<22x128xf32>
    %12 = arith.addf %6, %11 : vector<22x128xf32>
    %c0_12 = arith.constant 0 : index
    %c6 = arith.constant 6 : index
    %c0_13 = arith.constant 0 : index
    %13 = vector.load %arg1[%c0_12, %c6, %c0_13] : memref<1x36x64xbf16, #tpu.memory_space<vmem>>, vector<1x22x64xbf16>
    %14 = vector.shape_cast %13 : vector<1x22x64xbf16> to vector<22x64xbf16>
    %c2 = arith.constant 2 : index
    %c0_14 = arith.constant 0 : index
    %c0_15 = arith.constant 0 : index
    %15 = vector.load %arg2[%c2, %c0_14, %c0_15] : memref<4x64x128xbf16, #tpu.memory_space<vmem>>, vector<1x64x128xbf16>
    %16 = vector.shape_cast %15 : vector<1x64x128xbf16> to vector<64x128xbf16>
    %cst_16 = arith.constant dense<0.000000e+00> : vector<22x128xf32>
    %17 = tpu.matmul %14, %16, %cst_16 {dimension_numbers = #tpu.dot_dimension_numbers<[1], [0], [0], [1], [0, 0, 1, 1], [], []>} : vector<22x64xbf16>, vector<64x128xbf16>, vector<22x128xf32> -> vector<22x128xf32>
    %18 = arith.addf %12, %17 : vector<22x128xf32>
    %c0_17 = arith.constant 0 : index
    %c7 = arith.constant 7 : index
    %c0_18 = arith.constant 0 : index
    %19 = vector.load %arg1[%c0_17, %c7, %c0_18] : memref<1x36x64xbf16, #tpu.memory_space<vmem>>, vector<1x22x64xbf16>
    %20 = vector.shape_cast %19 : vector<1x22x64xbf16> to vector<22x64xbf16>
    %c3 = arith.constant 3 : index
    %c0_19 = arith.constant 0 : index
    %c0_20 = arith.constant 0 : index
    %21 = vector.load %arg2[%c3, %c0_19, %c0_20] : memref<4x64x128xbf16, #tpu.memory_space<vmem>>, vector<1x64x128xbf16>
    %22 = vector.shape_cast %21 : vector<1x64x128xbf16> to vector<64x128xbf16>
    %cst_21 = arith.constant dense<0.000000e+00> : vector<22x128xf32>
    %23 = tpu.matmul %20, %22, %cst_21 {dimension_numbers = #tpu.dot_dimension_numbers<[1], [0], [0], [1], [0, 0, 1, 1], [], []>} : vector<22x64xbf16>, vector<64x128xbf16>, vector<22x128xf32> -> vector<22x128xf32>
    %24 = arith.addf %18, %23 : vector<22x128xf32>
    %c0_22 = arith.constant 0 : index
    %c0_23 = arith.constant 0 : index
    %25 = vector.load %arg3[%c0_22, %c0_23] : memref<1x128xf32, #tpu.memory_space<vmem>>, vector<1x128xf32>
    %26 = vector.broadcast %25 : vector<1x128xf32> to vector<22x128xf32>
    %27 = arith.addf %24, %26 : vector<22x128xf32>
    %cst_24 = arith.constant 0.000000e+00 : f32
    %28 = vector.broadcast %cst_24 : f32 to vector<22x128xf32>
    %29 = arith.maximumf %27, %28 : vector<22x128xf32>
    %30 = arith.truncf %29 : vector<22x128xf32> to vector<22x128xbf16>
    %c0_25 = arith.constant 0 : index
    %c0_26 = arith.constant 0 : index
    %c0_27 = arith.constant 0 : index
    %31 = vector.load %arg4[%c0_25, %c0_26, %c0_27] : memref<1x22x128xbf16, #tpu.memory_space<vmem>>, vector<1x22x128xbf16>
    %32 = vector.shape_cast %31 : vector<1x22x128xbf16> to vector<22x128xbf16>
    %33 = vector.shape_cast %30 : vector<22x128xbf16> to vector<1x22x128xbf16>
    tpu.vector_store %arg4[%c0_25, %c0_26, %c0_27], %33 {strides = array<i32>} : memref<1x22x128xbf16, #tpu.memory_space<vmem>>, vector<1x22x128xbf16>,
    return
  }
  func.func @transform_0(%arg0: i32) -> (i32, i32, i32) {
    %c0_i32 = arith.constant 0 : i32
    %c0_i32_0 = arith.constant 0 : i32
    %c0_i32_1 = arith.constant 0 : i32
    return %arg0, %c0_i32, %c0_i32_0 : i32, i32, i32
  }
  func.func @transform_1(%arg0: i32) -> (i32, i32, i32) {
    %c0_i32 = arith.constant 0 : i32
    %c0_i32_0 = arith.constant 0 : i32
    %c0_i32_1 = arith.constant 0 : i32
    %c0_i32_2 = arith.constant 0 : i32
    return %c0_i32, %c0_i32_0, %c0_i32_1 : i32, i32, i32
  }
  func.func @transform_2(%arg0: i32) -> (i32, i32) {
    %c0_i32 = arith.constant 0 : i32
    %c0_i32_0 = arith.constant 0 : i32
    %c0_i32_1 = arith.constant 0 : i32
    return %c0_i32, %c0_i32_0 : i32, i32
  }
  func.func @transform_3(%arg0: i32) -> (i32, i32, i32) {
    %c0_i32 = arith.constant 0 : i32
    %c0_i32_0 = arith.constant 0 : i32
    %c0_i32_1 = arith.constant 0 : i32
    return %arg0, %c0_i32, %c0_i32_0 : i32, i32, i32
  }
}

module attributes {stable_mosaic.version = 11 : i64} {
  func.func @_conv_taps_kernel(%arg0: i32, %arg1: memref<1x16x512xbf16, #tpu.memory_space<vmem>>, %arg2: memref<4x512x128xbf16, #tpu.memory_space<vmem>>, %arg3: memref<1x128xf32, #tpu.memory_space<vmem>>, %arg4: memref<1x11x128xbf16, #tpu.memory_space<vmem>>) attributes {dimension_semantics = [#tpu.dimension_semantics<parallel>], iteration_bounds = array<i64: 2>, scalar_prefetch = 0 : i64, scratch_operands = 0 : i64, tpu.core_type = #tpu.core_type<tc>, window_params = [{transform_indices = @transform_0, window_bounds = array<i64: 1, 16, 512>}, {pipeline_mode = #tpu.pipeline_mode<synchronous>, transform_indices = @transform_1, window_bounds = array<i64: 4, 512, 128>}, {pipeline_mode = #tpu.pipeline_mode<synchronous>, transform_indices = @transform_2, window_bounds = array<i64: 1, 128>}, {transform_indices = @transform_3, window_bounds = array<i64: 1, 11, 128>}]} {
    %cst = arith.constant 0.000000e+00 : f32
    %0 = vector.broadcast %cst : f32 to vector<11x128xf32>
    %c0 = arith.constant 0 : index
    %c0_0 = arith.constant 0 : index
    %c0_1 = arith.constant 0 : index
    %1 = vector.load %arg1[%c0, %c0_0, %c0_1] : memref<1x16x512xbf16, #tpu.memory_space<vmem>>, vector<1x11x512xbf16>
    %2 = vector.shape_cast %1 : vector<1x11x512xbf16> to vector<11x512xbf16>
    %c0_2 = arith.constant 0 : index
    %c0_3 = arith.constant 0 : index
    %c0_4 = arith.constant 0 : index
    %3 = vector.load %arg2[%c0_2, %c0_3, %c0_4] : memref<4x512x128xbf16, #tpu.memory_space<vmem>>, vector<1x512x128xbf16>
    %4 = vector.shape_cast %3 : vector<1x512x128xbf16> to vector<512x128xbf16>
    %cst_5 = arith.constant dense<0.000000e+00> : vector<11x128xf32>
    %5 = tpu.matmul %2, %4, %cst_5 {dimension_numbers = #tpu.dot_dimension_numbers<[1], [0], [0], [1], [0, 0, 1, 1], [], []>} : vector<11x512xbf16>, vector<512x128xbf16>, vector<11x128xf32> -> vector<11x128xf32>
    %6 = arith.addf %0, %5 : vector<11x128xf32>
    %c0_6 = arith.constant 0 : index
    %c1 = arith.constant 1 : index
    %c0_7 = arith.constant 0 : index
    %7 = vector.load %arg1[%c0_6, %c1, %c0_7] : memref<1x16x512xbf16, #tpu.memory_space<vmem>>, vector<1x11x512xbf16>
    %8 = vector.shape_cast %7 : vector<1x11x512xbf16> to vector<11x512xbf16>
    %c1_8 = arith.constant 1 : index
    %c0_9 = arith.constant 0 : index
    %c0_10 = arith.constant 0 : index
    %9 = vector.load %arg2[%c1_8, %c0_9, %c0_10] : memref<4x512x128xbf16, #tpu.memory_space<vmem>>, vector<1x512x128xbf16>
    %10 = vector.shape_cast %9 : vector<1x512x128xbf16> to vector<512x128xbf16>
    %cst_11 = arith.constant dense<0.000000e+00> : vector<11x128xf32>
    %11 = tpu.matmul %8, %10, %cst_11 {dimension_numbers = #tpu.dot_dimension_numbers<[1], [0], [0], [1], [0, 0, 1, 1], [], []>} : vector<11x512xbf16>, vector<512x128xbf16>, vector<11x128xf32> -> vector<11x128xf32>
    %12 = arith.addf %6, %11 : vector<11x128xf32>
    %c0_12 = arith.constant 0 : index
    %c4 = arith.constant 4 : index
    %c0_13 = arith.constant 0 : index
    %13 = vector.load %arg1[%c0_12, %c4, %c0_13] : memref<1x16x512xbf16, #tpu.memory_space<vmem>>, vector<1x11x512xbf16>
    %14 = vector.shape_cast %13 : vector<1x11x512xbf16> to vector<11x512xbf16>
    %c2 = arith.constant 2 : index
    %c0_14 = arith.constant 0 : index
    %c0_15 = arith.constant 0 : index
    %15 = vector.load %arg2[%c2, %c0_14, %c0_15] : memref<4x512x128xbf16, #tpu.memory_space<vmem>>, vector<1x512x128xbf16>
    %16 = vector.shape_cast %15 : vector<1x512x128xbf16> to vector<512x128xbf16>
    %cst_16 = arith.constant dense<0.000000e+00> : vector<11x128xf32>
    %17 = tpu.matmul %14, %16, %cst_16 {dimension_numbers = #tpu.dot_dimension_numbers<[1], [0], [0], [1], [0, 0, 1, 1], [], []>} : vector<11x512xbf16>, vector<512x128xbf16>, vector<11x128xf32> -> vector<11x128xf32>
    %18 = arith.addf %12, %17 : vector<11x128xf32>
    %c0_17 = arith.constant 0 : index
    %c5 = arith.constant 5 : index
    %c0_18 = arith.constant 0 : index
    %19 = vector.load %arg1[%c0_17, %c5, %c0_18] : memref<1x16x512xbf16, #tpu.memory_space<vmem>>, vector<1x11x512xbf16>
    %20 = vector.shape_cast %19 : vector<1x11x512xbf16> to vector<11x512xbf16>
    %c3 = arith.constant 3 : index
    %c0_19 = arith.constant 0 : index
    %c0_20 = arith.constant 0 : index
    %21 = vector.load %arg2[%c3, %c0_19, %c0_20] : memref<4x512x128xbf16, #tpu.memory_space<vmem>>, vector<1x512x128xbf16>
    %22 = vector.shape_cast %21 : vector<1x512x128xbf16> to vector<512x128xbf16>
    %cst_21 = arith.constant dense<0.000000e+00> : vector<11x128xf32>
    %23 = tpu.matmul %20, %22, %cst_21 {dimension_numbers = #tpu.dot_dimension_numbers<[1], [0], [0], [1], [0, 0, 1, 1], [], []>} : vector<11x512xbf16>, vector<512x128xbf16>, vector<11x128xf32> -> vector<11x128xf32>
    %24 = arith.addf %18, %23 : vector<11x128xf32>
    %c0_22 = arith.constant 0 : index
    %c0_23 = arith.constant 0 : index
    %25 = vector.load %arg3[%c0_22, %c0_23] : memref<1x128xf32, #tpu.memory_space<vmem>>, vector<1x128xf32>
    %26 = vector.broadcast %25 : vector<1x128xf32> to vector<11x128xf32>
    %27 = arith.addf %24, %26 : vector<11x128xf32>
    %cst_24 = arith.constant 0.000000e+00 : f32
    %28 = vector.broadcast %cst_24 : f32 to vector<11x128xf32>
    %29 = arith.maximumf %27, %28 : vector<11x128xf32>
    %30 = arith.truncf %29 : vector<11x128xf32> to vector<11x128xbf16>
    %c0_25 = arith.constant 0 : index
    %c0_26 = arith.constant 0 : index
    %c0_27 = arith.constant 0 : index
    %31 = vector.load %arg4[%c0_25, %c0_26, %c0_27] : memref<1x11x128xbf16, #tpu.memory_space<vmem>>, vector<1x11x128xbf16>
    %32 = vector.shape_cast %31 : vector<1x11x128xbf16> to vector<11x128xbf16>
    %33 = vector.shape_cast %30 : vector<11x128xbf16> to vector<1x11x128xbf16>
    tpu.vector_store %arg4[%c0_25, %c0_26, %c0_27], %33 {strides = array<i32>} : memref<1x11x128xbf16, #tpu.memory_space<vmem>>, vector<1x11x128xbf16>,
    return
  }
  func.func @transform_0(%arg0: i32) -> (i32, i32, i32) {
    %c0_i32 = arith.constant 0 : i32
    %c0_i32_0 = arith.constant 0 : i32
    %c0_i32_1 = arith.constant 0 : i32
    return %arg0, %c0_i32, %c0_i32_0 : i32, i32, i32
  }
  func.func @transform_1(%arg0: i32) -> (i32, i32, i32) {
    %c0_i32 = arith.constant 0 : i32
    %c0_i32_0 = arith.constant 0 : i32
    %c0_i32_1 = arith.constant 0 : i32
    %c0_i32_2 = arith.constant 0 : i32
    return %c0_i32, %c0_i32_0, %c0_i32_1 : i32, i32, i32
  }
  func.func @transform_2(%arg0: i32) -> (i32, i32) {
    %c0_i32 = arith.constant 0 : i32
    %c0_i32_0 = arith.constant 0 : i32
    %c0_i32_1 = arith.constant 0 : i32
    return %c0_i32, %c0_i32_0 : i32, i32
  }
  func.func @transform_3(%arg0: i32) -> (i32, i32, i32) {
    %c0_i32 = arith.constant 0 : i32
    %c0_i32_0 = arith.constant 0 : i32
    %c0_i32_1 = arith.constant 0 : i32
    return %arg0, %c0_i32, %c0_i32_0 : i32, i32, i32
  }
}

module attributes {stable_mosaic.version = 11 : i64} {
  func.func @_conv_taps_kernel(%arg0: i32, %arg1: memref<1x25x128xbf16, #tpu.memory_space<vmem>>, %arg2: memref<9x128x128xbf16, #tpu.memory_space<vmem>>, %arg3: memref<1x128xf32, #tpu.memory_space<vmem>>, %arg4: memref<1x13x128xf32, #tpu.memory_space<vmem>>) attributes {dimension_semantics = [#tpu.dimension_semantics<parallel>], iteration_bounds = array<i64: 2>, scalar_prefetch = 0 : i64, scratch_operands = 0 : i64, tpu.core_type = #tpu.core_type<tc>, window_params = [{transform_indices = @transform_0, window_bounds = array<i64: 1, 25, 128>}, {pipeline_mode = #tpu.pipeline_mode<synchronous>, transform_indices = @transform_1, window_bounds = array<i64: 9, 128, 128>}, {pipeline_mode = #tpu.pipeline_mode<synchronous>, transform_indices = @transform_2, window_bounds = array<i64: 1, 128>}, {transform_indices = @transform_3, window_bounds = array<i64: 1, 13, 128>}]} {
    %cst = arith.constant 0.000000e+00 : f32
    %0 = vector.broadcast %cst : f32 to vector<13x128xf32>
    %c0 = arith.constant 0 : index
    %c0_0 = arith.constant 0 : index
    %c0_1 = arith.constant 0 : index
    %1 = vector.load %arg1[%c0, %c0_0, %c0_1] : memref<1x25x128xbf16, #tpu.memory_space<vmem>>, vector<1x13x128xbf16>
    %2 = vector.shape_cast %1 : vector<1x13x128xbf16> to vector<13x128xbf16>
    %c0_2 = arith.constant 0 : index
    %c0_3 = arith.constant 0 : index
    %c0_4 = arith.constant 0 : index
    %3 = vector.load %arg2[%c0_2, %c0_3, %c0_4] : memref<9x128x128xbf16, #tpu.memory_space<vmem>>, vector<1x128x128xbf16>
    %4 = vector.shape_cast %3 : vector<1x128x128xbf16> to vector<128x128xbf16>
    %cst_5 = arith.constant dense<0.000000e+00> : vector<13x128xf32>
    %5 = tpu.matmul %2, %4, %cst_5 {dimension_numbers = #tpu.dot_dimension_numbers<[1], [0], [0], [1], [0, 0, 1, 1], [], []>} : vector<13x128xbf16>, vector<128x128xbf16>, vector<13x128xf32> -> vector<13x128xf32>
    %6 = arith.addf %0, %5 : vector<13x128xf32>
    %c0_6 = arith.constant 0 : index
    %c1 = arith.constant 1 : index
    %c0_7 = arith.constant 0 : index
    %7 = vector.load %arg1[%c0_6, %c1, %c0_7] : memref<1x25x128xbf16, #tpu.memory_space<vmem>>, vector<1x13x128xbf16>
    %8 = vector.shape_cast %7 : vector<1x13x128xbf16> to vector<13x128xbf16>
    %c1_8 = arith.constant 1 : index
    %c0_9 = arith.constant 0 : index
    %c0_10 = arith.constant 0 : index
    %9 = vector.load %arg2[%c1_8, %c0_9, %c0_10] : memref<9x128x128xbf16, #tpu.memory_space<vmem>>, vector<1x128x128xbf16>
    %10 = vector.shape_cast %9 : vector<1x128x128xbf16> to vector<128x128xbf16>
    %cst_11 = arith.constant dense<0.000000e+00> : vector<13x128xf32>
    %11 = tpu.matmul %8, %10, %cst_11 {dimension_numbers = #tpu.dot_dimension_numbers<[1], [0], [0], [1], [0, 0, 1, 1], [], []>} : vector<13x128xbf16>, vector<128x128xbf16>, vector<13x128xf32> -> vector<13x128xf32>
    %12 = arith.addf %6, %11 : vector<13x128xf32>
    %c0_12 = arith.constant 0 : index
    %c2 = arith.constant 2 : index
    %c0_13 = arith.constant 0 : index
    %13 = vector.load %arg1[%c0_12, %c2, %c0_13] : memref<1x25x128xbf16, #tpu.memory_space<vmem>>, vector<1x13x128xbf16>
    %14 = vector.shape_cast %13 : vector<1x13x128xbf16> to vector<13x128xbf16>
    %c2_14 = arith.constant 2 : index
    %c0_15 = arith.constant 0 : index
    %c0_16 = arith.constant 0 : index
    %15 = vector.load %arg2[%c2_14, %c0_15, %c0_16] : memref<9x128x128xbf16, #tpu.memory_space<vmem>>, vector<1x128x128xbf16>
    %16 = vector.shape_cast %15 : vector<1x128x128xbf16> to vector<128x128xbf16>
    %cst_17 = arith.constant dense<0.000000e+00> : vector<13x128xf32>
    %17 = tpu.matmul %14, %16, %cst_17 {dimension_numbers = #tpu.dot_dimension_numbers<[1], [0], [0], [1], [0, 0, 1, 1], [], []>} : vector<13x128xbf16>, vector<128x128xbf16>, vector<13x128xf32> -> vector<13x128xf32>
    %18 = arith.addf %12, %17 : vector<13x128xf32>
    %c0_18 = arith.constant 0 : index
    %c5 = arith.constant 5 : index
    %c0_19 = arith.constant 0 : index
    %19 = vector.load %arg1[%c0_18, %c5, %c0_19] : memref<1x25x128xbf16, #tpu.memory_space<vmem>>, vector<1x13x128xbf16>
    %20 = vector.shape_cast %19 : vector<1x13x128xbf16> to vector<13x128xbf16>
    %c3 = arith.constant 3 : index
    %c0_20 = arith.constant 0 : index
    %c0_21 = arith.constant 0 : index
    %21 = vector.load %arg2[%c3, %c0_20, %c0_21] : memref<9x128x128xbf16, #tpu.memory_space<vmem>>, vector<1x128x128xbf16>
    %22 = vector.shape_cast %21 : vector<1x128x128xbf16> to vector<128x128xbf16>
    %cst_22 = arith.constant dense<0.000000e+00> : vector<13x128xf32>
    %23 = tpu.matmul %20, %22, %cst_22 {dimension_numbers = #tpu.dot_dimension_numbers<[1], [0], [0], [1], [0, 0, 1, 1], [], []>} : vector<13x128xbf16>, vector<128x128xbf16>, vector<13x128xf32> -> vector<13x128xf32>
    %24 = arith.addf %18, %23 : vector<13x128xf32>
    %c0_23 = arith.constant 0 : index
    %c6 = arith.constant 6 : index
    %c0_24 = arith.constant 0 : index
    %25 = vector.load %arg1[%c0_23, %c6, %c0_24] : memref<1x25x128xbf16, #tpu.memory_space<vmem>>, vector<1x13x128xbf16>
    %26 = vector.shape_cast %25 : vector<1x13x128xbf16> to vector<13x128xbf16>
    %c4 = arith.constant 4 : index
    %c0_25 = arith.constant 0 : index
    %c0_26 = arith.constant 0 : index
    %27 = vector.load %arg2[%c4, %c0_25, %c0_26] : memref<9x128x128xbf16, #tpu.memory_space<vmem>>, vector<1x128x128xbf16>
    %28 = vector.shape_cast %27 : vector<1x128x128xbf16> to vector<128x128xbf16>
    %cst_27 = arith.constant dense<0.000000e+00> : vector<13x128xf32>
    %29 = tpu.matmul %26, %28, %cst_27 {dimension_numbers = #tpu.dot_dimension_numbers<[1], [0], [0], [1], [0, 0, 1, 1], [], []>} : vector<13x128xbf16>, vector<128x128xbf16>, vector<13x128xf32> -> vector<13x128xf32>
    %30 = arith.addf %24, %29 : vector<13x128xf32>
    %c0_28 = arith.constant 0 : index
    %c7 = arith.constant 7 : index
    %c0_29 = arith.constant 0 : index
    %31 = vector.load %arg1[%c0_28, %c7, %c0_29] : memref<1x25x128xbf16, #tpu.memory_space<vmem>>, vector<1x13x128xbf16>
    %32 = vector.shape_cast %31 : vector<1x13x128xbf16> to vector<13x128xbf16>
    %c5_30 = arith.constant 5 : index
    %c0_31 = arith.constant 0 : index
    %c0_32 = arith.constant 0 : index
    %33 = vector.load %arg2[%c5_30, %c0_31, %c0_32] : memref<9x128x128xbf16, #tpu.memory_space<vmem>>, vector<1x128x128xbf16>
    %34 = vector.shape_cast %33 : vector<1x128x128xbf16> to vector<128x128xbf16>
    %cst_33 = arith.constant dense<0.000000e+00> : vector<13x128xf32>
    %35 = tpu.matmul %32, %34, %cst_33 {dimension_numbers = #tpu.dot_dimension_numbers<[1], [0], [0], [1], [0, 0, 1, 1], [], []>} : vector<13x128xbf16>, vector<128x128xbf16>, vector<13x128xf32> -> vector<13x128xf32>
    %36 = arith.addf %30, %35 : vector<13x128xf32>
    %c0_34 = arith.constant 0 : index
    %c10 = arith.constant 10 : index
    %c0_35 = arith.constant 0 : index
    %37 = vector.load %arg1[%c0_34, %c10, %c0_35] : memref<1x25x128xbf16, #tpu.memory_space<vmem>>, vector<1x13x128xbf16>
    %38 = vector.shape_cast %37 : vector<1x13x128xbf16> to vector<13x128xbf16>
    %c6_36 = arith.constant 6 : index
    %c0_37 = arith.constant 0 : index
    %c0_38 = arith.constant 0 : index
    %39 = vector.load %arg2[%c6_36, %c0_37, %c0_38] : memref<9x128x128xbf16, #tpu.memory_space<vmem>>, vector<1x128x128xbf16>
    %40 = vector.shape_cast %39 : vector<1x128x128xbf16> to vector<128x128xbf16>
    %cst_39 = arith.constant dense<0.000000e+00> : vector<13x128xf32>
    %41 = tpu.matmul %38, %40, %cst_39 {dimension_numbers = #tpu.dot_dimension_numbers<[1], [0], [0], [1], [0, 0, 1, 1], [], []>} : vector<13x128xbf16>, vector<128x128xbf16>, vector<13x128xf32> -> vector<13x128xf32>
    %42 = arith.addf %36, %41 : vector<13x128xf32>
    %c0_40 = arith.constant 0 : index
    %c11 = arith.constant 11 : index
    %c0_41 = arith.constant 0 : index
    %43 = vector.load %arg1[%c0_40, %c11, %c0_41] : memref<1x25x128xbf16, #tpu.memory_space<vmem>>, vector<1x13x128xbf16>
    %44 = vector.shape_cast %43 : vector<1x13x128xbf16> to vector<13x128xbf16>
    %c7_42 = arith.constant 7 : index
    %c0_43 = arith.constant 0 : index
    %c0_44 = arith.constant 0 : index
    %45 = vector.load %arg2[%c7_42, %c0_43, %c0_44] : memref<9x128x128xbf16, #tpu.memory_space<vmem>>, vector<1x128x128xbf16>
    %46 = vector.shape_cast %45 : vector<1x128x128xbf16> to vector<128x128xbf16>
    %cst_45 = arith.constant dense<0.000000e+00> : vector<13x128xf32>
    %47 = tpu.matmul %44, %46, %cst_45 {dimension_numbers = #tpu.dot_dimension_numbers<[1], [0], [0], [1], [0, 0, 1, 1], [], []>} : vector<13x128xbf16>, vector<128x128xbf16>, vector<13x128xf32> -> vector<13x128xf32>
    %48 = arith.addf %42, %47 : vector<13x128xf32>
    %c0_46 = arith.constant 0 : index
    %c12 = arith.constant 12 : index
    %c0_47 = arith.constant 0 : index
    %49 = vector.load %arg1[%c0_46, %c12, %c0_47] : memref<1x25x128xbf16, #tpu.memory_space<vmem>>, vector<1x13x128xbf16>
    %50 = vector.shape_cast %49 : vector<1x13x128xbf16> to vector<13x128xbf16>
    %c8 = arith.constant 8 : index
    %c0_48 = arith.constant 0 : index
    %c0_49 = arith.constant 0 : index
    %51 = vector.load %arg2[%c8, %c0_48, %c0_49] : memref<9x128x128xbf16, #tpu.memory_space<vmem>>, vector<1x128x128xbf16>
    %52 = vector.shape_cast %51 : vector<1x128x128xbf16> to vector<128x128xbf16>
    %cst_50 = arith.constant dense<0.000000e+00> : vector<13x128xf32>
    %53 = tpu.matmul %50, %52, %cst_50 {dimension_numbers = #tpu.dot_dimension_numbers<[1], [0], [0], [1], [0, 0, 1, 1], [], []>} : vector<13x128xbf16>, vector<128x128xbf16>, vector<13x128xf32> -> vector<13x128xf32>
    %54 = arith.addf %48, %53 : vector<13x128xf32>
    %c0_51 = arith.constant 0 : index
    %c0_52 = arith.constant 0 : index
    %55 = vector.load %arg3[%c0_51, %c0_52] : memref<1x128xf32, #tpu.memory_space<vmem>>, vector<1x128xf32>
    %56 = vector.broadcast %55 : vector<1x128xf32> to vector<13x128xf32>
    %57 = arith.addf %54, %56 : vector<13x128xf32>
    %cst_53 = arith.constant 0.000000e+00 : f32
    %58 = vector.broadcast %cst_53 : f32 to vector<13x128xf32>
    %59 = arith.maximumf %57, %58 : vector<13x128xf32>
    %c0_54 = arith.constant 0 : index
    %c0_55 = arith.constant 0 : index
    %c0_56 = arith.constant 0 : index
    %60 = vector.load %arg4[%c0_54, %c0_55, %c0_56] : memref<1x13x128xf32, #tpu.memory_space<vmem>>, vector<1x13x128xf32>
    %61 = vector.shape_cast %60 : vector<1x13x128xf32> to vector<13x128xf32>
    %62 = vector.shape_cast %59 : vector<13x128xf32> to vector<1x13x128xf32>
    tpu.vector_store %arg4[%c0_54, %c0_55, %c0_56], %62 {strides = array<i32>} : memref<1x13x128xf32, #tpu.memory_space<vmem>>, vector<1x13x128xf32>,
    return
  }
  func.func @transform_0(%arg0: i32) -> (i32, i32, i32) {
    %c0_i32 = arith.constant 0 : i32
    %c0_i32_0 = arith.constant 0 : i32
    %c0_i32_1 = arith.constant 0 : i32
    return %arg0, %c0_i32, %c0_i32_0 : i32, i32, i32
  }
  func.func @transform_1(%arg0: i32) -> (i32, i32, i32) {
    %c0_i32 = arith.constant 0 : i32
    %c0_i32_0 = arith.constant 0 : i32
    %c0_i32_1 = arith.constant 0 : i32
    %c0_i32_2 = arith.constant 0 : i32
    return %c0_i32, %c0_i32_0, %c0_i32_1 : i32, i32, i32
  }
  func.func @transform_2(%arg0: i32) -> (i32, i32) {
    %c0_i32 = arith.constant 0 : i32
    %c0_i32_0 = arith.constant 0 : i32
    %c0_i32_1 = arith.constant 0 : i32
    return %c0_i32, %c0_i32_0 : i32, i32
  }
  func.func @transform_3(%arg0: i32) -> (i32, i32, i32) {
    %c0_i32 = arith.constant 0 : i32
    %c0_i32_0 = arith.constant 0 : i32
    %c0_i32_1 = arith.constant 0 : i32
    return %arg0, %c0_i32, %c0_i32_0 : i32, i32, i32
  }
}

</mosaic_0001>

<llo_original>
// kernel: dqn_image_block.3
$region0: #{dqn_image_block.3}
  #allocation0 [shape = 'u32[]', space=smem, size = 0x4, offset = 0x4, fixed_abs, tag = 'smem constant byte address 0x4 - core index']
  #allocation1 [shape = 'u32[144,128]{1,0:T(1,128)}', space=vmem, size = 0x12000, scoped, tag = 'internal scratch']
  %s0 = inlined_call_operand.vmem [shape: bf16[2,36,64], index: 0, kind: input, shape index: {}]
  %s1 = inlined_call_operand.vmem [shape: bf16[4,64,128], index: 1, kind: input, shape index: {}]
  %s2 = inlined_call_operand.vmem [shape: f32[1,128], index: 2, kind: input, shape index: {}]
  %s3 = inlined_call_operand.vmem [shape: bf16[2,22,128], index: 3, kind: output, shape index: {}]
  %s4 = sld [smem:[#allocation0]]
  $region45: #{dqn_image_block.3} parent=0
    _
  %s6 = ssub.s32 1, %s4
  %s7 = scalar_select 0, %s6, %s4
  loop: start=0, step=1, limit=4
  $region2: #{dqn_image_block.3} parent=0 // loop_pre_header
    _
  $region3: #{dqn_image_block.3} parent=0 // loop_header
    %s9 = sphi 0, %s13
    %p10 = scmp.ge.s32.totalorder %s9, 4
    %s19 = sphi 0, %s21
    %s22 = sphi 0, %s19
    %s23 = sphi 0, %s22
    %s39 = sphi 0, %s23
    %s43 = sphi 0, %s43
    %s45 = sphi 0, %s43
    %s46 = sphi 0, %s45
    %s60 = sphi 0, %s46
    %s64 = sphi 0, %s64
    %s66 = sphi 0, %s64
    %s67 = sphi 0, %s66
    %s81 = sphi 0, %s67
    %s87 = sphi 0, %s89
    %s90 = sphi 0, %s87
    %s91 = sphi 0, %s90
    %s107 = sphi 0, %s91
  $region4: #{dqn_image_block.3} parent=0 // loop_header_branch
    %12 = sbr.rel (%p10) target = $region8
  $region5: #{dqn_image_block.3} parent=0 // loop_body
    %s14 = ssub.s32 %s9, 1
    %s15 = ssub.s32 %s9, 2
    %s16 = sadd.s32 %s9, 1
    %s17 = ssub.s32 %s9, %s16
    %p18 = scmp.eq.s32.totalorder %s17, 0
    %s20 = sadd.s32 %s19, 1
    %s21 = scalar_select %p18, %s19, %s20
    %p24 = pneg %p18
    %p25 = scmp.eq.s32.totalorder %s9, 1
    %p26 = por %p24, %p25
    %p27 = scmp.ne.s32.totalorder %s19, %s22
    %p28 = scmp.eq.s32.totalorder %s9, 0
    %p29 = por %p27, %p28
    %p30 = scmp.ne.s32.totalorder %s19, %s22
    %p31 = scmp.eq.s32.totalorder %s14, 1
    %p32 = por %p30, %p31
    %p33 = scmp.ne.s32.totalorder %s22, %s23
    %p34 = scmp.eq.s32.totalorder %s14, 0
    %p35 = por %p33, %p34
    %p36 = scmp.ne.s32.totalorder %s22, %s23
    %p37 = scmp.eq.s32.totalorder %s15, 1
    %p38 = por %p36, %p37
    %p40 = scmp.ne.s32.totalorder %s23, %s39
    %p41 = scmp.eq.s32.totalorder %s15, 0
    %p42 = por %p40, %p41
    %s44 = sadd.s32 %s43, 1
    %p47 = scmp.eq.s32.totalorder %s9, 1
    %p48 = scmp.ne.s32.totalorder %s43, %s45
    %p49 = scmp.eq.s32.totalorder %s9, 0
    %p50 = por %p48, %p49
    %p51 = scmp.ne.s32.totalorder %s43, %s45
    %p52 = scmp.eq.s32.totalorder %s14, 1
    %p53 = por %p51, %p52
    %p54 = scmp.ne.s32.totalorder %s45, %s46
    %p55 = scmp.eq.s32.totalorder %s14, 0
    %p56 = por %p54, %p55
    %p57 = scmp.ne.s32.totalorder %s45, %s46
    %p58 = scmp.eq.s32.totalorder %s15, 1
    %p59 = por %p57, %p58
    %p61 = scmp.ne.s32.totalorder %s46, %s60
    %p62 = scmp.eq.s32.totalorder %s15, 0
    %p63 = por %p61, %p62
    %s65 = sadd.s32 %s64, 1
    %p68 = scmp.eq.s32.totalorder %s9, 1
    %p69 = scmp.ne.s32.totalorder %s64, %s66
    %p70 = scmp.eq.s32.totalorder %s9, 0
    %p71 = por %p69, %p70
    %p72 = scmp.ne.s32.totalorder %s64, %s66
    %p73 = scmp.eq.s32.totalorder %s14, 1
    %p74 = por %p72, %p73
    %p75 = scmp.ne.s32.totalorder %s66, %s67
    %p76 = scmp.eq.s32.totalorder %s14, 0
    %p77 = por %p75, %p76
    %p78 = scmp.ne.s32.totalorder %s66, %s67
    %p79 = scmp.eq.s32.totalorder %s15, 1
    %p80 = por %p78, %p79
    %p82 = scmp.ne.s32.totalorder %s67, %s81
    %p83 = scmp.eq.s32.totalorder %s15, 0
    %p84 = por %p82, %p83
    %s85 = ssub.s32 %s9, %s16
    %p86 = scmp.eq.s32.totalorder %s85, 0
    %s88 = sadd.s32 %s87, 1
    %s89 = scalar_select %p86, %s87, %s88
    %p92 = pneg %p86
    %p93 = scmp.eq.s32.totalorder %s9, 1
    %p94 = por %p92, %p93
    %p95 = scmp.ne.s32.totalorder %s87, %s90
    %p96 = scmp.eq.s32.totalorder %s9, 0
    %p97 = por %p95, %p96
    %p98 = scmp.ne.s32.totalorder %s87, %s90
    %p99 = scmp.eq.s32.totalorder %s14, 1
    %p100 = por %p98, %p99
    %p101 = scmp.ne.s32.totalorder %s90, %s91
    %p102 = scmp.eq.s32.totalorder %s14, 0
    %p103 = por %p101, %p102
    %p104 = scmp.ne.s32.totalorder %s90, %s91
    %p105 = scmp.eq.s32.totalorder %s15, 1
    %p106 = por %p104, %p105
    %p108 = scmp.ne.s32.totalorder %s91, %s107
    %p109 = scmp.eq.s32.totalorder %s15, 0
    %p110 = por %p108, %p109
    %p111 = scmp.le.s32.totalorder 1, %s9
    %p112 = scmp.lt.s32.totalorder %s9, 3
    %p113 = pnand %p111, %p112
    %p114 = pneg %p113
    // Predicated region
    $region9: #{dqn_image_block.3} parent=5 // pred_check
      _
    $region10: #{dqn_image_block.3} parent=5 // pred_check_branch
      %116 = sbr.rel (%p113) target = $region12
    $region11: #{dqn_image_block.3} parent=5 // pred_region
      %s117 = ssub.s32 %s9, 1
      // Predicated region
      $region13: #{dqn_image_block.3} parent=11 // pred_check
        %p118 = pneg %p56
      $region14: #{dqn_image_block.3} parent=11 // pred_check_branch
        %120 = sbr.rel (%p118) target = $region16
      $region15: #{dqn_image_block.3} parent=11 // pred_region
        _
      $region16: #{dqn_image_block.3} parent=11 // pred_fallthru
        _
      // Predicated region
      $region17: #{dqn_image_block.3} parent=11 // pred_check
        %p121 = pneg %p77
      $region18: #{dqn_image_block.3} parent=11 // pred_check_branch
        %123 = sbr.rel (%p121) target = $region20
      $region19: #{dqn_image_block.3} parent=11 // pred_region
        _
      $region20: #{dqn_image_block.3} parent=11 // pred_fallthru
        _
    $region12: #{dqn_image_block.3} parent=5 // pred_fallthru
      _
    %p124 = scmp.lt.s32.totalorder %s9, 2
    // Predicated region
    $region21: #{dqn_image_block.3} parent=5 // pred_check
      %p125 = pneg %p124
    $region22: #{dqn_image_block.3} parent=5 // pred_check_branch
      %127 = sbr.rel (%p125) target = $region24
    $region23: #{dqn_image_block.3} parent=5 // pred_region
      // Predicated region
      $region25: #{dqn_image_block.3} parent=23 // pred_check
        %p128 = pneg %p29
      $region26: #{dqn_image_block.3} parent=23 // pred_check_branch
        %130 = sbr.rel (%p128) target = $region28
      $region27: #{dqn_image_block.3} parent=23 // pred_region
        %p131 = scmp.lt.s32.totalorder %s9, 1
        %s132 = scalar_select %p131, %s9, 1
        %s133 = smul.addr %s132, 5
        %s134 = smul.addr %s133, 4
        %s135 = scalar_lea.vmem %s0, %s134
      $region28: #{dqn_image_block.3} parent=23 // pred_fallthru
        _
    $region24: #{dqn_image_block.3} parent=5 // pred_fallthru
      _
    %p136 = scmp.le.s32.totalorder 1, %s9
    %p137 = scmp.lt.s32.totalorder %s9, 3
    %p138 = pnand %p136, %p137
    %p139 = pneg %p138
    // Predicated region
    $region29: #{dqn_image_block.3} parent=5 // pred_check
      _
    $region30: #{dqn_image_block.3} parent=5 // pred_check_branch
      %141 = sbr.rel (%p138) target = $region32
    $region31: #{dqn_image_block.3} parent=5 // pred_region
      %s142 = ssub.s32 %s9, 1
      %p143 = scmp.lt.s32.totalorder %s14, 1
      %s144 = scalar_select %p143, %s14, 1
      %s145 = smul.addr %s144, 5
      %s146 = smul.addr %s145, 4
      %s147 = scalar_lea.vmem %s0, %s146
      %p148 = pneg %p35
      %p149 = pneg %p32
      %p150 = pneg %p56
      %p151 = pneg %p53
      %p152 = pneg %p77
      %p153 = pneg %p74
      %p154 = pneg %p103
      %p155 = pneg %p100
      %p156 = scmp.lt.s32.totalorder %s14, 1
      %s157 = scalar_select %p156, %s14, 1
      %s158 = smul.addr %s157, 3
      %s159 = smul.addr %s158, 4
      %s160 = scalar_lea.vmem %s3, %s159
      %p161 = scmp.lt.s32.totalorder %s14, 1
      %s162 = scalar_select %p161, %s14, 1
      %s163 = smul.addr %s162, 5
      %s164 = smul.addr %s163, 4
      %s165 = scalar_lea.vmem %s0, %s164
      %p166 = scmp.lt.s32.totalorder %s14, 1
      %s167 = scalar_select %p166, %s14, 1
      %s168 = smul.addr %s167, 3
      %s169 = smul.addr %s168, 4
      %s170 = scalar_lea.vmem %s3, %s169
      %v172 = vld [vmem:[%s165] sm:$0xf]
      %v173 = vld [vmem:[%s165 + $0x4] sm:$0xf]
      %v174 = vld [vmem:[%s165 + $0x8] sm:$0x7]
      %v175 = vld [vmem:[%s1] sm:$0xf]
      %v176 = vld [vmem:[%s1 + $0x4] sm:$0xf]
      %v177 = vld [vmem:[%s1 + $0x8] sm:$0xf]
      %v178 = vld [vmem:[%s1 + $0xc] sm:$0xf]
      %v179 = vld [vmem:[%s1 + $0x10] sm:$0xf]
      %v180 = vld [vmem:[%s1 + $0x14] sm:$0xf]
      %v181 = vld [vmem:[%s1 + $0x18] sm:$0xf]
      %v182 = vld [vmem:[%s1 + $0x1c] sm:$0xf]
      %v183 = vld [vmem:[%s165 + $0x8] sm:$0xf]
      %s184 = scalar_lea.vmem %s1, 32
      %v185 = vld [vmem:[%s184] sm:$0xf]
      %v186 = vld [vmem:[%s184 + $0x4] sm:$0xf]
      %v187 = vld [vmem:[%s184 + $0x8] sm:$0xf]
      %v188 = vld [vmem:[%s184 + $0xc] sm:$0xf]
      %v189 = vld [vmem:[%s184 + $0x10] sm:$0xf]
      %v190 = vld [vmem:[%s184 + $0x14] sm:$0xf]
      %v191 = vld [vmem:[%s184 + $0x18] sm:$0xf]
      %v192 = vld [vmem:[%s184 + $0x1c] sm:$0xf]
      %v196 = vunpack.c.l.b16 %v172
      %v197 = vunpack.c.l.b16 %v173
      %v198 = vunpack.c.l.b16 %v183
      %v199 = vpack.c.b16 %v197, %v196
      %v200 = vpack.c.b16 %v198, %v198
      %vm201 = vsmask.f32 7424
      %v203 = vshrl.u32 %v199, 16
      %v205 = vshll.u32 %v199, 16
      %v207 = vrot.slane %v205, 1
      %v208 = vor.u32 %v203, %v207
      %v210 = vshll.u32 %v200, 16
      %v212 = vrot.slane %v210, 1
      %v213 = vsel %vm201, %v208, %v212
      %v214 = vshrl.u32 %v200, 16
      %v216 = vor.u32 %v214, %v212
      %v225 = vunpack.c.l.b16 %v185
      %v226 = vunpack.c.l.b16 %v186
      %v227 = vunpack.c.l.b16 %v187
      %v228 = vunpack.c.l.b16 %v188
      %v229 = vunpack.c.l.b16 %v189
      %v230 = vunpack.c.l.b16 %v190
      %v231 = vunpack.c.l.b16 %v191
      %v232 = vunpack.c.l.b16 %v192
      %v233 = vpack.c.b16 %v226, %v225
      %v234 = vpack.c.b16 %v228, %v227
      %v235 = vpack.c.b16 %v230, %v229
      %v236 = vpack.c.b16 %v232, %v231
      %vm241 = vcmask 523264
      %v243 = vsel %vm241, %v213, 0
      %v246 = vsel %vm241, %v216, 0
      %248 = vmatprep.subr.bf16.mxu0 0
      %249 = vmatpush1.bf16.msra.mxu0 %v233
      %250 = vmatprep.subr.bf16.mxu0 0
      %251 = vmatpush1.bf16.msra.mxu0 %v234
      %252 = vmatprep.subr.bf16.mxu0 0
      %253 = vmatpush1.bf16.msra.mxu0 %v235
      %254 = vmatprep.subr.bf16.mxu0 0
      %255 = vmatpush1.bf16.msra.mxu0 %v236
      %256 = vmatprep.subr.bf16.mxu0 0
      %257 = vmatpush1.bf16.msra.mxu0 0
      %258 = vmatprep.subr.bf16.mxu0 0
      %259 = vmatpush1.bf16.msra.mxu0 0
      %260 = vmatprep.subr.bf16.mxu0 0
      %261 = vmatpush1.bf16.msra.mxu0 0
      %262 = vmatprep.subr.bf16.mxu0 0
      %263 = vmatpush1.bf16.msra.mxu0 0
      %264 = vmatprep.subr.bf16.mxu0 0
      %265 = vmatpush1.bf16.msra.mxu0 0
      %266 = vmatprep.subr.bf16.mxu0 0
      %267 = vmatpush1.bf16.msra.mxu0 0
      %268 = vmatprep.subr.bf16.mxu0 0
      %269 = vmatpush1.bf16.msra.mxu0 0
      %270 = vmatprep.subr.bf16.mxu0 0
      %271 = vmatpush1.bf16.msra.mxu0 0
      %272 = vmatprep.subr.bf16.mxu0 0
      %273 = vmatpush1.bf16.msra.mxu0 0
      %274 = vmatprep.subr.bf16.mxu0 0
      %275 = vmatpush1.bf16.msra.mxu0 0
      %276 = vmatprep.subr.bf16.mxu0 0
      %277 = vmatpush1.bf16.msra.mxu0 0
      %278 = vmatprep.subr.bf16.mxu0 0
      %279 = vmatpush1.bf16.msra.mxu0 0
      %280 = vmatprep.mubr.bf16.mxu0 0
      %281 = vmatmul.mubr.bf16.gmra.mrb[0].mxu0 %v243
      %v282 = vpop.f32.mrb[0].mxu0
      %v283 = vadd.f32 0.0, %v282
      %v284 = vpop.f32.mrb[0].mxu0
      %v285 = vpop.f32.mrb[0].mxu0
      %v286 = vadd.f32 0.0, %v285
      %v287 = vpop.f32.mrb[0].mxu0
      %288 = vmatprep.mubr.bf16.mxu0 0
      %289 = vmatmul.mubr.bf16.gmra.mrb[0].mxu0 %v246
      %v290 = vpop.f32.mrb[0].mxu0
      %v291 = vadd.f32 0.0, %v290
      %v292 = vpop.f32.mrb[0].mxu0
      %v293 = vpop.f32.mrb[0].mxu0
      %v294 = vpop.f32.mrb[0].mxu0
      %295 = vdwg.mxu0
      %v297 = vunpack.c.l.b16 %v174
      %v298 = vpack.c.b16 %v297, %v297
      %v307 = vunpack.c.l.b16 %v175
      %v308 = vunpack.c.l.b16 %v176
      %v309 = vunpack.c.l.b16 %v177
      %v310 = vunpack.c.l.b16 %v178
      %v311 = vunpack.c.l.b16 %v179
      %v312 = vunpack.c.l.b16 %v180
      %v313 = vunpack.c.l.b16 %v181
      %v314 = vunpack.c.l.b16 %v182
      %v315 = vpack.c.b16 %v308, %v307
      %v316 = vpack.c.b16 %v310, %v309
      %v317 = vpack.c.b16 %v312, %v311
      %v318 = vpack.c.b16 %v314, %v313
      %v323 = vsel %vm241, %v199, 0
      %v326 = vsel %vm241, %v298, 0
      %328 = vmatprep.subr.bf16.mxu0 0
      %329 = vmatpush1.bf16.msra.mxu0 %v315
      %330 = vmatprep.subr.bf16.mxu0 0
      %331 = vmatpush1.bf16.msra.mxu0 %v316
      %332 = vmatprep.subr.bf16.mxu0 0
      %333 = vmatpush1.bf16.msra.mxu0 %v317
      %334 = vmatprep.subr.bf16.mxu0 0
      %335 = vmatpush1.bf16.msra.mxu0 %v318
      %336 = vmatprep.subr.bf16.mxu0 0
      %337 = vmatpush1.bf16.msra.mxu0 0
      %338 = vmatprep.subr.bf16.mxu0 0
      %339 = vmatpush1.bf16.msra.mxu0 0
      %340 = vmatprep.subr.bf16.mxu0 0
      %341 = vmatpush1.bf16.msra.mxu0 0
      %342 = vmatprep.subr.bf16.mxu0 0
      %343 = vmatpush1.bf16.msra.mxu0 0
      %344 = vmatprep.subr.bf16.mxu0 0
      %345 = vmatpush1.bf16.msra.mxu0 0
      %346 = vmatprep.subr.bf16.mxu0 0
      %347 = vmatpush1.bf16.msra.mxu0 0
      %348 = vmatprep.subr.bf16.mxu0 0
      %349 = vmatpush1.bf16.msra.mxu0 0
      %350 = vmatprep.subr.bf16.mxu0 0
      %351 = vmatpush1.bf16.msra.mxu0 0
      %352 = vmatprep.subr.bf16.mxu0 0
      %353 = vmatpush1.bf16.msra.mxu0 0
      %354 = vmatprep.subr.bf16.mxu0 0
      %355 = vmatpush1.bf16.msra.mxu0 0
      %356 = vmatprep.subr.bf16.mxu0 0
      %357 = vmatpush1.bf16.msra.mxu0 0
      %358 = vmatprep.subr.bf16.mxu0 0
      %359 = vmatpush1.bf16.msra.mxu0 0
      %360 = vmatprep.mubr.bf16.mxu0 0
      %361 = vmatmul.mubr.bf16.gmra.mrb[0].mxu0 %v323
      %v362 = vpop.f32.mrb[0].mxu0
      %v363 = vadd.f32 %v283, %v362
      %v364 = vpop.f32.mrb[0].mxu0
      %v365 = vpop.f32.mrb[0].mxu0
      %v366 = vadd.f32 %v286, %v365
      %v367 = vpop.f32.mrb[0].mxu0
      %368 = vmatprep.mubr.bf16.mxu0 0
      %369 = vmatmul.mubr.bf16.gmra.mrb[0].mxu0 %v326
      %v370 = vpop.f32.mrb[0].mxu0
      %v371 = vadd.f32 %v291, %v370
      %v372 = vpop.f32.mrb[0].mxu0
      %v373 = vpop.f32.mrb[0].mxu0
      %v374 = vpop.f32.mrb[0].mxu0
      %375 = vdwg.mxu0
      %v376 = vld [vmem:[%s165] sm:$0x8]
      %v377 = vld [vmem:[%s165 + $0x4] sm:$0xf]
      %v378 = vld [vmem:[%s165 + $0x8] sm:$0xf]
      %v379 = vld [vmem:[%s165 + $0xc] sm:$0x3]
      %s380 = scalar_lea.vmem %s1, 64
      %v381 = vld [vmem:[%s380] sm:$0xf]
      %v382 = vld [vmem:[%s380 + $0x4] sm:$0xf]
      %v383 = vld [vmem:[%s380 + $0x8] sm:$0xf]
      %v384 = vld [vmem:[%s380 + $0xc] sm:$0xf]
      %v385 = vld [vmem:[%s380 + $0x10] sm:$0xf]
      %v386 = vld [vmem:[%s380 + $0x14] sm:$0xf]
      %v387 = vld [vmem:[%s380 + $0x18] sm:$0xf]
      %v388 = vld [vmem:[%s380 + $0x1c] sm:$0xf]
      %v393 = vunpack.c.l.b16 %v376
      %v394 = vunpack.c.l.b16 %v377
      %v395 = vunpack.c.l.b16 %v378
      %v396 = vunpack.c.l.b16 %v379
      %v397 = vpack.c.b16 %v394, %v393
      %v398 = vpack.c.b16 %v396, %v395
      %vm399 = vcmask 1044480
      %v400 = vrot.slane %v397, 3
      %v401 = vrot.slane %v398, 3
      %v402 = vsel %vm399, %v400, %v401
      %v411 = vunpack.c.l.b16 %v381
      %v412 = vunpack.c.l.b16 %v382
      %v413 = vunpack.c.l.b16 %v383
      %v414 = vunpack.c.l.b16 %v384
      %v415 = vunpack.c.l.b16 %v385
      %v416 = vunpack.c.l.b16 %v386
      %v417 = vunpack.c.l.b16 %v387
      %v418 = vunpack.c.l.b16 %v388
      %v419 = vpack.c.b16 %v412, %v411
      %v420 = vpack.c.b16 %v414, %v413
      %v421 = vpack.c.b16 %v416, %v415
      %v422 = vpack.c.b16 %v418, %v417
      %v428 = vsel %vm241, %v402, 0
      %v431 = vsel %vm241, %v401, 0
      %433 = vmatprep.subr.bf16.mxu0 0
      %434 = vmatpush1.bf16.msra.mxu0 %v419
      %435 = vmatprep.subr.bf16.mxu0 0
      %436 = vmatpush1.bf16.msra.mxu0 %v420
      %437 = vmatprep.subr.bf16.mxu0 0
      %438 = vmatpush1.bf16.msra.mxu0 %v421
      %439 = vmatprep.subr.bf16.mxu0 0
      %440 = vmatpush1.bf16.msra.mxu0 %v422
      %441 = vmatprep.subr.bf16.mxu0 0
      %442 = vmatpush1.bf16.msra.mxu0 0
      %443 = vmatprep.subr.bf16.mxu0 0
      %444 = vmatpush1.bf16.msra.mxu0 0
      %445 = vmatprep.subr.bf16.mxu0 0
      %446 = vmatpush1.bf16.msra.mxu0 0
      %447 = vmatprep.subr.bf16.mxu0 0
      %448 = vmatpush1.bf16.msra.mxu0 0
      %449 = vmatprep.subr.bf16.mxu0 0
      %450 = vmatpush1.bf16.msra.mxu0 0
      %451 = vmatprep.subr.bf16.mxu0 0
      %452 = vmatpush1.bf16.msra.mxu0 0
      %453 = vmatprep.subr.bf16.mxu0 0
      %454 = vmatpush1.bf16.msra.mxu0 0
      %455 = vmatprep.subr.bf16.mxu0 0
      %456 = vmatpush1.bf16.msra.mxu0 0
      %457 = vmatprep.subr.bf16.mxu0 0
      %458 = vmatpush1.bf16.msra.mxu0 0
      %459 = vmatprep.subr.bf16.mxu0 0
      %460 = vmatpush1.bf16.msra.mxu0 0
      %461 = vmatprep.subr.bf16.mxu0 0
      %462 = vmatpush1.bf16.msra.mxu0 0
      %463 = vmatprep.subr.bf16.mxu0 0
      %464 = vmatpush1.bf16.msra.mxu0 0
      %465 = vmatprep.mubr.bf16.mxu0 0
      %466 = vmatmul.mubr.bf16.gmra.mrb[0].mxu0 %v428
      %v467 = vpop.f32.mrb[0].mxu0
      %v468 = vadd.f32 0.0, %v467
      %v469 = vpop.f32.mrb[0].mxu0
      %v470 = vpop.f32.mrb[0].mxu0
      %v471 = vadd.f32 0.0, %v470
      %v472 = vpop.f32.mrb[0].mxu0
      %473 = vmatprep.mubr.bf16.mxu0 0
      %474 = vmatmul.mubr.bf16.gmra.mrb[0].mxu0 %v431
      %v475 = vpop.f32.mrb[0].mxu0
      %v476 = vadd.f32 0.0, %v475
      %v477 = vpop.f32.mrb[0].mxu0
      %v478 = vpop.f32.mrb[0].mxu0
      %v479 = vpop.f32.mrb[0].mxu0
      %480 = vdwg.mxu0
      %v481 = vadd.f32 %v363, %v468
      %v482 = vadd.f32 %v366, %v471
      %v483 = vadd.f32 %v371, %v476
      %v484 = vld [vmem:[%s165 + $0xc] sm:$0x7]
      %s485 = scalar_lea.vmem %s1, 96
      %v486 = vld [vmem:[%s485] sm:$0xf]
      %v487 = vld [vmem:[%s485 + $0x4] sm:$0xf]
      %v488 = vld [vmem:[%s485 + $0x8] sm:$0xf]
      %v489 = vld [vmem:[%s485 + $0xc] sm:$0xf]
      %v490 = vld [vmem:[%s485 + $0x10] sm:$0xf]
      %v491 = vld [vmem:[%s485 + $0x14] sm:$0xf]
      %v492 = vld [vmem:[%s485 + $0x18] sm:$0xf]
      %v493 = vld [vmem:[%s485 + $0x1c] sm:$0xf]
      %v495 = vunpack.c.l.b16 %v484
      %v496 = vpack.c.b16 %v495, %v395
      %vm497 = vsmask.f32 4352
      %v499 = vshrl.u32 %v397, 16
      %v501 = vrot.slane %v499, 3
      %v502 = vshll.u32 %v397, 16
      %v504 = vrot.slane %v502, 4
      %v505 = vor.u32 %v501, %v504
      %v507 = vshrl.u32 %v496, 16
      %v509 = vrot.slane %v507, 3
      %v510 = vshll.u32 %v496, 16
      %v512 = vrot.slane %v510, 4
      %v513 = vor.u32 %v509, %v512
      %v514 = vsel %vm497, %v505, %v513
      %v523 = vunpack.c.l.b16 %v486
      %v524 = vunpack.c.l.b16 %v487
      %v525 = vunpack.c.l.b16 %v488
      %v526 = vunpack.c.l.b16 %v489
      %v527 = vunpack.c.l.b16 %v490
      %v528 = vunpack.c.l.b16 %v491
      %v529 = vunpack.c.l.b16 %v492
      %v530 = vunpack.c.l.b16 %v493
      %v531 = vpack.c.b16 %v524, %v523
      %v532 = vpack.c.b16 %v526, %v525
      %v533 = vpack.c.b16 %v528, %v527
      %v534 = vpack.c.b16 %v530, %v529
      %v540 = vsel %vm241, %v514, 0
      %v543 = vsel %vm241, %v513, 0
      %545 = vmatprep.subr.bf16.mxu0 0
      %546 = vmatpush1.bf16.msra.mxu0 %v531
      %547 = vmatprep.subr.bf16.mxu0 0
      %548 = vmatpush1.bf16.msra.mxu0 %v532
      %549 = vmatprep.subr.bf16.mxu0 0
      %550 = vmatpush1.bf16.msra.mxu0 %v533
      %551 = vmatprep.subr.bf16.mxu0 0
      %552 = vmatpush1.bf16.msra.mxu0 %v534
      %553 = vmatprep.subr.bf16.mxu0 0
      %554 = vmatpush1.bf16.msra.mxu0 0
      %555 = vmatprep.subr.bf16.mxu0 0
      %556 = vmatpush1.bf16.msra.mxu0 0
      %557 = vmatprep.subr.bf16.mxu0 0
      %558 = vmatpush1.bf16.msra.mxu0 0
      %559 = vmatprep.subr.bf16.mxu0 0
      %560 = vmatpush1.bf16.msra.mxu0 0
      %561 = vmatprep.subr.bf16.mxu0 0
      %562 = vmatpush1.bf16.msra.mxu0 0
      %563 = vmatprep.subr.bf16.mxu0 0
      %564 = vmatpush1.bf16.msra.mxu0 0
      %565 = vmatprep.subr.bf16.mxu0 0
      %566 = vmatpush1.bf16.msra.mxu0 0
      %567 = vmatprep.subr.bf16.mxu0 0
      %568 = vmatpush1.bf16.msra.mxu0 0
      %569 = vmatprep.subr.bf16.mxu0 0
      %570 = vmatpush1.bf16.msra.mxu0 0
      %571 = vmatprep.subr.bf16.mxu0 0
      %572 = vmatpush1.bf16.msra.mxu0 0
      %573 = vmatprep.subr.bf16.mxu0 0
      %574 = vmatpush1.bf16.msra.mxu0 0
      %575 = vmatprep.subr.bf16.mxu0 0
      %576 = vmatpush1.bf16.msra.mxu0 0
      %577 = vmatprep.mubr.bf16.mxu0 0
      %578 = vmatmul.mubr.bf16.gmra.mrb[0].mxu0 %v540
      %v579 = vpop.f32.mrb[0].mxu0
      %v580 = vadd.f32 0.0, %v579
      %v581 = vpop.f32.mrb[0].mxu0
      %v582 = vpop.f32.mrb[0].mxu0
      %v583 = vadd.f32 0.0, %v582
      %v584 = vpop.f32.mrb[0].mxu0
      %585 = vmatprep.mubr.bf16.mxu0 0
      %586 = vmatmul.mubr.bf16.gmra.mrb[0].mxu0 %v543
      %v587 = vpop.f32.mrb[0].mxu0
      %v588 = vadd.f32 0.0, %v587
      %v589 = vpop.f32.mrb[0].mxu0
      %v590 = vpop.f32.mrb[0].mxu0
      %v591 = vpop.f32.mrb[0].mxu0
      %592 = vdwg.mxu0
      %v593 = vadd.f32 %v481, %v580
      %v594 = vadd.f32 %v482, %v583
      %v595 = vadd.f32 %v483, %v588
      %v596 = vld [vmem:[%s2] sm:$0x1]
      %v598 = vlaneseq
      %v599 = vshrl.u32 %v598, 7
      %v600 = vsub.s32 0, %v599
      %v601 = vrot.slane %v596, %v600
      %v603 = vadd.f32 %v593, %v601
      %v604 = vadd.f32 %v594, %v601
      %v605 = vadd.f32 %v595, %v601
      %v606 = vmax.f32 %v603, 0.0
      %v607 = vmax.f32 %v604, 0.0
      %v608 = vmax.f32 %v605, 0.0
      %v609 = vpack.c.bf16 %v607, %v606
      %v610 = vpack.c.bf16 %v608, %v608
      %v613 = vunpack.c.l.b16 %v609
      %v614 = vunpack.c.h.b16 %v609
      %v615 = vunpack.c.l.b16 %v610
      %v616 = vpack.c.b16 %v613, %v613
      %v617 = vpack.c.b16 %v614, %v614
      %v618 = vpack.c.b16 %v615, %v615
      %622 = vst [vmem:[%s170] sm:$0xf] %v616
      %623 = vst [vmem:[%s170 + $0x4] sm:$0xf] %v617
      %624 = vst [vmem:[%s170 + $0x8] sm:$0x7] %v618
      %p625 = scmp.lt.s32.totalorder %s14, 1
      %s626 = scalar_select %p625, %s14, 1
      %s627 = smul.addr %s626, 3
      %s628 = smul.addr %s627, 4
      %s629 = scalar_lea.vmem %s3, %s628
      // Predicated region
      $region33: #{dqn_image_block.3} parent=31 // pred_check
        %p630 = pneg %p100
      $region34: #{dqn_image_block.3} parent=31 // pred_check_branch
        %632 = sbr.rel (%p630) target = $region36
      $region35: #{dqn_image_block.3} parent=31 // pred_region
        _
      $region36: #{dqn_image_block.3} parent=31 // pred_fallthru
        _
    $region32: #{dqn_image_block.3} parent=5 // pred_fallthru
      _
    %p633 = scmp.le.s32.totalorder 2, %s9
    // Predicated region
    $region37: #{dqn_image_block.3} parent=5 // pred_check
      %p634 = pneg %p633
    $region38: #{dqn_image_block.3} parent=5 // pred_check_branch
      %636 = sbr.rel (%p634) target = $region40
    $region39: #{dqn_image_block.3} parent=5 // pred_region
      %s637 = ssub.s32 %s9, 2
      // Predicated region
      $region41: #{dqn_image_block.3} parent=39 // pred_check
        %p638 = pneg %p106
      $region42: #{dqn_image_block.3} parent=39 // pred_check_branch
        %640 = sbr.rel (%p638) target = $region44
      $region43: #{dqn_image_block.3} parent=39 // pred_region
        %p641 = scmp.lt.s32.totalorder %s15, 1
        %s642 = scalar_select %p641, %s15, 1
        %s643 = smul.addr %s642, 3
        %s644 = smul.addr %s643, 4
        %s645 = scalar_lea.vmem %s3, %s644
      $region44: #{dqn_image_block.3} parent=39 // pred_fallthru
        _
    $region40: #{dqn_image_block.3} parent=5 // pred_fallthru
      _
  $region6: #{dqn_image_block.3} parent=0 // loop_footer
    %s13 = sadd.s32 1, %s9
  $region7: #{dqn_image_block.3} parent=0 // loop_footer_branch
    %8 = sbr.rel target = $region3
  $region8: #{dqn_image_block.3} parent=0 // loop_exit
    _

// kernel: dqn_image_block.4
$region0: #{dqn_image_block.4}
  #allocation0 [shape = 'u32[]', space=smem, size = 0x4, offset = 0x4, fixed_abs, tag = 'smem constant byte address 0x4 - core index']
  #allocation1 [shape = 'u32[144,128]{1,0:T(1,128)}', space=vmem, size = 0x12000, scoped, tag = 'internal scratch']
  %s0 = inlined_call_operand.vmem [shape: bf16[2,16,512], index: 0, kind: input, shape index: {}]
  %s1 = inlined_call_operand.vmem [shape: bf16[4,512,128], index: 1, kind: input, shape index: {}]
  %s2 = inlined_call_operand.vmem [shape: f32[1,128], index: 2, kind: input, shape index: {}]
  %s3 = inlined_call_operand.vmem [shape: bf16[2,11,128], index: 3, kind: output, shape index: {}]
  %s4 = sld [smem:[#allocation0]]
  $region45: #{dqn_image_block.4} parent=0
    _
  %s6 = ssub.s32 1, %s4
  %s7 = scalar_select 0, %s6, %s4
  loop: start=0, step=1, limit=4
  $region2: #{dqn_image_block.4} parent=0 // loop_pre_header
    _
  $region3: #{dqn_image_block.4} parent=0 // loop_header
    %s9 = sphi 0, %s13
    %p10 = scmp.ge.s32.totalorder %s9, 4
    %s19 = sphi 0, %s21
    %s22 = sphi 0, %s19
    %s23 = sphi 0, %s22
    %s39 = sphi 0, %s23
    %s43 = sphi 0, %s43
    %s45 = sphi 0, %s43
    %s46 = sphi 0, %s45
    %s60 = sphi 0, %s46
    %s64 = sphi 0, %s64
    %s66 = sphi 0, %s64
    %s67 = sphi 0, %s66
    %s81 = sphi 0, %s67
    %s87 = sphi 0, %s89
    %s90 = sphi 0, %s87
    %s91 = sphi 0, %s90
    %s107 = sphi 0, %s91
  $region4: #{dqn_image_block.4} parent=0 // loop_header_branch
    %12 = sbr.rel (%p10) target = $region8
  $region5: #{dqn_image_block.4} parent=0 // loop_body
    %s14 = ssub.s32 %s9, 1
    %s15 = ssub.s32 %s9, 2
    %s16 = sadd.s32 %s9, 1
    %s17 = ssub.s32 %s9, %s16
    %p18 = scmp.eq.s32.totalorder %s17, 0
    %s20 = sadd.s32 %s19, 1
    %s21 = scalar_select %p18, %s19, %s20
    %p24 = pneg %p18
    %p25 = scmp.eq.s32.totalorder %s9, 1
    %p26 = por %p24, %p25
    %p27 = scmp.ne.s32.totalorder %s19, %s22
    %p28 = scmp.eq.s32.totalorder %s9, 0
    %p29 = por %p27, %p28
    %p30 = scmp.ne.s32.totalorder %s19, %s22
    %p31 = scmp.eq.s32.totalorder %s14, 1
    %p32 = por %p30, %p31
    %p33 = scmp.ne.s32.totalorder %s22, %s23
    %p34 = scmp.eq.s32.totalorder %s14, 0
    %p35 = por %p33, %p34
    %p36 = scmp.ne.s32.totalorder %s22, %s23
    %p37 = scmp.eq.s32.totalorder %s15, 1
    %p38 = por %p36, %p37
    %p40 = scmp.ne.s32.totalorder %s23, %s39
    %p41 = scmp.eq.s32.totalorder %s15, 0
    %p42 = por %p40, %p41
    %s44 = sadd.s32 %s43, 1
    %p47 = scmp.eq.s32.totalorder %s9, 1
    %p48 = scmp.ne.s32.totalorder %s43, %s45
    %p49 = scmp.eq.s32.totalorder %s9, 0
    %p50 = por %p48, %p49
    %p51 = scmp.ne.s32.totalorder %s43, %s45
    %p52 = scmp.eq.s32.totalorder %s14, 1
    %p53 = por %p51, %p52
    %p54 = scmp.ne.s32.totalorder %s45, %s46
    %p55 = scmp.eq.s32.totalorder %s14, 0
    %p56 = por %p54, %p55
    %p57 = scmp.ne.s32.totalorder %s45, %s46
    %p58 = scmp.eq.s32.totalorder %s15, 1
    %p59 = por %p57, %p58
    %p61 = scmp.ne.s32.totalorder %s46, %s60
    %p62 = scmp.eq.s32.totalorder %s15, 0
    %p63 = por %p61, %p62
    %s65 = sadd.s32 %s64, 1
    %p68 = scmp.eq.s32.totalorder %s9, 1
    %p69 = scmp.ne.s32.totalorder %s64, %s66
    %p70 = scmp.eq.s32.totalorder %s9, 0
    %p71 = por %p69, %p70
    %p72 = scmp.ne.s32.totalorder %s64, %s66
    %p73 = scmp.eq.s32.totalorder %s14, 1
    %p74 = por %p72, %p73
    %p75 = scmp.ne.s32.totalorder %s66, %s67
    %p76 = scmp.eq.s32.totalorder %s14, 0
    %p77 = por %p75, %p76
    %p78 = scmp.ne.s32.totalorder %s66, %s67
    %p79 = scmp.eq.s32.totalorder %s15, 1
    %p80 = por %p78, %p79
    %p82 = scmp.ne.s32.totalorder %s67, %s81
    %p83 = scmp.eq.s32.totalorder %s15, 0
    %p84 = por %p82, %p83
    %s85 = ssub.s32 %s9, %s16
    %p86 = scmp.eq.s32.totalorder %s85, 0
    %s88 = sadd.s32 %s87, 1
    %s89 = scalar_select %p86, %s87, %s88
    %p92 = pneg %p86
    %p93 = scmp.eq.s32.totalorder %s9, 1
    %p94 = por %p92, %p93
    %p95 = scmp.ne.s32.totalorder %s87, %s90
    %p96 = scmp.eq.s32.totalorder %s9, 0
    %p97 = por %p95, %p96
    %p98 = scmp.ne.s32.totalorder %s87, %s90
    %p99 = scmp.eq.s32.totalorder %s14, 1
    %p100 = por %p98, %p99
    %p101 = scmp.ne.s32.totalorder %s90, %s91
    %p102 = scmp.eq.s32.totalorder %s14, 0
    %p103 = por %p101, %p102
    %p104 = scmp.ne.s32.totalorder %s90, %s91
    %p105 = scmp.eq.s32.totalorder %s15, 1
    %p106 = por %p104, %p105
    %p108 = scmp.ne.s32.totalorder %s91, %s107
    %p109 = scmp.eq.s32.totalorder %s15, 0
    %p110 = por %p108, %p109
    %p111 = scmp.le.s32.totalorder 1, %s9
    %p112 = scmp.lt.s32.totalorder %s9, 3
    %p113 = pnand %p111, %p112
    %p114 = pneg %p113
    // Predicated region
    $region9: #{dqn_image_block.4} parent=5 // pred_check
      _
    $region10: #{dqn_image_block.4} parent=5 // pred_check_branch
      %116 = sbr.rel (%p113) target = $region12
    $region11: #{dqn_image_block.4} parent=5 // pred_region
      %s117 = ssub.s32 %s9, 1
      // Predicated region
      $region13: #{dqn_image_block.4} parent=11 // pred_check
        %p118 = pneg %p56
      $region14: #{dqn_image_block.4} parent=11 // pred_check_branch
        %120 = sbr.rel (%p118) target = $region16
      $region15: #{dqn_image_block.4} parent=11 // pred_region
        _
      $region16: #{dqn_image_block.4} parent=11 // pred_fallthru
        _
      // Predicated region
      $region17: #{dqn_image_block.4} parent=11 // pred_check
        %p121 = pneg %p77
      $region18: #{dqn_image_block.4} parent=11 // pred_check_branch
        %123 = sbr.rel (%p121) target = $region20
      $region19: #{dqn_image_block.4} parent=11 // pred_region
        _
      $region20: #{dqn_image_block.4} parent=11 // pred_fallthru
        _
    $region12: #{dqn_image_block.4} parent=5 // pred_fallthru
      _
    %p124 = scmp.lt.s32.totalorder %s9, 2
    // Predicated region
    $region21: #{dqn_image_block.4} parent=5 // pred_check
      %p125 = pneg %p124
    $region22: #{dqn_image_block.4} parent=5 // pred_check_branch
      %127 = sbr.rel (%p125) target = $region24
    $region23: #{dqn_image_block.4} parent=5 // pred_region
      // Predicated region
      $region25: #{dqn_image_block.4} parent=23 // pred_check
        %p128 = pneg %p29
      $region26: #{dqn_image_block.4} parent=23 // pred_check_branch
        %130 = sbr.rel (%p128) target = $region28
      $region27: #{dqn_image_block.4} parent=23 // pred_region
        %p131 = scmp.lt.s32.totalorder %s9, 1
        %s132 = scalar_select %p131, %s9, 1
        %s133 = smul.addr %s132, 8
        %s134 = smul.addr %s133, 4
        %s135 = scalar_lea.vmem %s0, %s134
      $region28: #{dqn_image_block.4} parent=23 // pred_fallthru
        _
    $region24: #{dqn_image_block.4} parent=5 // pred_fallthru
      _
    %p136 = scmp.le.s32.totalorder 1, %s9
    %p137 = scmp.lt.s32.totalorder %s9, 3
    %p138 = pnand %p136, %p137
    %p139 = pneg %p138
    // Predicated region
    $region29: #{dqn_image_block.4} parent=5 // pred_check
      _
    $region30: #{dqn_image_block.4} parent=5 // pred_check_branch
      %141 = sbr.rel (%p138) target = $region32
    $region31: #{dqn_image_block.4} parent=5 // pred_region
      %s142 = ssub.s32 %s9, 1
      %p143 = scmp.lt.s32.totalorder %s14, 1
      %s144 = scalar_select %p143, %s14, 1
      %s145 = smul.addr %s144, 8
      %s146 = smul.addr %s145, 4
      %s147 = scalar_lea.vmem %s0, %s146
      %p148 = pneg %p35
      %p149 = pneg %p32
      %p150 = pneg %p56
      %p151 = pneg %p53
      %p152 = pneg %p77
      %p153 = pneg %p74
      %p154 = pneg %p103
      %p155 = pneg %p100
      %p156 = scmp.lt.s32.totalorder %s14, 1
      %s157 = scalar_select %p156, %s14, 1
      %s158 = smul.addr %s157, 2
      %s159 = smul.addr %s158, 4
      %s160 = scalar_lea.vmem %s3, %s159
      %p161 = scmp.lt.s32.totalorder %s14, 1
      %s162 = scalar_select %p161, %s14, 1
      %s163 = smul.addr %s162, 8
      %s164 = smul.addr %s163, 4
      %s165 = scalar_lea.vmem %s0, %s164
      %p166 = scmp.lt.s32.totalorder %s14, 1
      %s167 = scalar_select %p166, %s14, 1
      %s168 = smul.addr %s167, 2
      %s169 = smul.addr %s168, 4
      %s170 = scalar_lea.vmem %s3, %s169
      %v172 = vld [vmem:[%s165] sm:$0xff]
      %v173 = vld [vmem:[%s165 + $0x8] sm:$0xff]
      %v174 = vld [vmem:[%s165 + $0x10] sm:$0x33]
      %v175 = vld [vmem:[%s165 + $0x18] sm:$0x33]
      %v176 = vld [vmem:[%s1] sm:$0xf]
      %v177 = vld [vmem:[%s1 + $0x4] sm:$0xf]
      %v178 = vld [vmem:[%s1 + $0x8] sm:$0xf]
      %v179 = vld [vmem:[%s1 + $0xc] sm:$0xf]
      %v180 = vld [vmem:[%s1 + $0x10] sm:$0xf]
      %v181 = vld [vmem:[%s1 + $0x14] sm:$0xf]
      %v182 = vld [vmem:[%s1 + $0x18] sm:$0xf]
      %v183 = vld [vmem:[%s1 + $0x1c] sm:$0xf]
      %v184 = vld [vmem:[%s1 + $0x20] sm:$0xf]
      %v185 = vld [vmem:[%s1 + $0x24] sm:$0xf]
      %v186 = vld [vmem:[%s1 + $0x28] sm:$0xf]
      %v187 = vld [vmem:[%s1 + $0x2c] sm:$0xf]
      %v188 = vld [vmem:[%s1 + $0x30] sm:$0xf]
      %v189 = vld [vmem:[%s1 + $0x34] sm:$0xf]
      %v190 = vld [vmem:[%s1 + $0x38] sm:$0xf]
      %v191 = vld [vmem:[%s1 + $0x3c] sm:$0xf]
      %v192 = vld [vmem:[%s1 + $0x40] sm:$0xf]
      %v193 = vld [vmem:[%s1 + $0x44] sm:$0xf]
      %v194 = vld [vmem:[%s1 + $0x48] sm:$0xf]
      %v195 = vld [vmem:[%s1 + $0x4c] sm:$0xf]
      %v196 = vld [vmem:[%s1 + $0x50] sm:$0xf]
      %v197 = vld [vmem:[%s1 + $0x54] sm:$0xf]
      %v198 = vld [vmem:[%s1 + $0x58] sm:$0xf]
      %v199 = vld [vmem:[%s1 + $0x5c] sm:$0xf]
      %v200 = vld [vmem:[%s1 + $0x60] sm:$0xf]
      %v201 = vld [vmem:[%s1 + $0x64] sm:$0xf]
      %v202 = vld [vmem:[%s1 + $0x68] sm:$0xf]
      %v203 = vld [vmem:[%s1 + $0x6c] sm:$0xf]
      %v204 = vld [vmem:[%s1 + $0x70] sm:$0xf]
      %v205 = vld [vmem:[%s1 + $0x74] sm:$0xf]
      %v206 = vld [vmem:[%s1 + $0x78] sm:$0xf]
      %v207 = vld [vmem:[%s1 + $0x7c] sm:$0xf]
      %v208 = vld [vmem:[%s1 + $0x80] sm:$0xf]
      %v209 = vld [vmem:[%s1 + $0x84] sm:$0xf]
      %v210 = vld [vmem:[%s1 + $0x88] sm:$0xf]
      %v211 = vld [vmem:[%s1 + $0x8c] sm:$0xf]
      %v212 = vld [vmem:[%s1 + $0x90] sm:$0xf]
      %v213 = vld [vmem:[%s1 + $0x94] sm:$0xf]
      %v214 = vld [vmem:[%s1 + $0x98] sm:$0xf]
      %v215 = vld [vmem:[%s1 + $0x9c] sm:$0xf]
      %v216 = vld [vmem:[%s1 + $0xa0] sm:$0xf]
      %v217 = vld [vmem:[%s1 + $0xa4] sm:$0xf]
      %v218 = vld [vmem:[%s1 + $0xa8] sm:$0xf]
      %v219 = vld [vmem:[%s1 + $0xac] sm:$0xf]
      %v220 = vld [vmem:[%s1 + $0xb0] sm:$0xf]
      %v221 = vld [vmem:[%s1 + $0xb4] sm:$0xf]
      %v222 = vld [vmem:[%s1 + $0xb8] sm:$0xf]
      %v223 = vld [vmem:[%s1 + $0xbc] sm:$0xf]
      %v224 = vld [vmem:[%s1 + $0xc0] sm:$0xf]
      %v225 = vld [vmem:[%s1 + $0xc4] sm:$0xf]
      %v226 = vld [vmem:[%s1 + $0xc8] sm:$0xf]
      %v227 = vld [vmem:[%s1 + $0xcc] sm:$0xf]
      %v228 = vld [vmem:[%s1 + $0xd0] sm:$0xf]
      %v229 = vld [vmem:[%s1 + $0xd4] sm:$0xf]
      %v230 = vld [vmem:[%s1 + $0xd8] sm:$0xf]
      %v231 = vld [vmem:[%s1 + $0xdc] sm:$0xf]
      %v232 = vld [vmem:[%s1 + $0xe0] sm:$0xf]
      %v233 = vld [vmem:[%s1 + $0xe4] sm:$0xf]
      %v234 = vld [vmem:[%s1 + $0xe8] sm:$0xf]
      %v235 = vld [vmem:[%s1 + $0xec] sm:$0xf]
      %v236 = vld [vmem:[%s1 + $0xf0] sm:$0xf]
      %v237 = vld [vmem:[%s1 + $0xf4] sm:$0xf]
      %v238 = vld [vmem:[%s1 + $0xf8] sm:$0xf]
      %v239 = vld [vmem:[%s1 + $0xfc] sm:$0xf]
      %s240 = scalar_lea.vmem %s1, 256
      %v241 = vld [vmem:[%s240] sm:$0xf]
      %v242 = vld [vmem:[%s240 + $0x4] sm:$0xf]
      %v243 = vld [vmem:[%s240 + $0x8] sm:$0xf]
      %v244 = vld [vmem:[%s240 + $0xc] sm:$0xf]
      %v245 = vld [vmem:[%s240 + $0x10] sm:$0xf]
      %v246 = vld [vmem:[%s240 + $0x14] sm:$0xf]
      %v247 = vld [vmem:[%s240 + $0x18] sm:$0xf]
      %v248 = vld [vmem:[%s240 + $0x1c] sm:$0xf]
      %v249 = vld [vmem:[%s240 + $0x20] sm:$0xf]
      %v250 = vld [vmem:[%s240 + $0x24] sm:$0xf]
      %v251 = vld [vmem:[%s240 + $0x28] sm:$0xf]
      %v252 = vld [vmem:[%s240 + $0x2c] sm:$0xf]
      %v253 = vld [vmem:[%s240 + $0x30] sm:$0xf]
      %v254 = vld [vmem:[%s240 + $0x34] sm:$0xf]
      %v255 = vld [vmem:[%s240 + $0x38] sm:$0xf]
      %v256 = vld [vmem:[%s240 + $0x3c] sm:$0xf]
      %v257 = vld [vmem:[%s240 + $0x40] sm:$0xf]
      %v258 = vld [vmem:[%s240 + $0x44] sm:$0xf]
      %v259 = vld [vmem:[%s240 + $0x48] sm:$0xf]
      %v260 = vld [vmem:[%s240 + $0x4c] sm:$0xf]
      %v261 = vld [vmem:[%s240 + $0x50] sm:$0xf]
      %v262 = vld [vmem:[%s240 + $0x54] sm:$0xf]
      %v263 = vld [vmem:[%s240 + $0x58] sm:$0xf]
      %v264 = vld [vmem:[%s240 + $0x5c] sm:$0xf]
      %v265 = vld [vmem:[%s240 + $0x60] sm:$0xf]
      %v266 = vld [vmem:[%s240 + $0x64] sm:$0xf]
      %v267 = vld [vmem:[%s240 + $0x68] sm:$0xf]
      %v268 = vld [vmem:[%s240 + $0x6c] sm:$0xf]
      %v269 = vld [vmem:[%s240 + $0x70] sm:$0xf]
      %v270 = vld [vmem:[%s240 + $0x74] sm:$0xf]
      %v271 = vld [vmem:[%s240 + $0x78] sm:$0xf]
      %v272 = vld [vmem:[%s240 + $0x7c] sm:$0xf]
      %v273 = vld [vmem:[%s240 + $0x80] sm:$0xf]
      %v274 = vld [vmem:[%s240 + $0x84] sm:$0xf]
      %v275 = vld [vmem:[%s240 + $0x88] sm:$0xf]
      %v276 = vld [vmem:[%s240 + $0x8c] sm:$0xf]
      %v277 = vld [vmem:[%s240 + $0x90] sm:$0xf]
      %v278 = vld [vmem:[%s240 + $0x94] sm:$0xf]
      %v279 = vld [vmem:[%s240 + $0x98] sm:$0xf]
      %v280 = vld [vmem:[%s240 + $0x9c] sm:$0xf]
      %v281 = vld [vmem:[%s240 + $0xa0] sm:$0xf]
      %v282 = vld [vmem:[%s240 + $0xa4] sm:$0xf]
      %v283 = vld [vmem:[%s240 + $0xa8] sm:$0xf]
      %v284 = vld [vmem:[%s240 + $0xac] sm:$0xf]
      %v285 = vld [vmem:[%s240 + $0xb0] sm:$0xf]
      %v286 = vld [vmem:[%s240 + $0xb4] sm:$0xf]
      %v287 = vld [vmem:[%s240 + $0xb8] sm:$0xf]
      %v288 = vld [vmem:[%s240 + $0xbc] sm:$0xf]
      %v289 = vld [vmem:[%s240 + $0xc0] sm:$0xf]
      %v290 = vld [vmem:[%s240 + $0xc4] sm:$0xf]
      %v291 = vld [vmem:[%s240 + $0xc8] sm:$0xf]
      %v292 = vld [vmem:[%s240 + $0xcc] sm:$0xf]
      %v293 = vld [vmem:[%s240 + $0xd0] sm:$0xf]
      %v294 = vld [vmem:[%s240 + $0xd4] sm:$0xf]
      %v295 = vld [vmem:[%s240 + $0xd8] sm:$0xf]
      %v296 = vld [vmem:[%s240 + $0xdc] sm:$0xf]
      %v297 = vld [vmem:[%s240 + $0xe0] sm:$0xf]
      %v298 = vld [vmem:[%s240 + $0xe4] sm:$0xf]
      %v299 = vld [vmem:[%s240 + $0xe8] sm:$0xf]
      %v300 = vld [vmem:[%s240 + $0xec] sm:$0xf]
      %v301 = vld [vmem:[%s240 + $0xf0] sm:$0xf]
      %v302 = vld [vmem:[%s240 + $0xf4] sm:$0xf]
      %v303 = vld [vmem:[%s240 + $0xf8] sm:$0xf]
      %v304 = vld [vmem:[%s240 + $0xfc] sm:$0xf]
      %v309 = vunpack.c.l.b16 %v172
      %v310 = vunpack.c.h.b16 %v172
      %v311 = vunpack.c.l.b16 %v173
      %v312 = vunpack.c.h.b16 %v173
      %v313 = vunpack.c.l.b16 %v174
      %v314 = vunpack.c.h.b16 %v174
      %v315 = vunpack.c.l.b16 %v175
      %v316 = vunpack.c.h.b16 %v175
      %v317 = vpack.c.b16 %v313, %v309
      %v318 = vpack.c.b16 %v314, %v310
      %v319 = vpack.c.b16 %v315, %v311
      %v320 = vpack.c.b16 %v316, %v312
      %v322 = vshrl.u32 %v317, 16
      %v324 = vshll.u32 %v317, 16
      %v326 = vrot.slane %v324, 1
      %v327 = vor.u32 %v322, %v326
      %v329 = vshrl.u32 %v318, 16
      %v331 = vshll.u32 %v318, 16
      %v333 = vrot.slane %v331, 1
      %v334 = vor.u32 %v329, %v333
      %v336 = vshrl.u32 %v319, 16
      %v338 = vshll.u32 %v319, 16
      %v340 = vrot.slane %v338, 1
      %v341 = vor.u32 %v336, %v340
      %v343 = vshrl.u32 %v320, 16
      %v345 = vshll.u32 %v320, 16
      %v347 = vrot.slane %v345, 1
      %v348 = vor.u32 %v343, %v347
      %v417 = vunpack.c.l.b16 %v241
      %v418 = vunpack.c.l.b16 %v242
      %v419 = vunpack.c.l.b16 %v243
      %v420 = vunpack.c.l.b16 %v244
      %v421 = vunpack.c.l.b16 %v245
      %v422 = vunpack.c.l.b16 %v246
      %v423 = vunpack.c.l.b16 %v247
      %v424 = vunpack.c.l.b16 %v248
      %v425 = vunpack.c.l.b16 %v249
      %v426 = vunpack.c.l.b16 %v250
      %v427 = vunpack.c.l.b16 %v251
      %v428 = vunpack.c.l.b16 %v252
      %v429 = vunpack.c.l.b16 %v253
      %v430 = vunpack.c.l.b16 %v254
      %v431 = vunpack.c.l.b16 %v255
      %v432 = vunpack.c.l.b16 %v256
      %v433 = vunpack.c.l.b16 %v257
      %v434 = vunpack.c.l.b16 %v258
      %v435 = vunpack.c.l.b16 %v259
      %v436 = vunpack.c.l.b16 %v260
      %v437 = vunpack.c.l.b16 %v261
      %v438 = vunpack.c.l.b16 %v262
      %v439 = vunpack.c.l.b16 %v263
      %v440 = vunpack.c.l.b16 %v264
      %v441 = vunpack.c.l.b16 %v265
      %v442 = vunpack.c.l.b16 %v266
      %v443 = vunpack.c.l.b16 %v267
      %v444 = vunpack.c.l.b16 %v268
      %v445 = vunpack.c.l.b16 %v269
      %v446 = vunpack.c.l.b16 %v270
      %v447 = vunpack.c.l.b16 %v271
      %v448 = vunpack.c.l.b16 %v272
      %v449 = vunpack.c.l.b16 %v273
      %v450 = vunpack.c.l.b16 %v274
      %v451 = vunpack.c.l.b16 %v275
      %v452 = vunpack.c.l.b16 %v276
      %v453 = vunpack.c.l.b16 %v277
      %v454 = vunpack.c.l.b16 %v278
      %v455 = vunpack.c.l.b16 %v279
      %v456 = vunpack.c.l.b16 %v280
      %v457 = vunpack.c.l.b16 %v281
      %v458 = vunpack.c.l.b16 %v282
      %v459 = vunpack.c.l.b16 %v283
      %v460 = vunpack.c.l.b16 %v284
      %v461 = vunpack.c.l.b16 %v285
      %v462 = vunpack.c.l.b16 %v286
      %v463 = vunpack.c.l.b16 %v287
      %v464 = vunpack.c.l.b16 %v288
      %v465 = vunpack.c.l.b16 %v289
      %v466 = vunpack.c.l.b16 %v290
      %v467 = vunpack.c.l.b16 %v291
      %v468 = vunpack.c.l.b16 %v292
      %v469 = vunpack.c.l.b16 %v293
      %v470 = vunpack.c.l.b16 %v294
      %v471 = vunpack.c.l.b16 %v295
      %v472 = vunpack.c.l.b16 %v296
      %v473 = vunpack.c.l.b16 %v297
      %v474 = vunpack.c.l.b16 %v298
      %v475 = vunpack.c.l.b16 %v299
      %v476 = vunpack.c.l.b16 %v300
      %v477 = vunpack.c.l.b16 %v301
      %v478 = vunpack.c.l.b16 %v302
      %v479 = vunpack.c.l.b16 %v303
      %v480 = vunpack.c.l.b16 %v304
      %v481 = vpack.c.b16 %v418, %v417
      %v482 = vpack.c.b16 %v420, %v419
      %v483 = vpack.c.b16 %v422, %v421
      %v484 = vpack.c.b16 %v424, %v423
      %v485 = vpack.c.b16 %v426, %v425
      %v486 = vpack.c.b16 %v428, %v427
      %v487 = vpack.c.b16 %v430, %v429
      %v488 = vpack.c.b16 %v432, %v431
      %v489 = vpack.c.b16 %v434, %v433
      %v490 = vpack.c.b16 %v436, %v435
      %v491 = vpack.c.b16 %v438, %v437
      %v492 = vpack.c.b16 %v440, %v439
      %v493 = vpack.c.b16 %v442, %v441
      %v494 = vpack.c.b16 %v444, %v443
      %v495 = vpack.c.b16 %v446, %v445
      %v496 = vpack.c.b16 %v448, %v447
      %v497 = vpack.c.b16 %v450, %v449
      %v498 = vpack.c.b16 %v452, %v451
      %v499 = vpack.c.b16 %v454, %v453
      %v500 = vpack.c.b16 %v456, %v455
      %v501 = vpack.c.b16 %v458, %v457
      %v502 = vpack.c.b16 %v460, %v459
      %v503 = vpack.c.b16 %v462, %v461
      %v504 = vpack.c.b16 %v464, %v463
      %v505 = vpack.c.b16 %v466, %v465
      %v506 = vpack.c.b16 %v468, %v467
      %v507 = vpack.c.b16 %v470, %v469
      %v508 = vpack.c.b16 %v472, %v471
      %v509 = vpack.c.b16 %v474, %v473
      %v510 = vpack.c.b16 %v476, %v475
      %v511 = vpack.c.b16 %v478, %v477
      %v512 = vpack.c.b16 %v480, %v479
      %545 = vmatprep.subr.bf16.mxu0 0
      %546 = vmatpush1.bf16.msra.mxu0 %v481
      %547 = vmatprep.subr.bf16.mxu0 0
      %548 = vmatpush1.bf16.msra.mxu0 %v482
      %549 = vmatprep.subr.bf16.mxu0 0
      %550 = vmatpush1.bf16.msra.mxu0 %v483
      %551 = vmatprep.subr.bf16.mxu0 0
      %552 = vmatpush1.bf16.msra.mxu0 %v484
      %553 = vmatprep.subr.bf16.mxu0 0
      %554 = vmatpush1.bf16.msra.mxu0 %v485
      %555 = vmatprep.subr.bf16.mxu0 0
      %556 = vmatpush1.bf16.msra.mxu0 %v486
      %557 = vmatprep.subr.bf16.mxu0 0
      %558 = vmatpush1.bf16.msra.mxu0 %v487
      %559 = vmatprep.subr.bf16.mxu0 0
      %560 = vmatpush1.bf16.msra.mxu0 %v488
      %561 = vmatprep.subr.bf16.mxu0 0
      %562 = vmatpush1.bf16.msra.mxu0 %v489
      %563 = vmatprep.subr.bf16.mxu0 0
      %564 = vmatpush1.bf16.msra.mxu0 %v490
      %565 = vmatprep.subr.bf16.mxu0 0
      %566 = vmatpush1.bf16.msra.mxu0 %v491
      %567 = vmatprep.subr.bf16.mxu0 0
      %568 = vmatpush1.bf16.msra.mxu0 %v492
      %569 = vmatprep.subr.bf16.mxu0 0
      %570 = vmatpush1.bf16.msra.mxu0 %v493
      %571 = vmatprep.subr.bf16.mxu0 0
      %572 = vmatpush1.bf16.msra.mxu0 %v494
      %573 = vmatprep.subr.bf16.mxu0 0
      %574 = vmatpush1.bf16.msra.mxu0 %v495
      %575 = vmatprep.subr.bf16.mxu0 0
      %576 = vmatpush1.bf16.msra.mxu0 %v496
      %577 = vmatprep.mubr.bf16.mxu0 %v334
      %578 = vmatmul.mubr.bf16.gmra.mrb[0].mxu0 %v327
      %v579 = vpop.f32.mrb[0].mxu0
      %v580 = vadd.f32 0.0, %v579
      %v581 = vpop.f32.mrb[0].mxu0
      %v582 = vpop.f32.mrb[0].mxu0
      %v583 = vadd.f32 0.0, %v582
      %v584 = vpop.f32.mrb[0].mxu0
      %585 = vdwg.mxu0
      %586 = vmatprep.subr.bf16.mxu0 0
      %587 = vmatpush1.bf16.msra.mxu0 %v497
      %588 = vmatprep.subr.bf16.mxu0 0
      %589 = vmatpush1.bf16.msra.mxu0 %v498
      %590 = vmatprep.subr.bf16.mxu0 0
      %591 = vmatpush1.bf16.msra.mxu0 %v499
      %592 = vmatprep.subr.bf16.mxu0 0
      %593 = vmatpush1.bf16.msra.mxu0 %v500
      %594 = vmatprep.subr.bf16.mxu0 0
      %595 = vmatpush1.bf16.msra.mxu0 %v501
      %596 = vmatprep.subr.bf16.mxu0 0
      %597 = vmatpush1.bf16.msra.mxu0 %v502
      %598 = vmatprep.subr.bf16.mxu0 0
      %599 = vmatpush1.bf16.msra.mxu0 %v503
      %600 = vmatprep.subr.bf16.mxu0 0
      %601 = vmatpush1.bf16.msra.mxu0 %v504
      %602 = vmatprep.subr.bf16.mxu0 0
      %603 = vmatpush1.bf16.msra.mxu0 %v505
      %604 = vmatprep.subr.bf16.mxu0 0
      %605 = vmatpush1.bf16.msra.mxu0 %v506
      %606 = vmatprep.subr.bf16.mxu0 0
      %607 = vmatpush1.bf16.msra.mxu0 %v507
      %608 = vmatprep.subr.bf16.mxu0 0
      %609 = vmatpush1.bf16.msra.mxu0 %v508
      %610 = vmatprep.subr.bf16.mxu0 0
      %611 = vmatpush1.bf16.msra.mxu0 %v509
      %612 = vmatprep.subr.bf16.mxu0 0
      %613 = vmatpush1.bf16.msra.mxu0 %v510
      %614 = vmatprep.subr.bf16.mxu0 0
      %615 = vmatpush1.bf16.msra.mxu0 %v511
      %616 = vmatprep.subr.bf16.mxu0 0
      %617 = vmatpush1.bf16.msra.mxu0 %v512
      %618 = vmatprep.mubr.bf16.mxu0 %v348
      %619 = vmatmul.mubr.bf16.gmra.mrb[0].mxu0 %v341
      %v620 = vpop.f32.mrb[0].mxu0
      %v621 = vadd.f32 %v580, %v620
      %v622 = vpop.f32.mrb[0].mxu0
      %v623 = vpop.f32.mrb[0].mxu0
      %v624 = vadd.f32 %v583, %v623
      %v625 = vpop.f32.mrb[0].mxu0
      %626 = vdwg.mxu0
      %v695 = vunpack.c.l.b16 %v176
      %v696 = vunpack.c.l.b16 %v177
      %v697 = vunpack.c.l.b16 %v178
      %v698 = vunpack.c.l.b16 %v179
      %v699 = vunpack.c.l.b16 %v180
      %v700 = vunpack.c.l.b16 %v181
      %v701 = vunpack.c.l.b16 %v182
      %v702 = vunpack.c.l.b16 %v183
      %v703 = vunpack.c.l.b16 %v184
      %v704 = vunpack.c.l.b16 %v185
      %v705 = vunpack.c.l.b16 %v186
      %v706 = vunpack.c.l.b16 %v187
      %v707 = vunpack.c.l.b16 %v188
      %v708 = vunpack.c.l.b16 %v189
      %v709 = vunpack.c.l.b16 %v190
      %v710 = vunpack.c.l.b16 %v191
      %v711 = vunpack.c.l.b16 %v192
      %v712 = vunpack.c.l.b16 %v193
      %v713 = vunpack.c.l.b16 %v194
      %v714 = vunpack.c.l.b16 %v195
      %v715 = vunpack.c.l.b16 %v196
      %v716 = vunpack.c.l.b16 %v197
      %v717 = vunpack.c.l.b16 %v198
      %v718 = vunpack.c.l.b16 %v199
      %v719 = vunpack.c.l.b16 %v200
      %v720 = vunpack.c.l.b16 %v201
      %v721 = vunpack.c.l.b16 %v202
      %v722 = vunpack.c.l.b16 %v203
      %v723 = vunpack.c.l.b16 %v204
      %v724 = vunpack.c.l.b16 %v205
      %v725 = vunpack.c.l.b16 %v206
      %v726 = vunpack.c.l.b16 %v207
      %v727 = vunpack.c.l.b16 %v208
      %v728 = vunpack.c.l.b16 %v209
      %v729 = vunpack.c.l.b16 %v210
      %v730 = vunpack.c.l.b16 %v211
      %v731 = vunpack.c.l.b16 %v212
      %v732 = vunpack.c.l.b16 %v213
      %v733 = vunpack.c.l.b16 %v214
      %v734 = vunpack.c.l.b16 %v215
      %v735 = vunpack.c.l.b16 %v216
      %v736 = vunpack.c.l.b16 %v217
      %v737 = vunpack.c.l.b16 %v218
      %v738 = vunpack.c.l.b16 %v219
      %v739 = vunpack.c.l.b16 %v220
      %v740 = vunpack.c.l.b16 %v221
      %v741 = vunpack.c.l.b16 %v222
      %v742 = vunpack.c.l.b16 %v223
      %v743 = vunpack.c.l.b16 %v224
      %v744 = vunpack.c.l.b16 %v225
      %v745 = vunpack.c.l.b16 %v226
      %v746 = vunpack.c.l.b16 %v227
      %v747 = vunpack.c.l.b16 %v228
      %v748 = vunpack.c.l.b16 %v229
      %v749 = vunpack.c.l.b16 %v230
      %v750 = vunpack.c.l.b16 %v231
      %v751 = vunpack.c.l.b16 %v232
      %v752 = vunpack.c.l.b16 %v233
      %v753 = vunpack.c.l.b16 %v234
      %v754 = vunpack.c.l.b16 %v235
      %v755 = vunpack.c.l.b16 %v236
      %v756 = vunpack.c.l.b16 %v237
      %v757 = vunpack.c.l.b16 %v238
      %v758 = vunpack.c.l.b16 %v239
      %v759 = vpack.c.b16 %v696, %v695
      %v760 = vpack.c.b16 %v698, %v697
      %v761 = vpack.c.b16 %v700, %v699
      %v762 = vpack.c.b16 %v702, %v701
      %v763 = vpack.c.b16 %v704, %v703
      %v764 = vpack.c.b16 %v706, %v705
      %v765 = vpack.c.b16 %v708, %v707
      %v766 = vpack.c.b16 %v710, %v709
      %v767 = vpack.c.b16 %v712, %v711
      %v768 = vpack.c.b16 %v714, %v713
      %v769 = vpack.c.b16 %v716, %v715
      %v770 = vpack.c.b16 %v718, %v717
      %v771 = vpack.c.b16 %v720, %v719
      %v772 = vpack.c.b16 %v722, %v721
      %v773 = vpack.c.b16 %v724, %v723
      %v774 = vpack.c.b16 %v726, %v725
      %v775 = vpack.c.b16 %v728, %v727
      %v776 = vpack.c.b16 %v730, %v729
      %v777 = vpack.c.b16 %v732, %v731
      %v778 = vpack.c.b16 %v734, %v733
      %v779 = vpack.c.b16 %v736, %v735
      %v780 = vpack.c.b16 %v738, %v737
      %v781 = vpack.c.b16 %v740, %v739
      %v782 = vpack.c.b16 %v742, %v741
      %v783 = vpack.c.b16 %v744, %v743
      %v784 = vpack.c.b16 %v746, %v745
      %v785 = vpack.c.b16 %v748, %v747
      %v786 = vpack.c.b16 %v750, %v749
      %v787 = vpack.c.b16 %v752, %v751
      %v788 = vpack.c.b16 %v754, %v753
      %v789 = vpack.c.b16 %v756, %v755
      %v790 = vpack.c.b16 %v758, %v757
      %823 = vmatprep.subr.bf16.mxu0 0
      %824 = vmatpush1.bf16.msra.mxu0 %v759
      %825 = vmatprep.subr.bf16.mxu0 0
      %826 = vmatpush1.bf16.msra.mxu0 %v760
      %827 = vmatprep.subr.bf16.mxu0 0
      %828 = vmatpush1.bf16.msra.mxu0 %v761
      %829 = vmatprep.subr.bf16.mxu0 0
      %830 = vmatpush1.bf16.msra.mxu0 %v762
      %831 = vmatprep.subr.bf16.mxu0 0
      %832 = vmatpush1.bf16.msra.mxu0 %v763
      %833 = vmatprep.subr.bf16.mxu0 0
      %834 = vmatpush1.bf16.msra.mxu0 %v764
      %835 = vmatprep.subr.bf16.mxu0 0
      %836 = vmatpush1.bf16.msra.mxu0 %v765
      %837 = vmatprep.subr.bf16.mxu0 0
      %838 = vmatpush1.bf16.msra.mxu0 %v766
      %839 = vmatprep.subr.bf16.mxu0 0
      %840 = vmatpush1.bf16.msra.mxu0 %v767
      %841 = vmatprep.subr.bf16.mxu0 0
      %842 = vmatpush1.bf16.msra.mxu0 %v768
      %843 = vmatprep.subr.bf16.mxu0 0
      %844 = vmatpush1.bf16.msra.mxu0 %v769
      %845 = vmatprep.subr.bf16.mxu0 0
      %846 = vmatpush1.bf16.msra.mxu0 %v770
      %847 = vmatprep.subr.bf16.mxu0 0
      %848 = vmatpush1.bf16.msra.mxu0 %v771
      %849 = vmatprep.subr.bf16.mxu0 0
      %850 = vmatpush1.bf16.msra.mxu0 %v772
      %851 = vmatprep.subr.bf16.mxu0 0
      %852 = vmatpush1.bf16.msra.mxu0 %v773
      %853 = vmatprep.subr.bf16.mxu0 0
      %854 = vmatpush1.bf16.msra.mxu0 %v774
      %855 = vmatprep.mubr.bf16.mxu0 %v318
      %856 = vmatmul.mubr.bf16.gmra.mrb[0].mxu0 %v317
      %v857 = vpop.f32.mrb[0].mxu0
      %v858 = vadd.f32 %v621, %v857
      %v859 = vpop.f32.mrb[0].mxu0
      %v860 = vpop.f32.mrb[0].mxu0
      %v861 = vadd.f32 %v624, %v860
      %v862 = vpop.f32.mrb[0].mxu0
      %863 = vdwg.mxu0
      %864 = vmatprep.subr.bf16.mxu0 0
      %865 = vmatpush1.bf16.msra.mxu0 %v775
      %866 = vmatprep.subr.bf16.mxu0 0
      %867 = vmatpush1.bf16.msra.mxu0 %v776
      %868 = vmatprep.subr.bf16.mxu0 0
      %869 = vmatpush1.bf16.msra.mxu0 %v777
      %870 = vmatprep.subr.bf16.mxu0 0
      %871 = vmatpush1.bf16.msra.mxu0 %v778
      %872 = vmatprep.subr.bf16.mxu0 0
      %873 = vmatpush1.bf16.msra.mxu0 %v779
      %874 = vmatprep.subr.bf16.mxu0 0
      %875 = vmatpush1.bf16.msra.mxu0 %v780
      %876 = vmatprep.subr.bf16.mxu0 0
      %877 = vmatpush1.bf16.msra.mxu0 %v781
      %878 = vmatprep.subr.bf16.mxu0 0
      %879 = vmatpush1.bf16.msra.mxu0 %v782
      %880 = vmatprep.subr.bf16.mxu0 0
      %881 = vmatpush1.bf16.msra.mxu0 %v783
      %882 = vmatprep.subr.bf16.mxu0 0
      %883 = vmatpush1.bf16.msra.mxu0 %v784
      %884 = vmatprep.subr.bf16.mxu0 0
      %885 = vmatpush1.bf16.msra.mxu0 %v785
      %886 = vmatprep.subr.bf16.mxu0 0
      %887 = vmatpush1.bf16.msra.mxu0 %v786
      %888 = vmatprep.subr.bf16.mxu0 0
      %889 = vmatpush1.bf16.msra.mxu0 %v787
      %890 = vmatprep.subr.bf16.mxu0 0
      %891 = vmatpush1.bf16.msra.mxu0 %v788
      %892 = vmatprep.subr.bf16.mxu0 0
      %893 = vmatpush1.bf16.msra.mxu0 %v789
      %894 = vmatprep.subr.bf16.mxu0 0
      %895 = vmatpush1.bf16.msra.mxu0 %v790
      %896 = vmatprep.mubr.bf16.mxu0 %v320
      %897 = vmatmul.mubr.bf16.gmra.mrb[0].mxu0 %v319
      %v898 = vpop.f32.mrb[0].mxu0
      %v899 = vadd.f32 %v858, %v898
      %v900 = vpop.f32.mrb[0].mxu0
      %v901 = vpop.f32.mrb[0].mxu0
      %v902 = vadd.f32 %v861, %v901
      %v903 = vpop.f32.mrb[0].mxu0
      %904 = vdwg.mxu0
      %v905 = vld [vmem:[%s165] sm:$0xcc]
      %v906 = vld [vmem:[%s165 + $0x8] sm:$0xcc]
      %v907 = vld [vmem:[%s165 + $0x10] sm:$0xff]
      %v908 = vld [vmem:[%s165 + $0x18] sm:$0xff]
      %s909 = scalar_lea.vmem %s1, 512
      %v910 = vld [vmem:[%s909] sm:$0xf]
      %v911 = vld [vmem:[%s909 + $0x4] sm:$0xf]
      %v912 = vld [vmem:[%s909 + $0x8] sm:$0xf]
      %v913 = vld [vmem:[%s909 + $0xc] sm:$0xf]
      %v914 = vld [vmem:[%s909 + $0x10] sm:$0xf]
      %v915 = vld [vmem:[%s909 + $0x14] sm:$0xf]
      %v916 = vld [vmem:[%s909 + $0x18] sm:$0xf]
      %v917 = vld [vmem:[%s909 + $0x1c] sm:$0xf]
      %v918 = vld [vmem:[%s909 + $0x20] sm:$0xf]
      %v919 = vld [vmem:[%s909 + $0x24] sm:$0xf]
      %v920 = vld [vmem:[%s909 + $0x28] sm:$0xf]
      %v921 = vld [vmem:[%s909 + $0x2c] sm:$0xf]
      %v922 = vld [vmem:[%s909 + $0x30] sm:$0xf]
      %v923 = vld [vmem:[%s909 + $0x34] sm:$0xf]
      %v924 = vld [vmem:[%s909 + $0x38] sm:$0xf]
      %v925 = vld [vmem:[%s909 + $0x3c] sm:$0xf]
      %v926 = vld [vmem:[%s909 + $0x40] sm:$0xf]
      %v927 = vld [vmem:[%s909 + $0x44] sm:$0xf]
      %v928 = vld [vmem:[%s909 + $0x48] sm:$0xf]
      %v929 = vld [vmem:[%s909 + $0x4c] sm:$0xf]
      %v930 = vld [vmem:[%s909 + $0x50] sm:$0xf]
      %v931 = vld [vmem:[%s909 + $0x54] sm:$0xf]
      %v932 = vld [vmem:[%s909 + $0x58] sm:$0xf]
      %v933 = vld [vmem:[%s909 + $0x5c] sm:$0xf]
      %v934 = vld [vmem:[%s909 + $0x60] sm:$0xf]
      %v935 = vld [vmem:[%s909 + $0x64] sm:$0xf]
      %v936 = vld [vmem:[%s909 + $0x68] sm:$0xf]
      %v937 = vld [vmem:[%s909 + $0x6c] sm:$0xf]
      %v938 = vld [vmem:[%s909 + $0x70] sm:$0xf]
      %v939 = vld [vmem:[%s909 + $0x74] sm:$0xf]
      %v940 = vld [vmem:[%s909 + $0x78] sm:$0xf]
      %v941 = vld [vmem:[%s909 + $0x7c] sm:$0xf]
      %v942 = vld [vmem:[%s909 + $0x80] sm:$0xf]
      %v943 = vld [vmem:[%s909 + $0x84] sm:$0xf]
      %v944 = vld [vmem:[%s909 + $0x88] sm:$0xf]
      %v945 = vld [vmem:[%s909 + $0x8c] sm:$0xf]
      %v946 = vld [vmem:[%s909 + $0x90] sm:$0xf]
      %v947 = vld [vmem:[%s909 + $0x94] sm:$0xf]
      %v948 = vld [vmem:[%s909 + $0x98] sm:$0xf]
      %v949 = vld [vmem:[%s909 + $0x9c] sm:$0xf]
      %v950 = vld [vmem:[%s909 + $0xa0] sm:$0xf]
      %v951 = vld [vmem:[%s909 + $0xa4] sm:$0xf]
      %v952 = vld [vmem:[%s909 + $0xa8] sm:$0xf]
      %v953 = vld [vmem:[%s909 + $0xac] sm:$0xf]
      %v954 = vld [vmem:[%s909 + $0xb0] sm:$0xf]
      %v955 = vld [vmem:[%s909 + $0xb4] sm:$0xf]
      %v956 = vld [vmem:[%s909 + $0xb8] sm:$0xf]
      %v957 = vld [vmem:[%s909 + $0xbc] sm:$0xf]
      %v958 = vld [vmem:[%s909 + $0xc0] sm:$0xf]
      %v959 = vld [vmem:[%s909 + $0xc4] sm:$0xf]
      %v960 = vld [vmem:[%s909 + $0xc8] sm:$0xf]
      %v961 = vld [vmem:[%s909 + $0xcc] sm:$0xf]
      %v962 = vld [vmem:[%s909 + $0xd0] sm:$0xf]
      %v963 = vld [vmem:[%s909 + $0xd4] sm:$0xf]
      %v964 = vld [vmem:[%s909 + $0xd8] sm:$0xf]
      %v965 = vld [vmem:[%s909 + $0xdc] sm:$0xf]
      %v966 = vld [vmem:[%s909 + $0xe0] sm:$0xf]
      %v967 = vld [vmem:[%s909 + $0xe4] sm:$0xf]
      %v968 = vld [vmem:[%s909 + $0xe8] sm:$0xf]
      %v969 = vld [vmem:[%s909 + $0xec] sm:$0xf]
      %v970 = vld [vmem:[%s909 + $0xf0] sm:$0xf]
      %v971 = vld [vmem:[%s909 + $0xf4] sm:$0xf]
      %v972 = vld [vmem:[%s909 + $0xf8] sm:$0xf]
      %v973 = vld [vmem:[%s909 + $0xfc] sm:$0xf]
      %v978 = vunpack.c.l.b16 %v905
      %v979 = vunpack.c.h.b16 %v905
      %v980 = vunpack.c.l.b16 %v906
      %v981 = vunpack.c.h.b16 %v906
      %v982 = vunpack.c.l.b16 %v907
      %v983 = vunpack.c.h.b16 %v907
      %v984 = vunpack.c.l.b16 %v908
      %v985 = vunpack.c.h.b16 %v908
      %v986 = vpack.c.b16 %v982, %v978
      %v987 = vpack.c.b16 %v983, %v979
      %v988 = vpack.c.b16 %v984, %v980
      %v989 = vpack.c.b16 %v985, %v981
      %v990 = vrot.slane %v986, 2
      %v991 = vrot.slane %v987, 2
      %v992 = vrot.slane %v988, 2
      %v993 = vrot.slane %v989, 2
      %v1062 = vunpack.c.l.b16 %v910
      %v1063 = vunpack.c.l.b16 %v911
      %v1064 = vunpack.c.l.b16 %v912
      %v1065 = vunpack.c.l.b16 %v913
      %v1066 = vunpack.c.l.b16 %v914
      %v1067 = vunpack.c.l.b16 %v915
      %v1068 = vunpack.c.l.b16 %v916
      %v1069 = vunpack.c.l.b16 %v917
      %v1070 = vunpack.c.l.b16 %v918
      %v1071 = vunpack.c.l.b16 %v919
      %v1072 = vunpack.c.l.b16 %v920
      %v1073 = vunpack.c.l.b16 %v921
      %v1074 = vunpack.c.l.b16 %v922
      %v1075 = vunpack.c.l.b16 %v923
      %v1076 = vunpack.c.l.b16 %v924
      %v1077 = vunpack.c.l.b16 %v925
      %v1078 = vunpack.c.l.b16 %v926
      %v1079 = vunpack.c.l.b16 %v927
      %v1080 = vunpack.c.l.b16 %v928
      %v1081 = vunpack.c.l.b16 %v929
      %v1082 = vunpack.c.l.b16 %v930
      %v1083 = vunpack.c.l.b16 %v931
      %v1084 = vunpack.c.l.b16 %v932
      %v1085 = vunpack.c.l.b16 %v933
      %v1086 = vunpack.c.l.b16 %v934
      %v1087 = vunpack.c.l.b16 %v935
      %v1088 = vunpack.c.l.b16 %v936
      %v1089 = vunpack.c.l.b16 %v937
      %v1090 = vunpack.c.l.b16 %v938
      %v1091 = vunpack.c.l.b16 %v939
      %v1092 = vunpack.c.l.b16 %v940
      %v1093 = vunpack.c.l.b16 %v941
      %v1094 = vunpack.c.l.b16 %v942
      %v1095 = vunpack.c.l.b16 %v943
      %v1096 = vunpack.c.l.b16 %v944
      %v1097 = vunpack.c.l.b16 %v945
      %v1098 = vunpack.c.l.b16 %v946
      %v1099 = vunpack.c.l.b16 %v947
      %v1100 = vunpack.c.l.b16 %v948
      %v1101 = vunpack.c.l.b16 %v949
      %v1102 = vunpack.c.l.b16 %v950
      %v1103 = vunpack.c.l.b16 %v951
      %v1104 = vunpack.c.l.b16 %v952
      %v1105 = vunpack.c.l.b16 %v953
      %v1106 = vunpack.c.l.b16 %v954
      %v1107 = vunpack.c.l.b16 %v955
      %v1108 = vunpack.c.l.b16 %v956
      %v1109 = vunpack.c.l.b16 %v957
      %v1110 = vunpack.c.l.b16 %v958
      %v1111 = vunpack.c.l.b16 %v959
      %v1112 = vunpack.c.l.b16 %v960
      %v1113 = vunpack.c.l.b16 %v961
      %v1114 = vunpack.c.l.b16 %v962
      %v1115 = vunpack.c.l.b16 %v963
      %v1116 = vunpack.c.l.b16 %v964
      %v1117 = vunpack.c.l.b16 %v965
      %v1118 = vunpack.c.l.b16 %v966
      %v1119 = vunpack.c.l.b16 %v967
      %v1120 = vunpack.c.l.b16 %v968
      %v1121 = vunpack.c.l.b16 %v969
      %v1122 = vunpack.c.l.b16 %v970
      %v1123 = vunpack.c.l.b16 %v971
      %v1124 = vunpack.c.l.b16 %v972
      %v1125 = vunpack.c.l.b16 %v973
      %v1126 = vpack.c.b16 %v1063, %v1062
      %v1127 = vpack.c.b16 %v1065, %v1064
      %v1128 = vpack.c.b16 %v1067, %v1066
      %v1129 = vpack.c.b16 %v1069, %v1068
      %v1130 = vpack.c.b16 %v1071, %v1070
      %v1131 = vpack.c.b16 %v1073, %v1072
      %v1132 = vpack.c.b16 %v1075, %v1074
      %v1133 = vpack.c.b16 %v1077, %v1076
      %v1134 = vpack.c.b16 %v1079, %v1078
      %v1135 = vpack.c.b16 %v1081, %v1080
      %v1136 = vpack.c.b16 %v1083, %v1082
      %v1137 = vpack.c.b16 %v1085, %v1084
      %v1138 = vpack.c.b16 %v1087, %v1086
      %v1139 = vpack.c.b16 %v1089, %v1088
      %v1140 = vpack.c.b16 %v1091, %v1090
      %v1141 = vpack.c.b16 %v1093, %v1092
      %v1142 = vpack.c.b16 %v1095, %v1094
      %v1143 = vpack.c.b16 %v1097, %v1096
      %v1144 = vpack.c.b16 %v1099, %v1098
      %v1145 = vpack.c.b16 %v1101, %v1100
      %v1146 = vpack.c.b16 %v1103, %v1102
      %v1147 = vpack.c.b16 %v1105, %v1104
      %v1148 = vpack.c.b16 %v1107, %v1106
      %v1149 = vpack.c.b16 %v1109, %v1108
      %v1150 = vpack.c.b16 %v1111, %v1110
      %v1151 = vpack.c.b16 %v1113, %v1112
      %v1152 = vpack.c.b16 %v1115, %v1114
      %v1153 = vpack.c.b16 %v1117, %v1116
      %v1154 = vpack.c.b16 %v1119, %v1118
      %v1155 = vpack.c.b16 %v1121, %v1120
      %v1156 = vpack.c.b16 %v1123, %v1122
      %v1157 = vpack.c.b16 %v1125, %v1124
      %1190 = vmatprep.subr.bf16.mxu0 0
      %1191 = vmatpush1.bf16.msra.mxu0 %v1126
      %1192 = vmatprep.subr.bf16.mxu0 0
      %1193 = vmatpush1.bf16.msra.mxu0 %v1127
      %1194 = vmatprep.subr.bf16.mxu0 0
      %1195 = vmatpush1.bf16.msra.mxu0 %v1128
      %1196 = vmatprep.subr.bf16.mxu0 0
      %1197 = vmatpush1.bf16.msra.mxu0 %v1129
      %1198 = vmatprep.subr.bf16.mxu0 0
      %1199 = vmatpush1.bf16.msra.mxu0 %v1130
      %1200 = vmatprep.subr.bf16.mxu0 0
      %1201 = vmatpush1.bf16.msra.mxu0 %v1131
      %1202 = vmatprep.subr.bf16.mxu0 0
      %1203 = vmatpush1.bf16.msra.mxu0 %v1132
      %1204 = vmatprep.subr.bf16.mxu0 0
      %1205 = vmatpush1.bf16.msra.mxu0 %v1133
      %1206 = vmatprep.subr.bf16.mxu0 0
      %1207 = vmatpush1.bf16.msra.mxu0 %v1134
      %1208 = vmatprep.subr.bf16.mxu0 0
      %1209 = vmatpush1.bf16.msra.mxu0 %v1135
      %1210 = vmatprep.subr.bf16.mxu0 0
      %1211 = vmatpush1.bf16.msra.mxu0 %v1136
      %1212 = vmatprep.subr.bf16.mxu0 0
      %1213 = vmatpush1.bf16.msra.mxu0 %v1137
      %1214 = vmatprep.subr.bf16.mxu0 0
      %1215 = vmatpush1.bf16.msra.mxu0 %v1138
      %1216 = vmatprep.subr.bf16.mxu0 0
      %1217 = vmatpush1.bf16.msra.mxu0 %v1139
      %1218 = vmatprep.subr.bf16.mxu0 0
      %1219 = vmatpush1.bf16.msra.mxu0 %v1140
      %1220 = vmatprep.subr.bf16.mxu0 0
      %1221 = vmatpush1.bf16.msra.mxu0 %v1141
      %1222 = vmatprep.mubr.bf16.mxu0 %v991
      %1223 = vmatmul.mubr.bf16.gmra.mrb[0].mxu0 %v990
      %v1224 = vpop.f32.mrb[0].mxu0
      %v1225 = vadd.f32 0.0, %v1224
      %v1226 = vpop.f32.mrb[0].mxu0
      %v1227 = vpop.f32.mrb[0].mxu0
      %v1228 = vadd.f32 0.0, %v1227
      %v1229 = vpop.f32.mrb[0].mxu0
      %1230 = vdwg.mxu0
      %1231 = vmatprep.subr.bf16.mxu0 0
      %1232 = vmatpush1.bf16.msra.mxu0 %v1142
      %1233 = vmatprep.subr.bf16.mxu0 0
      %1234 = vmatpush1.bf16.msra.mxu0 %v1143
      %1235 = vmatprep.subr.bf16.mxu0 0
      %1236 = vmatpush1.bf16.msra.mxu0 %v1144
      %1237 = vmatprep.subr.bf16.mxu0 0
      %1238 = vmatpush1.bf16.msra.mxu0 %v1145
      %1239 = vmatprep.subr.bf16.mxu0 0
      %1240 = vmatpush1.bf16.msra.mxu0 %v1146
      %1241 = vmatprep.subr.bf16.mxu0 0
      %1242 = vmatpush1.bf16.msra.mxu0 %v1147
      %1243 = vmatprep.subr.bf16.mxu0 0
      %1244 = vmatpush1.bf16.msra.mxu0 %v1148
      %1245 = vmatprep.subr.bf16.mxu0 0
      %1246 = vmatpush1.bf16.msra.mxu0 %v1149
      %1247 = vmatprep.subr.bf16.mxu0 0
      %1248 = vmatpush1.bf16.msra.mxu0 %v1150
      %1249 = vmatprep.subr.bf16.mxu0 0
      %1250 = vmatpush1.bf16.msra.mxu0 %v1151
      %1251 = vmatprep.subr.bf16.mxu0 0
      %1252 = vmatpush1.bf16.msra.mxu0 %v1152
      %1253 = vmatprep.subr.bf16.mxu0 0
      %1254 = vmatpush1.bf16.msra.mxu0 %v1153
      %1255 = vmatprep.subr.bf16.mxu0 0
      %1256 = vmatpush1.bf16.msra.mxu0 %v1154
      %1257 = vmatprep.subr.bf16.mxu0 0
      %1258 = vmatpush1.bf16.msra.mxu0 %v1155
      %1259 = vmatprep.subr.bf16.mxu0 0
      %1260 = vmatpush1.bf16.msra.mxu0 %v1156
      %1261 = vmatprep.subr.bf16.mxu0 0
      %1262 = vmatpush1.bf16.msra.mxu0 %v1157
      %1263 = vmatprep.mubr.bf16.mxu0 %v993
      %1264 = vmatmul.mubr.bf16.gmra.mrb[0].mxu0 %v992
      %v1265 = vpop.f32.mrb[0].mxu0
      %v1266 = vadd.f32 %v1225, %v1265
      %v1267 = vpop.f32.mrb[0].mxu0
      %v1268 = vpop.f32.mrb[0].mxu0
      %v1269 = vadd.f32 %v1228, %v1268
      %v1270 = vpop.f32.mrb[0].mxu0
      %1271 = vdwg.mxu0
      %v1272 = vadd.f32 %v899, %v1266
      %v1273 = vadd.f32 %v902, %v1269
      %s1274 = scalar_lea.vmem %s1, 768
      %v1275 = vld [vmem:[%s1274] sm:$0xf]
      %v1276 = vld [vmem:[%s1274 + $0x4] sm:$0xf]
      %v1277 = vld [vmem:[%s1274 + $0x8] sm:$0xf]
      %v1278 = vld [vmem:[%s1274 + $0xc] sm:$0xf]
      %v1279 = vld [vmem:[%s1274 + $0x10] sm:$0xf]
      %v1280 = vld [vmem:[%s1274 + $0x14] sm:$0xf]
      %v1281 = vld [vmem:[%s1274 + $0x18] sm:$0xf]
      %v1282 = vld [vmem:[%s1274 + $0x1c] sm:$0xf]
      %v1283 = vld [vmem:[%s1274 + $0x20] sm:$0xf]
      %v1284 = vld [vmem:[%s1274 + $0x24] sm:$0xf]
      %v1285 = vld [vmem:[%s1274 + $0x28] sm:$0xf]
      %v1286 = vld [vmem:[%s1274 + $0x2c] sm:$0xf]
      %v1287 = vld [vmem:[%s1274 + $0x30] sm:$0xf]
      %v1288 = vld [vmem:[%s1274 + $0x34] sm:$0xf]
      %v1289 = vld [vmem:[%s1274 + $0x38] sm:$0xf]
      %v1290 = vld [vmem:[%s1274 + $0x3c] sm:$0xf]
      %v1291 = vld [vmem:[%s1274 + $0x40] sm:$0xf]
      %v1292 = vld [vmem:[%s1274 + $0x44] sm:$0xf]
      %v1293 = vld [vmem:[%s1274 + $0x48] sm:$0xf]
      %v1294 = vld [vmem:[%s1274 + $0x4c] sm:$0xf]
      %v1295 = vld [vmem:[%s1274 + $0x50] sm:$0xf]
      %v1296 = vld [vmem:[%s1274 + $0x54] sm:$0xf]
      %v1297 = vld [vmem:[%s1274 + $0x58] sm:$0xf]
      %v1298 = vld [vmem:[%s1274 + $0x5c] sm:$0xf]
      %v1299 = vld [vmem:[%s1274 + $0x60] sm:$0xf]
      %v1300 = vld [vmem:[%s1274 + $0x64] sm:$0xf]
      %v1301 = vld [vmem:[%s1274 + $0x68] sm:$0xf]
      %v1302 = vld [vmem:[%s1274 + $0x6c] sm:$0xf]
      %v1303 = vld [vmem:[%s1274 + $0x70] sm:$0xf]
      %v1304 = vld [vmem:[%s1274 + $0x74] sm:$0xf]
      %v1305 = vld [vmem:[%s1274 + $0x78] sm:$0xf]
      %v1306 = vld [vmem:[%s1274 + $0x7c] sm:$0xf]
      %v1307 = vld [vmem:[%s1274 + $0x80] sm:$0xf]
      %v1308 = vld [vmem:[%s1274 + $0x84] sm:$0xf]
      %v1309 = vld [vmem:[%s1274 + $0x88] sm:$0xf]
      %v1310 = vld [vmem:[%s1274 + $0x8c] sm:$0xf]
      %v1311 = vld [vmem:[%s1274 + $0x90] sm:$0xf]
      %v1312 = vld [vmem:[%s1274 + $0x94] sm:$0xf]
      %v1313 = vld [vmem:[%s1274 + $0x98] sm:$0xf]
      %v1314 = vld [vmem:[%s1274 + $0x9c] sm:$0xf]
      %v1315 = vld [vmem:[%s1274 + $0xa0] sm:$0xf]
      %v1316 = vld [vmem:[%s1274 + $0xa4] sm:$0xf]
      %v1317 = vld [vmem:[%s1274 + $0xa8] sm:$0xf]
      %v1318 = vld [vmem:[%s1274 + $0xac] sm:$0xf]
      %v1319 = vld [vmem:[%s1274 + $0xb0] sm:$0xf]
      %v1320 = vld [vmem:[%s1274 + $0xb4] sm:$0xf]
      %v1321 = vld [vmem:[%s1274 + $0xb8] sm:$0xf]
      %v1322 = vld [vmem:[%s1274 + $0xbc] sm:$0xf]
      %v1323 = vld [vmem:[%s1274 + $0xc0] sm:$0xf]
      %v1324 = vld [vmem:[%s1274 + $0xc4] sm:$0xf]
      %v1325 = vld [vmem:[%s1274 + $0xc8] sm:$0xf]
      %v1326 = vld [vmem:[%s1274 + $0xcc] sm:$0xf]
      %v1327 = vld [vmem:[%s1274 + $0xd0] sm:$0xf]
      %v1328 = vld [vmem:[%s1274 + $0xd4] sm:$0xf]
      %v1329 = vld [vmem:[%s1274 + $0xd8] sm:$0xf]
      %v1330 = vld [vmem:[%s1274 + $0xdc] sm:$0xf]
      %v1331 = vld [vmem:[%s1274 + $0xe0] sm:$0xf]
      %v1332 = vld [vmem:[%s1274 + $0xe4] sm:$0xf]
      %v1333 = vld [vmem:[%s1274 + $0xe8] sm:$0xf]
      %v1334 = vld [vmem:[%s1274 + $0xec] sm:$0xf]
      %v1335 = vld [vmem:[%s1274 + $0xf0] sm:$0xf]
      %v1336 = vld [vmem:[%s1274 + $0xf4] sm:$0xf]
      %v1337 = vld [vmem:[%s1274 + $0xf8] sm:$0xf]
      %v1338 = vld [vmem:[%s1274 + $0xfc] sm:$0xf]
      %v1340 = vshrl.u32 %v986, 16
      %v1342 = vrot.slane %v1340, 2
      %v1343 = vshll.u32 %v986, 16
      %v1345 = vrot.slane %v1343, 3
      %v1346 = vor.u32 %v1342, %v1345
      %v1348 = vshrl.u32 %v987, 16
      %v1350 = vrot.slane %v1348, 2
      %v1351 = vshll.u32 %v987, 16
      %v1353 = vrot.slane %v1351, 3
      %v1354 = vor.u32 %v1350, %v1353
      %v1356 = vshrl.u32 %v988, 16
      %v1358 = vrot.slane %v1356, 2
      %v1359 = vshll.u32 %v988, 16
      %v1361 = vrot.slane %v1359, 3
      %v1362 = vor.u32 %v1358, %v1361
      %v1364 = vshrl.u32 %v989, 16
      %v1366 = vrot.slane %v1364, 2
      %v1367 = vshll.u32 %v989, 16
      %v1369 = vrot.slane %v1367, 3
      %v1370 = vor.u32 %v1366, %v1369
      %v1439 = vunpack.c.l.b16 %v1275
      %v1440 = vunpack.c.l.b16 %v1276
      %v1441 = vunpack.c.l.b16 %v1277
      %v1442 = vunpack.c.l.b16 %v1278
      %v1443 = vunpack.c.l.b16 %v1279
      %v1444 = vunpack.c.l.b16 %v1280
      %v1445 = vunpack.c.l.b16 %v1281
      %v1446 = vunpack.c.l.b16 %v1282
      %v1447 = vunpack.c.l.b16 %v1283
      %v1448 = vunpack.c.l.b16 %v1284
      %v1449 = vunpack.c.l.b16 %v1285
      %v1450 = vunpack.c.l.b16 %v1286
      %v1451 = vunpack.c.l.b16 %v1287
      %v1452 = vunpack.c.l.b16 %v1288
      %v1453 = vunpack.c.l.b16 %v1289
      %v1454 = vunpack.c.l.b16 %v1290
      %v1455 = vunpack.c.l.b16 %v1291
      %v1456 = vunpack.c.l.b16 %v1292
      %v1457 = vunpack.c.l.b16 %v1293
      %v1458 = vunpack.c.l.b16 %v1294
      %v1459 = vunpack.c.l.b16 %v1295
      %v1460 = vunpack.c.l.b16 %v1296
      %v1461 = vunpack.c.l.b16 %v1297
      %v1462 = vunpack.c.l.b16 %v1298
      %v1463 = vunpack.c.l.b16 %v1299
      %v1464 = vunpack.c.l.b16 %v1300
      %v1465 = vunpack.c.l.b16 %v1301
      %v1466 = vunpack.c.l.b16 %v1302
      %v1467 = vunpack.c.l.b16 %v1303
      %v1468 = vunpack.c.l.b16 %v1304
      %v1469 = vunpack.c.l.b16 %v1305
      %v1470 = vunpack.c.l.b16 %v1306
      %v1471 = vunpack.c.l.b16 %v1307
      %v1472 = vunpack.c.l.b16 %v1308
      %v1473 = vunpack.c.l.b16 %v1309
      %v1474 = vunpack.c.l.b16 %v1310
      %v1475 = vunpack.c.l.b16 %v1311
      %v1476 = vunpack.c.l.b16 %v1312
      %v1477 = vunpack.c.l.b16 %v1313
      %v1478 = vunpack.c.l.b16 %v1314
      %v1479 = vunpack.c.l.b16 %v1315
      %v1480 = vunpack.c.l.b16 %v1316
      %v1481 = vunpack.c.l.b16 %v1317
      %v1482 = vunpack.c.l.b16 %v1318
      %v1483 = vunpack.c.l.b16 %v1319
      %v1484 = vunpack.c.l.b16 %v1320
      %v1485 = vunpack.c.l.b16 %v1321
      %v1486 = vunpack.c.l.b16 %v1322
      %v1487 = vunpack.c.l.b16 %v1323
      %v1488 = vunpack.c.l.b16 %v1324
      %v1489 = vunpack.c.l.b16 %v1325
      %v1490 = vunpack.c.l.b16 %v1326
      %v1491 = vunpack.c.l.b16 %v1327
      %v1492 = vunpack.c.l.b16 %v1328
      %v1493 = vunpack.c.l.b16 %v1329
      %v1494 = vunpack.c.l.b16 %v1330
      %v1495 = vunpack.c.l.b16 %v1331
      %v1496 = vunpack.c.l.b16 %v1332
      %v1497 = vunpack.c.l.b16 %v1333
      %v1498 = vunpack.c.l.b16 %v1334
      %v1499 = vunpack.c.l.b16 %v1335
      %v1500 = vunpack.c.l.b16 %v1336
      %v1501 = vunpack.c.l.b16 %v1337
      %v1502 = vunpack.c.l.b16 %v1338
      %v1503 = vpack.c.b16 %v1440, %v1439
      %v1504 = vpack.c.b16 %v1442, %v1441
      %v1505 = vpack.c.b16 %v1444, %v1443
      %v1506 = vpack.c.b16 %v1446, %v1445
      %v1507 = vpack.c.b16 %v1448, %v1447
      %v1508 = vpack.c.b16 %v1450, %v1449
      %v1509 = vpack.c.b16 %v1452, %v1451
      %v1510 = vpack.c.b16 %v1454, %v1453
      %v1511 = vpack.c.b16 %v1456, %v1455
      %v1512 = vpack.c.b16 %v1458, %v1457
      %v1513 = vpack.c.b16 %v1460, %v1459
      %v1514 = vpack.c.b16 %v1462, %v1461
      %v1515 = vpack.c.b16 %v1464, %v1463
      %v1516 = vpack.c.b16 %v1466, %v1465
      %v1517 = vpack.c.b16 %v1468, %v1467
      %v1518 = vpack.c.b16 %v1470, %v1469
      %v1519 = vpack.c.b16 %v1472, %v1471
      %v1520 = vpack.c.b16 %v1474, %v1473
      %v1521 = vpack.c.b16 %v1476, %v1475
      %v1522 = vpack.c.b16 %v1478, %v1477
      %v1523 = vpack.c.b16 %v1480, %v1479
      %v1524 = vpack.c.b16 %v1482, %v1481
      %v1525 = vpack.c.b16 %v1484, %v1483
      %v1526 = vpack.c.b16 %v1486, %v1485
      %v1527 = vpack.c.b16 %v1488, %v1487
      %v1528 = vpack.c.b16 %v1490, %v1489
      %v1529 = vpack.c.b16 %v1492, %v1491
      %v1530 = vpack.c.b16 %v1494, %v1493
      %v1531 = vpack.c.b16 %v1496, %v1495
      %v1532 = vpack.c.b16 %v1498, %v1497
      %v1533 = vpack.c.b16 %v1500, %v1499
      %v1534 = vpack.c.b16 %v1502, %v1501
      %1567 = vmatprep.subr.bf16.mxu0 0
      %1568 = vmatpush1.bf16.msra.mxu0 %v1503
      %1569 = vmatprep.subr.bf16.mxu0 0
      %1570 = vmatpush1.bf16.msra.mxu0 %v1504
      %1571 = vmatprep.subr.bf16.mxu0 0
      %1572 = vmatpush1.bf16.msra.mxu0 %v1505
      %1573 = vmatprep.subr.bf16.mxu0 0
      %1574 = vmatpush1.bf16.msra.mxu0 %v1506
      %1575 = vmatprep.subr.bf16.mxu0 0
      %1576 = vmatpush1.bf16.msra.mxu0 %v1507
      %1577 = vmatprep.subr.bf16.mxu0 0
      %1578 = vmatpush1.bf16.msra.mxu0 %v1508
      %1579 = vmatprep.subr.bf16.mxu0 0
      %1580 = vmatpush1.bf16.msra.mxu0 %v1509
      %1581 = vmatprep.subr.bf16.mxu0 0
      %1582 = vmatpush1.bf16.msra.mxu0 %v1510
      %1583 = vmatprep.subr.bf16.mxu0 0
      %1584 = vmatpush1.bf16.msra.mxu0 %v1511
      %1585 = vmatprep.subr.bf16.mxu0 0
      %1586 = vmatpush1.bf16.msra.mxu0 %v1512
      %1587 = vmatprep.subr.bf16.mxu0 0
      %1588 = vmatpush1.bf16.msra.mxu0 %v1513
      %1589 = vmatprep.subr.bf16.mxu0 0
      %1590 = vmatpush1.bf16.msra.mxu0 %v1514
      %1591 = vmatprep.subr.bf16.mxu0 0
      %1592 = vmatpush1.bf16.msra.mxu0 %v1515
      %1593 = vmatprep.subr.bf16.mxu0 0
      %1594 = vmatpush1.bf16.msra.mxu0 %v1516
      %1595 = vmatprep.subr.bf16.mxu0 0
      %1596 = vmatpush1.bf16.msra.mxu0 %v1517
      %1597 = vmatprep.subr.bf16.mxu0 0
      %1598 = vmatpush1.bf16.msra.mxu0 %v1518
      %1599 = vmatprep.mubr.bf16.mxu0 %v1354
      %1600 = vmatmul.mubr.bf16.gmra.mrb[0].mxu0 %v1346
      %v1601 = vpop.f32.mrb[0].mxu0
      %v1602 = vadd.f32 0.0, %v1601
      %v1603 = vpop.f32.mrb[0].mxu0
      %v1604 = vpop.f32.mrb[0].mxu0
      %v1605 = vadd.f32 0.0, %v1604
      %v1606 = vpop.f32.mrb[0].mxu0
      %1607 = vdwg.mxu0
      %1608 = vmatprep.subr.bf16.mxu0 0
      %1609 = vmatpush1.bf16.msra.mxu0 %v1519
      %1610 = vmatprep.subr.bf16.mxu0 0
      %1611 = vmatpush1.bf16.msra.mxu0 %v1520
      %1612 = vmatprep.subr.bf16.mxu0 0
      %1613 = vmatpush1.bf16.msra.mxu0 %v1521
      %1614 = vmatprep.subr.bf16.mxu0 0
      %1615 = vmatpush1.bf16.msra.mxu0 %v1522
      %1616 = vmatprep.subr.bf16.mxu0 0
      %1617 = vmatpush1.bf16.msra.mxu0 %v1523
      %1618 = vmatprep.subr.bf16.mxu0 0
      %1619 = vmatpush1.bf16.msra.mxu0 %v1524
      %1620 = vmatprep.subr.bf16.mxu0 0
      %1621 = vmatpush1.bf16.msra.mxu0 %v1525
      %1622 = vmatprep.subr.bf16.mxu0 0
      %1623 = vmatpush1.bf16.msra.mxu0 %v1526
      %1624 = vmatprep.subr.bf16.mxu0 0
      %1625 = vmatpush1.bf16.msra.mxu0 %v1527
      %1626 = vmatprep.subr.bf16.mxu0 0
      %1627 = vmatpush1.bf16.msra.mxu0 %v1528
      %1628 = vmatprep.subr.bf16.mxu0 0
      %1629 = vmatpush1.bf16.msra.mxu0 %v1529
      %1630 = vmatprep.subr.bf16.mxu0 0
      %1631 = vmatpush1.bf16.msra.mxu0 %v1530
      %1632 = vmatprep.subr.bf16.mxu0 0
      %1633 = vmatpush1.bf16.msra.mxu0 %v1531
      %1634 = vmatprep.subr.bf16.mxu0 0
      %1635 = vmatpush1.bf16.msra.mxu0 %v1532
      %1636 = vmatprep.subr.bf16.mxu0 0
      %1637 = vmatpush1.bf16.msra.mxu0 %v1533
      %1638 = vmatprep.subr.bf16.mxu0 0
      %1639 = vmatpush1.bf16.msra.mxu0 %v1534
      %1640 = vmatprep.mubr.bf16.mxu0 %v1370
      %1641 = vmatmul.mubr.bf16.gmra.mrb[0].mxu0 %v1362
      %v1642 = vpop.f32.mrb[0].mxu0
      %v1643 = vadd.f32 %v1602, %v1642
      %v1644 = vpop.f32.mrb[0].mxu0
      %v1645 = vpop.f32.mrb[0].mxu0
      %v1646 = vadd.f32 %v1605, %v1645
      %v1647 = vpop.f32.mrb[0].mxu0
      %1648 = vdwg.mxu0
      %v1649 = vadd.f32 %v1272, %v1643
      %v1650 = vadd.f32 %v1273, %v1646
      %v1651 = vld [vmem:[%s2] sm:$0x1]
      %v1653 = vlaneseq
      %v1654 = vshrl.u32 %v1653, 7
      %v1655 = vsub.s32 0, %v1654
      %v1656 = vrot.slane %v1651, %v1655
      %v1658 = vadd.f32 %v1649, %v1656
      %v1659 = vadd.f32 %v1650, %v1656
      %v1660 = vmax.f32 %v1658, 0.0
      %v1661 = vmax.f32 %v1659, 0.0
      %v1662 = vpack.c.bf16 %v1661, %v1660
      %v1664 = vunpack.c.l.b16 %v1662
      %v1665 = vunpack.c.h.b16 %v1662
      %v1666 = vpack.c.b16 %v1664, %v1664
      %v1667 = vpack.c.b16 %v1665, %v1665
      %1670 = vst [vmem:[%s170] sm:$0xf] %v1666
      %vm1671 = vcmask 1041408
      %vm1672 = vsmask.f32 1280
      %vm1673 = vmand %vm1671, %vm1672
      %v1674 = vld [vmem:[%s170 + $0x4] sm:$0x3]
      %v1675 = vsel %vm1673, %v1667, %v1674
      %1676 = vst [vmem:[%s170 + $0x4] sm:$0x3] %v1675
      %p1677 = scmp.lt.s32.totalorder %s14, 1
      %s1678 = scalar_select %p1677, %s14, 1
      %s1679 = smul.addr %s1678, 2
      %s1680 = smul.addr %s1679, 4
      %s1681 = scalar_lea.vmem %s3, %s1680
      // Predicated region
      $region33: #{dqn_image_block.4} parent=31 // pred_check
        %p1682 = pneg %p100
      $region34: #{dqn_image_block.4} parent=31 // pred_check_branch
        %1684 = sbr.rel (%p1682) target = $region36
      $region35: #{dqn_image_block.4} parent=31 // pred_region
        _
      $region36: #{dqn_image_block.4} parent=31 // pred_fallthru
        _
    $region32: #{dqn_image_block.4} parent=5 // pred_fallthru
      _
    %p1685 = scmp.le.s32.totalorder 2, %s9
    // Predicated region
    $region37: #{dqn_image_block.4} parent=5 // pred_check
      %p1686 = pneg %p1685
    $region38: #{dqn_image_block.4} parent=5 // pred_check_branch
      %1688 = sbr.rel (%p1686) target = $region40
    $region39: #{dqn_image_block.4} parent=5 // pred_region
      %s1689 = ssub.s32 %s9, 2
      // Predicated region
      $region41: #{dqn_image_block.4} parent=39 // pred_check
        %p1690 = pneg %p106
      $region42: #{dqn_image_block.4} parent=39 // pred_check_branch
        %1692 = sbr.rel (%p1690) target = $region44
      $region43: #{dqn_image_block.4} parent=39 // pred_region
        %p1693 = scmp.lt.s32.totalorder %s15, 1
        %s1694 = scalar_select %p1693, %s15, 1
        %s1695 = smul.addr %s1694, 2
        %s1696 = smul.addr %s1695, 4
        %s1697 = scalar_lea.vmem %s3, %s1696
      $region44: #{dqn_image_block.4} parent=39 // pred_fallthru
        _
    $region40: #{dqn_image_block.4} parent=5 // pred_fallthru
      _
  $region6: #{dqn_image_block.4} parent=0 // loop_footer
    %s13 = sadd.s32 1, %s9
  $region7: #{dqn_image_block.4} parent=0 // loop_footer_branch
    %8 = sbr.rel target = $region3
  $region8: #{dqn_image_block.4} parent=0 // loop_exit
    _

// kernel: dqn_image_block.5
$region0: #{dqn_image_block.5}
  #allocation0 [shape = 'u32[]', space=smem, size = 0x4, offset = 0x4, fixed_abs, tag = 'smem constant byte address 0x4 - core index']
  #allocation1 [shape = 'u32[144,128]{1,0:T(1,128)}', space=vmem, size = 0x12000, scoped, tag = 'internal scratch']
  %s0 = inlined_call_operand.vmem [shape: bf16[2,25,128], index: 0, kind: input, shape index: {}]
  %s1 = inlined_call_operand.vmem [shape: bf16[9,128,128], index: 1, kind: input, shape index: {}]
  %s2 = inlined_call_operand.vmem [shape: f32[1,128], index: 2, kind: input, shape index: {}]
  %s3 = inlined_call_operand.vmem [shape: f32[2,13,128], index: 3, kind: output, shape index: {}]
  %s4 = sld [smem:[#allocation0]]
  $region45: #{dqn_image_block.5} parent=0
    _
  %s6 = ssub.s32 1, %s4
  %s7 = scalar_select 0, %s6, %s4
  loop: start=0, step=1, limit=4
  $region2: #{dqn_image_block.5} parent=0 // loop_pre_header
    _
  $region3: #{dqn_image_block.5} parent=0 // loop_header
    %s9 = sphi 0, %s13
    %p10 = scmp.ge.s32.totalorder %s9, 4
    %s19 = sphi 0, %s21
    %s22 = sphi 0, %s19
    %s23 = sphi 0, %s22
    %s39 = sphi 0, %s23
    %s43 = sphi 0, %s43
    %s45 = sphi 0, %s43
    %s46 = sphi 0, %s45
    %s60 = sphi 0, %s46
    %s64 = sphi 0, %s64
    %s66 = sphi 0, %s64
    %s67 = sphi 0, %s66
    %s81 = sphi 0, %s67
    %s87 = sphi 0, %s89
    %s90 = sphi 0, %s87
    %s91 = sphi 0, %s90
    %s107 = sphi 0, %s91
  $region4: #{dqn_image_block.5} parent=0 // loop_header_branch
    %12 = sbr.rel (%p10) target = $region8
  $region5: #{dqn_image_block.5} parent=0 // loop_body
    %s14 = ssub.s32 %s9, 1
    %s15 = ssub.s32 %s9, 2
    %s16 = sadd.s32 %s9, 1
    %s17 = ssub.s32 %s9, %s16
    %p18 = scmp.eq.s32.totalorder %s17, 0
    %s20 = sadd.s32 %s19, 1
    %s21 = scalar_select %p18, %s19, %s20
    %p24 = pneg %p18
    %p25 = scmp.eq.s32.totalorder %s9, 1
    %p26 = por %p24, %p25
    %p27 = scmp.ne.s32.totalorder %s19, %s22
    %p28 = scmp.eq.s32.totalorder %s9, 0
    %p29 = por %p27, %p28
    %p30 = scmp.ne.s32.totalorder %s19, %s22
    %p31 = scmp.eq.s32.totalorder %s14, 1
    %p32 = por %p30, %p31
    %p33 = scmp.ne.s32.totalorder %s22, %s23
    %p34 = scmp.eq.s32.totalorder %s14, 0
    %p35 = por %p33, %p34
    %p36 = scmp.ne.s32.totalorder %s22, %s23
    %p37 = scmp.eq.s32.totalorder %s15, 1
    %p38 = por %p36, %p37
    %p40 = scmp.ne.s32.totalorder %s23, %s39
    %p41 = scmp.eq.s32.totalorder %s15, 0
    %p42 = por %p40, %p41
    %s44 = sadd.s32 %s43, 1
    %p47 = scmp.eq.s32.totalorder %s9, 1
    %p48 = scmp.ne.s32.totalorder %s43, %s45
    %p49 = scmp.eq.s32.totalorder %s9, 0
    %p50 = por %p48, %p49
    %p51 = scmp.ne.s32.totalorder %s43, %s45
    %p52 = scmp.eq.s32.totalorder %s14, 1
    %p53 = por %p51, %p52
    %p54 = scmp.ne.s32.totalorder %s45, %s46
    %p55 = scmp.eq.s32.totalorder %s14, 0
    %p56 = por %p54, %p55
    %p57 = scmp.ne.s32.totalorder %s45, %s46
    %p58 = scmp.eq.s32.totalorder %s15, 1
    %p59 = por %p57, %p58
    %p61 = scmp.ne.s32.totalorder %s46, %s60
    %p62 = scmp.eq.s32.totalorder %s15, 0
    %p63 = por %p61, %p62
    %s65 = sadd.s32 %s64, 1
    %p68 = scmp.eq.s32.totalorder %s9, 1
    %p69 = scmp.ne.s32.totalorder %s64, %s66
    %p70 = scmp.eq.s32.totalorder %s9, 0
    %p71 = por %p69, %p70
    %p72 = scmp.ne.s32.totalorder %s64, %s66
    %p73 = scmp.eq.s32.totalorder %s14, 1
    %p74 = por %p72, %p73
    %p75 = scmp.ne.s32.totalorder %s66, %s67
    %p76 = scmp.eq.s32.totalorder %s14, 0
    %p77 = por %p75, %p76
    %p78 = scmp.ne.s32.totalorder %s66, %s67
    %p79 = scmp.eq.s32.totalorder %s15, 1
    %p80 = por %p78, %p79
    %p82 = scmp.ne.s32.totalorder %s67, %s81
    %p83 = scmp.eq.s32.totalorder %s15, 0
    %p84 = por %p82, %p83
    %s85 = ssub.s32 %s9, %s16
    %p86 = scmp.eq.s32.totalorder %s85, 0
    %s88 = sadd.s32 %s87, 1
    %s89 = scalar_select %p86, %s87, %s88
    %p92 = pneg %p86
    %p93 = scmp.eq.s32.totalorder %s9, 1
    %p94 = por %p92, %p93
    %p95 = scmp.ne.s32.totalorder %s87, %s90
    %p96 = scmp.eq.s32.totalorder %s9, 0
    %p97 = por %p95, %p96
    %p98 = scmp.ne.s32.totalorder %s87, %s90
    %p99 = scmp.eq.s32.totalorder %s14, 1
    %p100 = por %p98, %p99
    %p101 = scmp.ne.s32.totalorder %s90, %s91
    %p102 = scmp.eq.s32.totalorder %s14, 0
    %p103 = por %p101, %p102
    %p104 = scmp.ne.s32.totalorder %s90, %s91
    %p105 = scmp.eq.s32.totalorder %s15, 1
    %p106 = por %p104, %p105
    %p108 = scmp.ne.s32.totalorder %s91, %s107
    %p109 = scmp.eq.s32.totalorder %s15, 0
    %p110 = por %p108, %p109
    %p111 = scmp.le.s32.totalorder 1, %s9
    %p112 = scmp.lt.s32.totalorder %s9, 3
    %p113 = pnand %p111, %p112
    %p114 = pneg %p113
    // Predicated region
    $region9: #{dqn_image_block.5} parent=5 // pred_check
      _
    $region10: #{dqn_image_block.5} parent=5 // pred_check_branch
      %116 = sbr.rel (%p113) target = $region12
    $region11: #{dqn_image_block.5} parent=5 // pred_region
      %s117 = ssub.s32 %s9, 1
      // Predicated region
      $region13: #{dqn_image_block.5} parent=11 // pred_check
        %p118 = pneg %p56
      $region14: #{dqn_image_block.5} parent=11 // pred_check_branch
        %120 = sbr.rel (%p118) target = $region16
      $region15: #{dqn_image_block.5} parent=11 // pred_region
        _
      $region16: #{dqn_image_block.5} parent=11 // pred_fallthru
        _
      // Predicated region
      $region17: #{dqn_image_block.5} parent=11 // pred_check
        %p121 = pneg %p77
      $region18: #{dqn_image_block.5} parent=11 // pred_check_branch
        %123 = sbr.rel (%p121) target = $region20
      $region19: #{dqn_image_block.5} parent=11 // pred_region
        _
      $region20: #{dqn_image_block.5} parent=11 // pred_fallthru
        _
    $region12: #{dqn_image_block.5} parent=5 // pred_fallthru
      _
    %p124 = scmp.lt.s32.totalorder %s9, 2
    // Predicated region
    $region21: #{dqn_image_block.5} parent=5 // pred_check
      %p125 = pneg %p124
    $region22: #{dqn_image_block.5} parent=5 // pred_check_branch
      %127 = sbr.rel (%p125) target = $region24
    $region23: #{dqn_image_block.5} parent=5 // pred_region
      // Predicated region
      $region25: #{dqn_image_block.5} parent=23 // pred_check
        %p128 = pneg %p29
      $region26: #{dqn_image_block.5} parent=23 // pred_check_branch
        %130 = sbr.rel (%p128) target = $region28
      $region27: #{dqn_image_block.5} parent=23 // pred_region
        %p131 = scmp.lt.s32.totalorder %s9, 1
        %s132 = scalar_select %p131, %s9, 1
        %s133 = smul.addr %s132, 4
        %s134 = smul.addr %s133, 4
        %s135 = scalar_lea.vmem %s0, %s134
      $region28: #{dqn_image_block.5} parent=23 // pred_fallthru
        _
    $region24: #{dqn_image_block.5} parent=5 // pred_fallthru
      _
    %p136 = scmp.le.s32.totalorder 1, %s9
    %p137 = scmp.lt.s32.totalorder %s9, 3
    %p138 = pnand %p136, %p137
    %p139 = pneg %p138
    // Predicated region
    $region29: #{dqn_image_block.5} parent=5 // pred_check
      _
    $region30: #{dqn_image_block.5} parent=5 // pred_check_branch
      %141 = sbr.rel (%p138) target = $region32
    $region31: #{dqn_image_block.5} parent=5 // pred_region
      %s142 = ssub.s32 %s9, 1
      %p143 = scmp.lt.s32.totalorder %s14, 1
      %s144 = scalar_select %p143, %s14, 1
      %s145 = smul.addr %s144, 4
      %s146 = smul.addr %s145, 4
      %s147 = scalar_lea.vmem %s0, %s146
      %p148 = pneg %p35
      %p149 = pneg %p32
      %p150 = pneg %p56
      %p151 = pneg %p53
      %p152 = pneg %p77
      %p153 = pneg %p74
      %p154 = pneg %p103
      %p155 = pneg %p100
      %p156 = scmp.lt.s32.totalorder %s14, 1
      %s157 = scalar_select %p156, %s14, 1
      %s158 = smul.addr %s157, 2
      %s159 = smul.addr %s158, 8
      %s160 = scalar_lea.vmem %s3, %s159
      %p161 = scmp.lt.s32.totalorder %s14, 1
      %s162 = scalar_select %p161, %s14, 1
      %s163 = smul.addr %s162, 4
      %s164 = smul.addr %s163, 4
      %s165 = scalar_lea.vmem %s0, %s164
      %p166 = scmp.lt.s32.totalorder %s14, 1
      %s167 = scalar_select %p166, %s14, 1
      %s168 = smul.addr %s167, 2
      %s169 = smul.addr %s168, 8
      %s170 = scalar_lea.vmem %s3, %s169
      %v172 = vld [vmem:[%s165] sm:$0xf]
      %v173 = vld [vmem:[%s165 + $0x4] sm:$0x7]
      %v174 = vld [vmem:[%s1] sm:$0xf]
      %v175 = vld [vmem:[%s1 + $0x4] sm:$0xf]
      %v176 = vld [vmem:[%s1 + $0x8] sm:$0xf]
      %v177 = vld [vmem:[%s1 + $0xc] sm:$0xf]
      %v178 = vld [vmem:[%s1 + $0x10] sm:$0xf]
      %v179 = vld [vmem:[%s1 + $0x14] sm:$0xf]
      %v180 = vld [vmem:[%s1 + $0x18] sm:$0xf]
      %v181 = vld [vmem:[%s1 + $0x1c] sm:$0xf]
      %v182 = vld [vmem:[%s1 + $0x20] sm:$0xf]
      %v183 = vld [vmem:[%s1 + $0x24] sm:$0xf]
      %v184 = vld [vmem:[%s1 + $0x28] sm:$0xf]
      %v185 = vld [vmem:[%s1 + $0x2c] sm:$0xf]
      %v186 = vld [vmem:[%s1 + $0x30] sm:$0xf]
      %v187 = vld [vmem:[%s1 + $0x34] sm:$0xf]
      %v188 = vld [vmem:[%s1 + $0x38] sm:$0xf]
      %v189 = vld [vmem:[%s1 + $0x3c] sm:$0xf]
      %s190 = scalar_lea.vmem %s1, 64
      %v191 = vld [vmem:[%s190] sm:$0xf]
      %v192 = vld [vmem:[%s190 + $0x4] sm:$0xf]
      %v193 = vld [vmem:[%s190 + $0x8] sm:$0xf]
      %v194 = vld [vmem:[%s190 + $0xc] sm:$0xf]
      %v195 = vld [vmem:[%s190 + $0x10] sm:$0xf]
      %v196 = vld [vmem:[%s190 + $0x14] sm:$0xf]
      %v197 = vld [vmem:[%s190 + $0x18] sm:$0xf]
      %v198 = vld [vmem:[%s190 + $0x1c] sm:$0xf]
      %v199 = vld [vmem:[%s190 + $0x20] sm:$0xf]
      %v200 = vld [vmem:[%s190 + $0x24] sm:$0xf]
      %v201 = vld [vmem:[%s190 + $0x28] sm:$0xf]
      %v202 = vld [vmem:[%s190 + $0x2c] sm:$0xf]
      %v203 = vld [vmem:[%s190 + $0x30] sm:$0xf]
      %v204 = vld [vmem:[%s190 + $0x34] sm:$0xf]
      %v205 = vld [vmem:[%s190 + $0x38] sm:$0xf]
      %v206 = vld [vmem:[%s190 + $0x3c] sm:$0xf]
      %v209 = vunpack.c.l.b16 %v172
      %v210 = vunpack.c.l.b16 %v173
      %v211 = vpack.c.b16 %v210, %v209
      %v213 = vshrl.u32 %v211, 16
      %v215 = vshll.u32 %v211, 16
      %v217 = vrot.slane %v215, 1
      %v218 = vor.u32 %v213, %v217
      %v236 = vunpack.c.l.b16 %v191
      %v237 = vunpack.c.l.b16 %v192
      %v238 = vunpack.c.l.b16 %v193
      %v239 = vunpack.c.l.b16 %v194
      %v240 = vunpack.c.l.b16 %v195
      %v241 = vunpack.c.l.b16 %v196
      %v242 = vunpack.c.l.b16 %v197
      %v243 = vunpack.c.l.b16 %v198
      %v244 = vunpack.c.l.b16 %v199
      %v245 = vunpack.c.l.b16 %v200
      %v246 = vunpack.c.l.b16 %v201
      %v247 = vunpack.c.l.b16 %v202
      %v248 = vunpack.c.l.b16 %v203
      %v249 = vunpack.c.l.b16 %v204
      %v250 = vunpack.c.l.b16 %v205
      %v251 = vunpack.c.l.b16 %v206
      %v252 = vpack.c.b16 %v237, %v236
      %v253 = vpack.c.b16 %v239, %v238
      %v254 = vpack.c.b16 %v241, %v240
      %v255 = vpack.c.b16 %v243, %v242
      %v256 = vpack.c.b16 %v245, %v244
      %v257 = vpack.c.b16 %v247, %v246
      %v258 = vpack.c.b16 %v249, %v248
      %v259 = vpack.c.b16 %v251, %v250
      %268 = vmatprep.subr.bf16.mxu0 0
      %269 = vmatpush1.bf16.msra.mxu0 %v252
      %270 = vmatprep.subr.bf16.mxu0 0
      %271 = vmatpush1.bf16.msra.mxu0 %v253
      %272 = vmatprep.subr.bf16.mxu0 0
      %273 = vmatpush1.bf16.msra.mxu0 %v254
      %274 = vmatprep.subr.bf16.mxu0 0
      %275 = vmatpush1.bf16.msra.mxu0 %v255
      %276 = vmatprep.subr.bf16.mxu0 0
      %277 = vmatpush1.bf16.msra.mxu0 %v256
      %278 = vmatprep.subr.bf16.mxu0 0
      %279 = vmatpush1.bf16.msra.mxu0 %v257
      %280 = vmatprep.subr.bf16.mxu0 0
      %281 = vmatpush1.bf16.msra.mxu0 %v258
      %282 = vmatprep.subr.bf16.mxu0 0
      %283 = vmatpush1.bf16.msra.mxu0 %v259
      %284 = vmatprep.subr.bf16.mxu0 0
      %285 = vmatpush1.bf16.msra.mxu0 0
      %286 = vmatprep.subr.bf16.mxu0 0
      %287 = vmatpush1.bf16.msra.mxu0 0
      %288 = vmatprep.subr.bf16.mxu0 0
      %289 = vmatpush1.bf16.msra.mxu0 0
      %290 = vmatprep.subr.bf16.mxu0 0
      %291 = vmatpush1.bf16.msra.mxu0 0
      %292 = vmatprep.subr.bf16.mxu0 0
      %293 = vmatpush1.bf16.msra.mxu0 0
      %294 = vmatprep.subr.bf16.mxu0 0
      %295 = vmatpush1.bf16.msra.mxu0 0
      %296 = vmatprep.subr.bf16.mxu0 0
      %297 = vmatpush1.bf16.msra.mxu0 0
      %298 = vmatprep.subr.bf16.mxu0 0
      %299 = vmatpush1.bf16.msra.mxu0 0
      %300 = vmatprep.mubr.bf16.mxu0 0
      %301 = vmatmul.mubr.bf16.gmra.mrb[0].mxu0 %v218
      %v302 = vpop.f32.mrb[0].mxu0
      %v303 = vadd.f32 0.0, %v302
      %v304 = vpop.f32.mrb[0].mxu0
      %v305 = vpop.f32.mrb[0].mxu0
      %v306 = vadd.f32 0.0, %v305
      %v307 = vpop.f32.mrb[0].mxu0
      %308 = vdwg.mxu0
      %v326 = vunpack.c.l.b16 %v174
      %v327 = vunpack.c.l.b16 %v175
      %v328 = vunpack.c.l.b16 %v176
      %v329 = vunpack.c.l.b16 %v177
      %v330 = vunpack.c.l.b16 %v178
      %v331 = vunpack.c.l.b16 %v179
      %v332 = vunpack.c.l.b16 %v180
      %v333 = vunpack.c.l.b16 %v181
      %v334 = vunpack.c.l.b16 %v182
      %v335 = vunpack.c.l.b16 %v183
      %v336 = vunpack.c.l.b16 %v184
      %v337 = vunpack.c.l.b16 %v185
      %v338 = vunpack.c.l.b16 %v186
      %v339 = vunpack.c.l.b16 %v187
      %v340 = vunpack.c.l.b16 %v188
      %v341 = vunpack.c.l.b16 %v189
      %v342 = vpack.c.b16 %v327, %v326
      %v343 = vpack.c.b16 %v329, %v328
      %v344 = vpack.c.b16 %v331, %v330
      %v345 = vpack.c.b16 %v333, %v332
      %v346 = vpack.c.b16 %v335, %v334
      %v347 = vpack.c.b16 %v337, %v336
      %v348 = vpack.c.b16 %v339, %v338
      %v349 = vpack.c.b16 %v341, %v340
      %358 = vmatprep.subr.bf16.mxu0 0
      %359 = vmatpush1.bf16.msra.mxu0 %v342
      %360 = vmatprep.subr.bf16.mxu0 0
      %361 = vmatpush1.bf16.msra.mxu0 %v343
      %362 = vmatprep.subr.bf16.mxu0 0
      %363 = vmatpush1.bf16.msra.mxu0 %v344
      %364 = vmatprep.subr.bf16.mxu0 0
      %365 = vmatpush1.bf16.msra.mxu0 %v345
      %366 = vmatprep.subr.bf16.mxu0 0
      %367 = vmatpush1.bf16.msra.mxu0 %v346
      %368 = vmatprep.subr.bf16.mxu0 0
      %369 = vmatpush1.bf16.msra.mxu0 %v347
      %370 = vmatprep.subr.bf16.mxu0 0
      %371 = vmatpush1.bf16.msra.mxu0 %v348
      %372 = vmatprep.subr.bf16.mxu0 0
      %373 = vmatpush1.bf16.msra.mxu0 %v349
      %374 = vmatprep.subr.bf16.mxu0 0
      %375 = vmatpush1.bf16.msra.mxu0 0
      %376 = vmatprep.subr.bf16.mxu0 0
      %377 = vmatpush1.bf16.msra.mxu0 0
      %378 = vmatprep.subr.bf16.mxu0 0
      %379 = vmatpush1.bf16.msra.mxu0 0
      %380 = vmatprep.subr.bf16.mxu0 0
      %381 = vmatpush1.bf16.msra.mxu0 0
      %382 = vmatprep.subr.bf16.mxu0 0
      %383 = vmatpush1.bf16.msra.mxu0 0
      %384 = vmatprep.subr.bf16.mxu0 0
      %385 = vmatpush1.bf16.msra.mxu0 0
      %386 = vmatprep.subr.bf16.mxu0 0
      %387 = vmatpush1.bf16.msra.mxu0 0
      %388 = vmatprep.subr.bf16.mxu0 0
      %389 = vmatpush1.bf16.msra.mxu0 0
      %390 = vmatprep.mubr.bf16.mxu0 0
      %391 = vmatmul.mubr.bf16.gmra.mrb[0].mxu0 %v211
      %v392 = vpop.f32.mrb[0].mxu0
      %v393 = vadd.f32 %v303, %v392
      %v394 = vpop.f32.mrb[0].mxu0
      %v395 = vpop.f32.mrb[0].mxu0
      %v396 = vadd.f32 %v306, %v395
      %v397 = vpop.f32.mrb[0].mxu0
      %398 = vdwg.mxu0
      %v399 = vld [vmem:[%s165] sm:$0xe]
      %v400 = vld [vmem:[%s165 + $0x4] sm:$0xf]
      %s401 = scalar_lea.vmem %s1, 128
      %v402 = vld [vmem:[%s401] sm:$0xf]
      %v403 = vld [vmem:[%s401 + $0x4] sm:$0xf]
      %v404 = vld [vmem:[%s401 + $0x8] sm:$0xf]
      %v405 = vld [vmem:[%s401 + $0xc] sm:$0xf]
      %v406 = vld [vmem:[%s401 + $0x10] sm:$0xf]
      %v407 = vld [vmem:[%s401 + $0x14] sm:$0xf]
      %v408 = vld [vmem:[%s401 + $0x18] sm:$0xf]
      %v409 = vld [vmem:[%s401 + $0x1c] sm:$0xf]
      %v410 = vld [vmem:[%s401 + $0x20] sm:$0xf]
      %v411 = vld [vmem:[%s401 + $0x24] sm:$0xf]
      %v412 = vld [vmem:[%s401 + $0x28] sm:$0xf]
      %v413 = vld [vmem:[%s401 + $0x2c] sm:$0xf]
      %v414 = vld [vmem:[%s401 + $0x30] sm:$0xf]
      %v415 = vld [vmem:[%s401 + $0x34] sm:$0xf]
      %v416 = vld [vmem:[%s401 + $0x38] sm:$0xf]
      %v417 = vld [vmem:[%s401 + $0x3c] sm:$0xf]
      %v420 = vunpack.c.l.b16 %v399
      %v421 = vunpack.c.l.b16 %v400
      %v422 = vpack.c.b16 %v421, %v420
      %v423 = vrot.slane %v422, 1
      %v441 = vunpack.c.l.b16 %v402
      %v442 = vunpack.c.l.b16 %v403
      %v443 = vunpack.c.l.b16 %v404
      %v444 = vunpack.c.l.b16 %v405
      %v445 = vunpack.c.l.b16 %v406
      %v446 = vunpack.c.l.b16 %v407
      %v447 = vunpack.c.l.b16 %v408
      %v448 = vunpack.c.l.b16 %v409
      %v449 = vunpack.c.l.b16 %v410
      %v450 = vunpack.c.l.b16 %v411
      %v451 = vunpack.c.l.b16 %v412
      %v452 = vunpack.c.l.b16 %v413
      %v453 = vunpack.c.l.b16 %v414
      %v454 = vunpack.c.l.b16 %v415
      %v455 = vunpack.c.l.b16 %v416
      %v456 = vunpack.c.l.b16 %v417
      %v457 = vpack.c.b16 %v442, %v441
      %v458 = vpack.c.b16 %v444, %v443
      %v459 = vpack.c.b16 %v446, %v445
      %v460 = vpack.c.b16 %v448, %v447
      %v461 = vpack.c.b16 %v450, %v449
      %v462 = vpack.c.b16 %v452, %v451
      %v463 = vpack.c.b16 %v454, %v453
      %v464 = vpack.c.b16 %v456, %v455
      %473 = vmatprep.subr.bf16.mxu0 0
      %474 = vmatpush1.bf16.msra.mxu0 %v457
      %475 = vmatprep.subr.bf16.mxu0 0
      %476 = vmatpush1.bf16.msra.mxu0 %v458
      %477 = vmatprep.subr.bf16.mxu0 0
      %478 = vmatpush1.bf16.msra.mxu0 %v459
      %479 = vmatprep.subr.bf16.mxu0 0
      %480 = vmatpush1.bf16.msra.mxu0 %v460
      %481 = vmatprep.subr.bf16.mxu0 0
      %482 = vmatpush1.bf16.msra.mxu0 %v461
      %483 = vmatprep.subr.bf16.mxu0 0
      %484 = vmatpush1.bf16.msra.mxu0 %v462
      %485 = vmatprep.subr.bf16.mxu0 0
      %486 = vmatpush1.bf16.msra.mxu0 %v463
      %487 = vmatprep.subr.bf16.mxu0 0
      %488 = vmatpush1.bf16.msra.mxu0 %v464
      %489 = vmatprep.subr.bf16.mxu0 0
      %490 = vmatpush1.bf16.msra.mxu0 0
      %491 = vmatprep.subr.bf16.mxu0 0
      %492 = vmatpush1.bf16.msra.mxu0 0
      %493 = vmatprep.subr.bf16.mxu0 0
      %494 = vmatpush1.bf16.msra.mxu0 0
      %495 = vmatprep.subr.bf16.mxu0 0
      %496 = vmatpush1.bf16.msra.mxu0 0
      %497 = vmatprep.subr.bf16.mxu0 0
      %498 = vmatpush1.bf16.msra.mxu0 0
      %499 = vmatprep.subr.bf16.mxu0 0
      %500 = vmatpush1.bf16.msra.mxu0 0
      %501 = vmatprep.subr.bf16.mxu0 0
      %502 = vmatpush1.bf16.msra.mxu0 0
      %503 = vmatprep.subr.bf16.mxu0 0
      %504 = vmatpush1.bf16.msra.mxu0 0
      %505 = vmatprep.mubr.bf16.mxu0 0
      %506 = vmatmul.mubr.bf16.gmra.mrb[0].mxu0 %v423
      %v507 = vpop.f32.mrb[0].mxu0
      %v508 = vadd.f32 0.0, %v507
      %v509 = vpop.f32.mrb[0].mxu0
      %v510 = vpop.f32.mrb[0].mxu0
      %v511 = vadd.f32 0.0, %v510
      %v512 = vpop.f32.mrb[0].mxu0
      %513 = vdwg.mxu0
      %v514 = vadd.f32 %v393, %v508
      %v515 = vadd.f32 %v396, %v511
      %v516 = vld [vmem:[%s165] sm:$0xc]
      %v517 = vld [vmem:[%s165 + $0x4] sm:$0xf]
      %v518 = vld [vmem:[%s165 + $0x8] sm:$0x1]
      %s519 = scalar_lea.vmem %s1, 192
      %v520 = vld [vmem:[%s519] sm:$0xf]
      %v521 = vld [vmem:[%s519 + $0x4] sm:$0xf]
      %v522 = vld [vmem:[%s519 + $0x8] sm:$0xf]
      %v523 = vld [vmem:[%s519 + $0xc] sm:$0xf]
      %v524 = vld [vmem:[%s519 + $0x10] sm:$0xf]
      %v525 = vld [vmem:[%s519 + $0x14] sm:$0xf]
      %v526 = vld [vmem:[%s519 + $0x18] sm:$0xf]
      %v527 = vld [vmem:[%s519 + $0x1c] sm:$0xf]
      %v528 = vld [vmem:[%s519 + $0x20] sm:$0xf]
      %v529 = vld [vmem:[%s519 + $0x24] sm:$0xf]
      %v530 = vld [vmem:[%s519 + $0x28] sm:$0xf]
      %v531 = vld [vmem:[%s519 + $0x2c] sm:$0xf]
      %v532 = vld [vmem:[%s519 + $0x30] sm:$0xf]
      %v533 = vld [vmem:[%s519 + $0x34] sm:$0xf]
      %v534 = vld [vmem:[%s519 + $0x38] sm:$0xf]
      %v535 = vld [vmem:[%s519 + $0x3c] sm:$0xf]
      %v539 = vunpack.c.l.b16 %v516
      %v540 = vunpack.c.l.b16 %v517
      %v541 = vunpack.c.l.b16 %v518
      %v542 = vpack.c.b16 %v540, %v539
      %v543 = vpack.c.b16 %v541, %v541
      %vm544 = vsmask.f32 5376
      %v546 = vshrl.u32 %v542, 16
      %v548 = vrot.slane %v546, 2
      %v549 = vshll.u32 %v542, 16
      %v551 = vrot.slane %v549, 3
      %v552 = vor.u32 %v548, %v551
      %v554 = vshrl.u32 %v543, 16
      %v556 = vrot.slane %v554, 2
      %v557 = vshll.u32 %v543, 16
      %v559 = vrot.slane %v557, 3
      %v560 = vor.u32 %v556, %v559
      %v561 = vsel %vm544, %v552, %v560
      %v579 = vunpack.c.l.b16 %v520
      %v580 = vunpack.c.l.b16 %v521
      %v581 = vunpack.c.l.b16 %v522
      %v582 = vunpack.c.l.b16 %v523
      %v583 = vunpack.c.l.b16 %v524
      %v584 = vunpack.c.l.b16 %v525
      %v585 = vunpack.c.l.b16 %v526
      %v586 = vunpack.c.l.b16 %v527
      %v587 = vunpack.c.l.b16 %v528
      %v588 = vunpack.c.l.b16 %v529
      %v589 = vunpack.c.l.b16 %v530
      %v590 = vunpack.c.l.b16 %v531
      %v591 = vunpack.c.l.b16 %v532
      %v592 = vunpack.c.l.b16 %v533
      %v593 = vunpack.c.l.b16 %v534
      %v594 = vunpack.c.l.b16 %v535
      %v595 = vpack.c.b16 %v580, %v579
      %v596 = vpack.c.b16 %v582, %v581
      %v597 = vpack.c.b16 %v584, %v583
      %v598 = vpack.c.b16 %v586, %v585
      %v599 = vpack.c.b16 %v588, %v587
      %v600 = vpack.c.b16 %v590, %v589
      %v601 = vpack.c.b16 %v592, %v591
      %v602 = vpack.c.b16 %v594, %v593
      %611 = vmatprep.subr.bf16.mxu0 0
      %612 = vmatpush1.bf16.msra.mxu0 %v595
      %613 = vmatprep.subr.bf16.mxu0 0
      %614 = vmatpush1.bf16.msra.mxu0 %v596
      %615 = vmatprep.subr.bf16.mxu0 0
      %616 = vmatpush1.bf16.msra.mxu0 %v597
      %617 = vmatprep.subr.bf16.mxu0 0
      %618 = vmatpush1.bf16.msra.mxu0 %v598
      %619 = vmatprep.subr.bf16.mxu0 0
      %620 = vmatpush1.bf16.msra.mxu0 %v599
      %621 = vmatprep.subr.bf16.mxu0 0
      %622 = vmatpush1.bf16.msra.mxu0 %v600
      %623 = vmatprep.subr.bf16.mxu0 0
      %624 = vmatpush1.bf16.msra.mxu0 %v601
      %625 = vmatprep.subr.bf16.mxu0 0
      %626 = vmatpush1.bf16.msra.mxu0 %v602
      %627 = vmatprep.subr.bf16.mxu0 0
      %628 = vmatpush1.bf16.msra.mxu0 0
      %629 = vmatprep.subr.bf16.mxu0 0
      %630 = vmatpush1.bf16.msra.mxu0 0
      %631 = vmatprep.subr.bf16.mxu0 0
      %632 = vmatpush1.bf16.msra.mxu0 0
      %633 = vmatprep.subr.bf16.mxu0 0
      %634 = vmatpush1.bf16.msra.mxu0 0
      %635 = vmatprep.subr.bf16.mxu0 0
      %636 = vmatpush1.bf16.msra.mxu0 0
      %637 = vmatprep.subr.bf16.mxu0 0
      %638 = vmatpush1.bf16.msra.mxu0 0
      %639 = vmatprep.subr.bf16.mxu0 0
      %640 = vmatpush1.bf16.msra.mxu0 0
      %641 = vmatprep.subr.bf16.mxu0 0
      %642 = vmatpush1.bf16.msra.mxu0 0
      %643 = vmatprep.mubr.bf16.mxu0 0
      %644 = vmatmul.mubr.bf16.gmra.mrb[0].mxu0 %v561
      %v645 = vpop.f32.mrb[0].mxu0
      %v646 = vadd.f32 0.0, %v645
      %v647 = vpop.f32.mrb[0].mxu0
      %v648 = vpop.f32.mrb[0].mxu0
      %v649 = vadd.f32 0.0, %v648
      %v650 = vpop.f32.mrb[0].mxu0
      %651 = vdwg.mxu0
      %v652 = vadd.f32 %v514, %v646
      %v653 = vadd.f32 %v515, %v649
      %v654 = vld [vmem:[%s165] sm:$0x8]
      %v655 = vld [vmem:[%s165 + $0x8] sm:$0x3]
      %s656 = scalar_lea.vmem %s1, 256
      %v657 = vld [vmem:[%s656] sm:$0xf]
      %v658 = vld [vmem:[%s656 + $0x4] sm:$0xf]
      %v659 = vld [vmem:[%s656 + $0x8] sm:$0xf]
      %v660 = vld [vmem:[%s656 + $0xc] sm:$0xf]
      %v661 = vld [vmem:[%s656 + $0x10] sm:$0xf]
      %v662 = vld [vmem:[%s656 + $0x14] sm:$0xf]
      %v663 = vld [vmem:[%s656 + $0x18] sm:$0xf]
      %v664 = vld [vmem:[%s656 + $0x1c] sm:$0xf]
      %v665 = vld [vmem:[%s656 + $0x20] sm:$0xf]
      %v666 = vld [vmem:[%s656 + $0x24] sm:$0xf]
      %v667 = vld [vmem:[%s656 + $0x28] sm:$0xf]
      %v668 = vld [vmem:[%s656 + $0x2c] sm:$0xf]
      %v669 = vld [vmem:[%s656 + $0x30] sm:$0xf]
      %v670 = vld [vmem:[%s656 + $0x34] sm:$0xf]
      %v671 = vld [vmem:[%s656 + $0x38] sm:$0xf]
      %v672 = vld [vmem:[%s656 + $0x3c] sm:$0xf]
      %v675 = vunpack.c.l.b16 %v654
      %v676 = vunpack.c.l.b16 %v655
      %v677 = vpack.c.b16 %v540, %v675
      %v678 = vpack.c.b16 %v676, %v676
      %vm679 = vcmask 1044480
      %v680 = vrot.slane %v677, 3
      %v681 = vrot.slane %v678, 3
      %v682 = vsel %vm679, %v680, %v681
      %v700 = vunpack.c.l.b16 %v657
      %v701 = vunpack.c.l.b16 %v658
      %v702 = vunpack.c.l.b16 %v659
      %v703 = vunpack.c.l.b16 %v660
      %v704 = vunpack.c.l.b16 %v661
      %v705 = vunpack.c.l.b16 %v662
      %v706 = vunpack.c.l.b16 %v663
      %v707 = vunpack.c.l.b16 %v664
      %v708 = vunpack.c.l.b16 %v665
      %v709 = vunpack.c.l.b16 %v666
      %v710 = vunpack.c.l.b16 %v667
      %v711 = vunpack.c.l.b16 %v668
      %v712 = vunpack.c.l.b16 %v669
      %v713 = vunpack.c.l.b16 %v670
      %v714 = vunpack.c.l.b16 %v671
      %v715 = vunpack.c.l.b16 %v672
      %v716 = vpack.c.b16 %v701, %v700
      %v717 = vpack.c.b16 %v703, %v702
      %v718 = vpack.c.b16 %v705, %v704
      %v719 = vpack.c.b16 %v707, %v706
      %v720 = vpack.c.b16 %v709, %v708
      %v721 = vpack.c.b16 %v711, %v710
      %v722 = vpack.c.b16 %v713, %v712
      %v723 = vpack.c.b16 %v715, %v714
      %732 = vmatprep.subr.bf16.mxu0 0
      %733 = vmatpush1.bf16.msra.mxu0 %v716
      %734 = vmatprep.subr.bf16.mxu0 0
      %735 = vmatpush1.bf16.msra.mxu0 %v717
      %736 = vmatprep.subr.bf16.mxu0 0
      %737 = vmatpush1.bf16.msra.mxu0 %v718
      %738 = vmatprep.subr.bf16.mxu0 0
      %739 = vmatpush1.bf16.msra.mxu0 %v719
      %740 = vmatprep.subr.bf16.mxu0 0
      %741 = vmatpush1.bf16.msra.mxu0 %v720
      %742 = vmatprep.subr.bf16.mxu0 0
      %743 = vmatpush1.bf16.msra.mxu0 %v721
      %744 = vmatprep.subr.bf16.mxu0 0
      %745 = vmatpush1.bf16.msra.mxu0 %v722
      %746 = vmatprep.subr.bf16.mxu0 0
      %747 = vmatpush1.bf16.msra.mxu0 %v723
      %748 = vmatprep.subr.bf16.mxu0 0
      %749 = vmatpush1.bf16.msra.mxu0 0
      %750 = vmatprep.subr.bf16.mxu0 0
      %751 = vmatpush1.bf16.msra.mxu0 0
      %752 = vmatprep.subr.bf16.mxu0 0
      %753 = vmatpush1.bf16.msra.mxu0 0
      %754 = vmatprep.subr.bf16.mxu0 0
      %755 = vmatpush1.bf16.msra.mxu0 0
      %756 = vmatprep.subr.bf16.mxu0 0
      %757 = vmatpush1.bf16.msra.mxu0 0
      %758 = vmatprep.subr.bf16.mxu0 0
      %759 = vmatpush1.bf16.msra.mxu0 0
      %760 = vmatprep.subr.bf16.mxu0 0
      %761 = vmatpush1.bf16.msra.mxu0 0
      %762 = vmatprep.subr.bf16.mxu0 0
      %763 = vmatpush1.bf16.msra.mxu0 0
      %764 = vmatprep.mubr.bf16.mxu0 0
      %765 = vmatmul.mubr.bf16.gmra.mrb[0].mxu0 %v682
      %v766 = vpop.f32.mrb[0].mxu0
      %v767 = vadd.f32 0.0, %v766
      %v768 = vpop.f32.mrb[0].mxu0
      %v769 = vpop.f32.mrb[0].mxu0
      %v770 = vadd.f32 0.0, %v769
      %v771 = vpop.f32.mrb[0].mxu0
      %772 = vdwg.mxu0
      %v773 = vadd.f32 %v652, %v767
      %v774 = vadd.f32 %v653, %v770
      %s775 = scalar_lea.vmem %s1, 320
      %v776 = vld [vmem:[%s775] sm:$0xf]
      %v777 = vld [vmem:[%s775 + $0x4] sm:$0xf]
      %v778 = vld [vmem:[%s775 + $0x8] sm:$0xf]
      %v779 = vld [vmem:[%s775 + $0xc] sm:$0xf]
      %v780 = vld [vmem:[%s775 + $0x10] sm:$0xf]
      %v781 = vld [vmem:[%s775 + $0x14] sm:$0xf]
      %v782 = vld [vmem:[%s775 + $0x18] sm:$0xf]
      %v783 = vld [vmem:[%s775 + $0x1c] sm:$0xf]
      %v784 = vld [vmem:[%s775 + $0x20] sm:$0xf]
      %v785 = vld [vmem:[%s775 + $0x24] sm:$0xf]
      %v786 = vld [vmem:[%s775 + $0x28] sm:$0xf]
      %v787 = vld [vmem:[%s775 + $0x2c] sm:$0xf]
      %v788 = vld [vmem:[%s775 + $0x30] sm:$0xf]
      %v789 = vld [vmem:[%s775 + $0x34] sm:$0xf]
      %v790 = vld [vmem:[%s775 + $0x38] sm:$0xf]
      %v791 = vld [vmem:[%s775 + $0x3c] sm:$0xf]
      %vm792 = vsmask.f32 4352
      %v794 = vshrl.u32 %v677, 16
      %v796 = vrot.slane %v794, 3
      %v797 = vshll.u32 %v677, 16
      %v799 = vrot.slane %v797, 4
      %v800 = vor.u32 %v796, %v799
      %v802 = vshrl.u32 %v678, 16
      %v804 = vrot.slane %v802, 3
      %v805 = vshll.u32 %v678, 16
      %v807 = vrot.slane %v805, 4
      %v808 = vor.u32 %v804, %v807
      %v809 = vsel %vm792, %v800, %v808
      %v827 = vunpack.c.l.b16 %v776
      %v828 = vunpack.c.l.b16 %v777
      %v829 = vunpack.c.l.b16 %v778
      %v830 = vunpack.c.l.b16 %v779
      %v831 = vunpack.c.l.b16 %v780
      %v832 = vunpack.c.l.b16 %v781
      %v833 = vunpack.c.l.b16 %v782
      %v834 = vunpack.c.l.b16 %v783
      %v835 = vunpack.c.l.b16 %v784
      %v836 = vunpack.c.l.b16 %v785
      %v837 = vunpack.c.l.b16 %v786
      %v838 = vunpack.c.l.b16 %v787
      %v839 = vunpack.c.l.b16 %v788
      %v840 = vunpack.c.l.b16 %v789
      %v841 = vunpack.c.l.b16 %v790
      %v842 = vunpack.c.l.b16 %v791
      %v843 = vpack.c.b16 %v828, %v827
      %v844 = vpack.c.b16 %v830, %v829
      %v845 = vpack.c.b16 %v832, %v831
      %v846 = vpack.c.b16 %v834, %v833
      %v847 = vpack.c.b16 %v836, %v835
      %v848 = vpack.c.b16 %v838, %v837
      %v849 = vpack.c.b16 %v840, %v839
      %v850 = vpack.c.b16 %v842, %v841
      %859 = vmatprep.subr.bf16.mxu0 0
      %860 = vmatpush1.bf16.msra.mxu0 %v843
      %861 = vmatprep.subr.bf16.mxu0 0
      %862 = vmatpush1.bf16.msra.mxu0 %v844
      %863 = vmatprep.subr.bf16.mxu0 0
      %864 = vmatpush1.bf16.msra.mxu0 %v845
      %865 = vmatprep.subr.bf16.mxu0 0
      %866 = vmatpush1.bf16.msra.mxu0 %v846
      %867 = vmatprep.subr.bf16.mxu0 0
      %868 = vmatpush1.bf16.msra.mxu0 %v847
      %869 = vmatprep.subr.bf16.mxu0 0
      %870 = vmatpush1.bf16.msra.mxu0 %v848
      %871 = vmatprep.subr.bf16.mxu0 0
      %872 = vmatpush1.bf16.msra.mxu0 %v849
      %873 = vmatprep.subr.bf16.mxu0 0
      %874 = vmatpush1.bf16.msra.mxu0 %v850
      %875 = vmatprep.subr.bf16.mxu0 0
      %876 = vmatpush1.bf16.msra.mxu0 0
      %877 = vmatprep.subr.bf16.mxu0 0
      %878 = vmatpush1.bf16.msra.mxu0 0
      %879 = vmatprep.subr.bf16.mxu0 0
      %880 = vmatpush1.bf16.msra.mxu0 0
      %881 = vmatprep.subr.bf16.mxu0 0
      %882 = vmatpush1.bf16.msra.mxu0 0
      %883 = vmatprep.subr.bf16.mxu0 0
      %884 = vmatpush1.bf16.msra.mxu0 0
      %885 = vmatprep.subr.bf16.mxu0 0
      %886 = vmatpush1.bf16.msra.mxu0 0
      %887 = vmatprep.subr.bf16.mxu0 0
      %888 = vmatpush1.bf16.msra.mxu0 0
      %889 = vmatprep.subr.bf16.mxu0 0
      %890 = vmatpush1.bf16.msra.mxu0 0
      %891 = vmatprep.mubr.bf16.mxu0 0
      %892 = vmatmul.mubr.bf16.gmra.mrb[0].mxu0 %v809
      %v893 = vpop.f32.mrb[0].mxu0
      %v894 = vadd.f32 0.0, %v893
      %v895 = vpop.f32.mrb[0].mxu0
      %v896 = vpop.f32.mrb[0].mxu0
      %v897 = vadd.f32 0.0, %v896
      %v898 = vpop.f32.mrb[0].mxu0
      %899 = vdwg.mxu0
      %v900 = vadd.f32 %v773, %v894
      %v901 = vadd.f32 %v774, %v897
      %v902 = vld [vmem:[%s165 + $0x4] sm:$0xe]
      %v903 = vld [vmem:[%s165 + $0x8] sm:$0xf]
      %s904 = scalar_lea.vmem %s1, 384
      %v905 = vld [vmem:[%s904] sm:$0xf]
      %v906 = vld [vmem:[%s904 + $0x4] sm:$0xf]
      %v907 = vld [vmem:[%s904 + $0x8] sm:$0xf]
      %v908 = vld [vmem:[%s904 + $0xc] sm:$0xf]
      %v909 = vld [vmem:[%s904 + $0x10] sm:$0xf]
      %v910 = vld [vmem:[%s904 + $0x14] sm:$0xf]
      %v911 = vld [vmem:[%s904 + $0x18] sm:$0xf]
      %v912 = vld [vmem:[%s904 + $0x1c] sm:$0xf]
      %v913 = vld [vmem:[%s904 + $0x20] sm:$0xf]
      %v914 = vld [vmem:[%s904 + $0x24] sm:$0xf]
      %v915 = vld [vmem:[%s904 + $0x28] sm:$0xf]
      %v916 = vld [vmem:[%s904 + $0x2c] sm:$0xf]
      %v917 = vld [vmem:[%s904 + $0x30] sm:$0xf]
      %v918 = vld [vmem:[%s904 + $0x34] sm:$0xf]
      %v919 = vld [vmem:[%s904 + $0x38] sm:$0xf]
      %v920 = vld [vmem:[%s904 + $0x3c] sm:$0xf]
      %v923 = vunpack.c.l.b16 %v902
      %v924 = vunpack.c.l.b16 %v903
      %v925 = vpack.c.b16 %v924, %v923
      %v926 = vrot.slane %v925, 1
      %v944 = vunpack.c.l.b16 %v905
      %v945 = vunpack.c.l.b16 %v906
      %v946 = vunpack.c.l.b16 %v907
      %v947 = vunpack.c.l.b16 %v908
      %v948 = vunpack.c.l.b16 %v909
      %v949 = vunpack.c.l.b16 %v910
      %v950 = vunpack.c.l.b16 %v911
      %v951 = vunpack.c.l.b16 %v912
      %v952 = vunpack.c.l.b16 %v913
      %v953 = vunpack.c.l.b16 %v914
      %v954 = vunpack.c.l.b16 %v915
      %v955 = vunpack.c.l.b16 %v916
      %v956 = vunpack.c.l.b16 %v917
      %v957 = vunpack.c.l.b16 %v918
      %v958 = vunpack.c.l.b16 %v919
      %v959 = vunpack.c.l.b16 %v920
      %v960 = vpack.c.b16 %v945, %v944
      %v961 = vpack.c.b16 %v947, %v946
      %v962 = vpack.c.b16 %v949, %v948
      %v963 = vpack.c.b16 %v951, %v950
      %v964 = vpack.c.b16 %v953, %v952
      %v965 = vpack.c.b16 %v955, %v954
      %v966 = vpack.c.b16 %v957, %v956
      %v967 = vpack.c.b16 %v959, %v958
      %976 = vmatprep.subr.bf16.mxu0 0
      %977 = vmatpush1.bf16.msra.mxu0 %v960
      %978 = vmatprep.subr.bf16.mxu0 0
      %979 = vmatpush1.bf16.msra.mxu0 %v961
      %980 = vmatprep.subr.bf16.mxu0 0
      %981 = vmatpush1.bf16.msra.mxu0 %v962
      %982 = vmatprep.subr.bf16.mxu0 0
      %983 = vmatpush1.bf16.msra.mxu0 %v963
      %984 = vmatprep.subr.bf16.mxu0 0
      %985 = vmatpush1.bf16.msra.mxu0 %v964
      %986 = vmatprep.subr.bf16.mxu0 0
      %987 = vmatpush1.bf16.msra.mxu0 %v965
      %988 = vmatprep.subr.bf16.mxu0 0
      %989 = vmatpush1.bf16.msra.mxu0 %v966
      %990 = vmatprep.subr.bf16.mxu0 0
      %991 = vmatpush1.bf16.msra.mxu0 %v967
      %992 = vmatprep.subr.bf16.mxu0 0
      %993 = vmatpush1.bf16.msra.mxu0 0
      %994 = vmatprep.subr.bf16.mxu0 0
      %995 = vmatpush1.bf16.msra.mxu0 0
      %996 = vmatprep.subr.bf16.mxu0 0
      %997 = vmatpush1.bf16.msra.mxu0 0
      %998 = vmatprep.subr.bf16.mxu0 0
      %999 = vmatpush1.bf16.msra.mxu0 0
      %1000 = vmatprep.subr.bf16.mxu0 0
      %1001 = vmatpush1.bf16.msra.mxu0 0
      %1002 = vmatprep.subr.bf16.mxu0 0
      %1003 = vmatpush1.bf16.msra.mxu0 0
      %1004 = vmatprep.subr.bf16.mxu0 0
      %1005 = vmatpush1.bf16.msra.mxu0 0
      %1006 = vmatprep.subr.bf16.mxu0 0
      %1007 = vmatpush1.bf16.msra.mxu0 0
      %1008 = vmatprep.mubr.bf16.mxu0 0
      %1009 = vmatmul.mubr.bf16.gmra.mrb[0].mxu0 %v926
      %v1010 = vpop.f32.mrb[0].mxu0
      %v1011 = vadd.f32 0.0, %v1010
      %v1012 = vpop.f32.mrb[0].mxu0
      %v1013 = vpop.f32.mrb[0].mxu0
      %v1014 = vadd.f32 0.0, %v1013
      %v1015 = vpop.f32.mrb[0].mxu0
      %1016 = vdwg.mxu0
      %v1017 = vadd.f32 %v900, %v1011
      %v1018 = vadd.f32 %v901, %v1014
      %s1019 = scalar_lea.vmem %s1, 448
      %v1020 = vld [vmem:[%s1019] sm:$0xf]
      %v1021 = vld [vmem:[%s1019 + $0x4] sm:$0xf]
      %v1022 = vld [vmem:[%s1019 + $0x8] sm:$0xf]
      %v1023 = vld [vmem:[%s1019 + $0xc] sm:$0xf]
      %v1024 = vld [vmem:[%s1019 + $0x10] sm:$0xf]
      %v1025 = vld [vmem:[%s1019 + $0x14] sm:$0xf]
      %v1026 = vld [vmem:[%s1019 + $0x18] sm:$0xf]
      %v1027 = vld [vmem:[%s1019 + $0x1c] sm:$0xf]
      %v1028 = vld [vmem:[%s1019 + $0x20] sm:$0xf]
      %v1029 = vld [vmem:[%s1019 + $0x24] sm:$0xf]
      %v1030 = vld [vmem:[%s1019 + $0x28] sm:$0xf]
      %v1031 = vld [vmem:[%s1019 + $0x2c] sm:$0xf]
      %v1032 = vld [vmem:[%s1019 + $0x30] sm:$0xf]
      %v1033 = vld [vmem:[%s1019 + $0x34] sm:$0xf]
      %v1034 = vld [vmem:[%s1019 + $0x38] sm:$0xf]
      %v1035 = vld [vmem:[%s1019 + $0x3c] sm:$0xf]
      %v1037 = vshrl.u32 %v925, 16
      %v1039 = vrot.slane %v1037, 1
      %v1040 = vshll.u32 %v925, 16
      %v1042 = vrot.slane %v1040, 2
      %v1043 = vor.u32 %v1039, %v1042
      %v1061 = vunpack.c.l.b16 %v1020
      %v1062 = vunpack.c.l.b16 %v1021
      %v1063 = vunpack.c.l.b16 %v1022
      %v1064 = vunpack.c.l.b16 %v1023
      %v1065 = vunpack.c.l.b16 %v1024
      %v1066 = vunpack.c.l.b16 %v1025
      %v1067 = vunpack.c.l.b16 %v1026
      %v1068 = vunpack.c.l.b16 %v1027
      %v1069 = vunpack.c.l.b16 %v1028
      %v1070 = vunpack.c.l.b16 %v1029
      %v1071 = vunpack.c.l.b16 %v1030
      %v1072 = vunpack.c.l.b16 %v1031
      %v1073 = vunpack.c.l.b16 %v1032
      %v1074 = vunpack.c.l.b16 %v1033
      %v1075 = vunpack.c.l.b16 %v1034
      %v1076 = vunpack.c.l.b16 %v1035
      %v1077 = vpack.c.b16 %v1062, %v1061
      %v1078 = vpack.c.b16 %v1064, %v1063
      %v1079 = vpack.c.b16 %v1066, %v1065
      %v1080 = vpack.c.b16 %v1068, %v1067
      %v1081 = vpack.c.b16 %v1070, %v1069
      %v1082 = vpack.c.b16 %v1072, %v1071
      %v1083 = vpack.c.b16 %v1074, %v1073
      %v1084 = vpack.c.b16 %v1076, %v1075
      %1093 = vmatprep.subr.bf16.mxu0 0
      %1094 = vmatpush1.bf16.msra.mxu0 %v1077
      %1095 = vmatprep.subr.bf16.mxu0 0
      %1096 = vmatpush1.bf16.msra.mxu0 %v1078
      %1097 = vmatprep.subr.bf16.mxu0 0
      %1098 = vmatpush1.bf16.msra.mxu0 %v1079
      %1099 = vmatprep.subr.bf16.mxu0 0
      %1100 = vmatpush1.bf16.msra.mxu0 %v1080
      %1101 = vmatprep.subr.bf16.mxu0 0
      %1102 = vmatpush1.bf16.msra.mxu0 %v1081
      %1103 = vmatprep.subr.bf16.mxu0 0
      %1104 = vmatpush1.bf16.msra.mxu0 %v1082
      %1105 = vmatprep.subr.bf16.mxu0 0
      %1106 = vmatpush1.bf16.msra.mxu0 %v1083
      %1107 = vmatprep.subr.bf16.mxu0 0
      %1108 = vmatpush1.bf16.msra.mxu0 %v1084
      %1109 = vmatprep.subr.bf16.mxu0 0
      %1110 = vmatpush1.bf16.msra.mxu0 0
      %1111 = vmatprep.subr.bf16.mxu0 0
      %1112 = vmatpush1.bf16.msra.mxu0 0
      %1113 = vmatprep.subr.bf16.mxu0 0
      %1114 = vmatpush1.bf16.msra.mxu0 0
      %1115 = vmatprep.subr.bf16.mxu0 0
      %1116 = vmatpush1.bf16.msra.mxu0 0
      %1117 = vmatprep.subr.bf16.mxu0 0
      %1118 = vmatpush1.bf16.msra.mxu0 0
      %1119 = vmatprep.subr.bf16.mxu0 0
      %1120 = vmatpush1.bf16.msra.mxu0 0
      %1121 = vmatprep.subr.bf16.mxu0 0
      %1122 = vmatpush1.bf16.msra.mxu0 0
      %1123 = vmatprep.subr.bf16.mxu0 0
      %1124 = vmatpush1.bf16.msra.mxu0 0
      %1125 = vmatprep.mubr.bf16.mxu0 0
      %1126 = vmatmul.mubr.bf16.gmra.mrb[0].mxu0 %v1043
      %v1127 = vpop.f32.mrb[0].mxu0
      %v1128 = vadd.f32 0.0, %v1127
      %v1129 = vpop.f32.mrb[0].mxu0
      %v1130 = vpop.f32.mrb[0].mxu0
      %v1131 = vadd.f32 0.0, %v1130
      %v1132 = vpop.f32.mrb[0].mxu0
      %1133 = vdwg.mxu0
      %v1134 = vadd.f32 %v1017, %v1128
      %v1135 = vadd.f32 %v1018, %v1131
      %v1136 = vld [vmem:[%s165 + $0x4] sm:$0xc]
      %v1137 = vld [vmem:[%s165 + $0x8] sm:$0xf]
      %v1138 = vld [vmem:[%s165 + $0xc] sm:$0x1]
      %s1139 = scalar_lea.vmem %s1, 512
      %v1140 = vld [vmem:[%s1139] sm:$0xf]
      %v1141 = vld [vmem:[%s1139 + $0x4] sm:$0xf]
      %v1142 = vld [vmem:[%s1139 + $0x8] sm:$0xf]
      %v1143 = vld [vmem:[%s1139 + $0xc] sm:$0xf]
      %v1144 = vld [vmem:[%s1139 + $0x10] sm:$0xf]
      %v1145 = vld [vmem:[%s1139 + $0x14] sm:$0xf]
      %v1146 = vld [vmem:[%s1139 + $0x18] sm:$0xf]
      %v1147 = vld [vmem:[%s1139 + $0x1c] sm:$0xf]
      %v1148 = vld [vmem:[%s1139 + $0x20] sm:$0xf]
      %v1149 = vld [vmem:[%s1139 + $0x24] sm:$0xf]
      %v1150 = vld [vmem:[%s1139 + $0x28] sm:$0xf]
      %v1151 = vld [vmem:[%s1139 + $0x2c] sm:$0xf]
      %v1152 = vld [vmem:[%s1139 + $0x30] sm:$0xf]
      %v1153 = vld [vmem:[%s1139 + $0x34] sm:$0xf]
      %v1154 = vld [vmem:[%s1139 + $0x38] sm:$0xf]
      %v1155 = vld [vmem:[%s1139 + $0x3c] sm:$0xf]
      %v1159 = vunpack.c.l.b16 %v1136
      %v1160 = vunpack.c.l.b16 %v1137
      %v1161 = vunpack.c.l.b16 %v1138
      %v1162 = vpack.c.b16 %v1160, %v1159
      %v1163 = vpack.c.b16 %v1161, %v1161
      %vm1164 = vcmask 1045504
      %v1165 = vrot.slane %v1162, 2
      %v1166 = vrot.slane %v1163, 2
      %v1167 = vsel %vm1164, %v1165, %v1166
      %v1185 = vunpack.c.l.b16 %v1140
      %v1186 = vunpack.c.l.b16 %v1141
      %v1187 = vunpack.c.l.b16 %v1142
      %v1188 = vunpack.c.l.b16 %v1143
      %v1189 = vunpack.c.l.b16 %v1144
      %v1190 = vunpack.c.l.b16 %v1145
      %v1191 = vunpack.c.l.b16 %v1146
      %v1192 = vunpack.c.l.b16 %v1147
      %v1193 = vunpack.c.l.b16 %v1148
      %v1194 = vunpack.c.l.b16 %v1149
      %v1195 = vunpack.c.l.b16 %v1150
      %v1196 = vunpack.c.l.b16 %v1151
      %v1197 = vunpack.c.l.b16 %v1152
      %v1198 = vunpack.c.l.b16 %v1153
      %v1199 = vunpack.c.l.b16 %v1154
      %v1200 = vunpack.c.l.b16 %v1155
      %v1201 = vpack.c.b16 %v1186, %v1185
      %v1202 = vpack.c.b16 %v1188, %v1187
      %v1203 = vpack.c.b16 %v1190, %v1189
      %v1204 = vpack.c.b16 %v1192, %v1191
      %v1205 = vpack.c.b16 %v1194, %v1193
      %v1206 = vpack.c.b16 %v1196, %v1195
      %v1207 = vpack.c.b16 %v1198, %v1197
      %v1208 = vpack.c.b16 %v1200, %v1199
      %1217 = vmatprep.subr.bf16.mxu0 0
      %1218 = vmatpush1.bf16.msra.mxu0 %v1201
      %1219 = vmatprep.subr.bf16.mxu0 0
      %1220 = vmatpush1.bf16.msra.mxu0 %v1202
      %1221 = vmatprep.subr.bf16.mxu0 0
      %1222 = vmatpush1.bf16.msra.mxu0 %v1203
      %1223 = vmatprep.subr.bf16.mxu0 0
      %1224 = vmatpush1.bf16.msra.mxu0 %v1204
      %1225 = vmatprep.subr.bf16.mxu0 0
      %1226 = vmatpush1.bf16.msra.mxu0 %v1205
      %1227 = vmatprep.subr.bf16.mxu0 0
      %1228 = vmatpush1.bf16.msra.mxu0 %v1206
      %1229 = vmatprep.subr.bf16.mxu0 0
      %1230 = vmatpush1.bf16.msra.mxu0 %v1207
      %1231 = vmatprep.subr.bf16.mxu0 0
      %1232 = vmatpush1.bf16.msra.mxu0 %v1208
      %1233 = vmatprep.subr.bf16.mxu0 0
      %1234 = vmatpush1.bf16.msra.mxu0 0
      %1235 = vmatprep.subr.bf16.mxu0 0
      %1236 = vmatpush1.bf16.msra.mxu0 0
      %1237 = vmatprep.subr.bf16.mxu0 0
      %1238 = vmatpush1.bf16.msra.mxu0 0
      %1239 = vmatprep.subr.bf16.mxu0 0
      %1240 = vmatpush1.bf16.msra.mxu0 0
      %1241 = vmatprep.subr.bf16.mxu0 0
      %1242 = vmatpush1.bf16.msra.mxu0 0
      %1243 = vmatprep.subr.bf16.mxu0 0
      %1244 = vmatpush1.bf16.msra.mxu0 0
      %1245 = vmatprep.subr.bf16.mxu0 0
      %1246 = vmatpush1.bf16.msra.mxu0 0
      %1247 = vmatprep.subr.bf16.mxu0 0
      %1248 = vmatpush1.bf16.msra.mxu0 0
      %1249 = vmatprep.mubr.bf16.mxu0 0
      %1250 = vmatmul.mubr.bf16.gmra.mrb[0].mxu0 %v1167
      %v1251 = vpop.f32.mrb[0].mxu0
      %v1252 = vadd.f32 0.0, %v1251
      %v1253 = vpop.f32.mrb[0].mxu0
      %v1254 = vpop.f32.mrb[0].mxu0
      %v1255 = vadd.f32 0.0, %v1254
      %v1256 = vpop.f32.mrb[0].mxu0
      %1257 = vdwg.mxu0
      %v1258 = vadd.f32 %v1134, %v1252
      %v1259 = vadd.f32 %v1135, %v1255
      %v1260 = vld [vmem:[%s2] sm:$0x1]
      %v1262 = vlaneseq
      %v1263 = vshrl.u32 %v1262, 7
      %v1264 = vsub.s32 0, %v1263
      %v1265 = vrot.slane %v1260, %v1264
      %v1267 = vadd.f32 %v1258, %v1265
      %v1268 = vadd.f32 %v1259, %v1265
      %v1269 = vmax.f32 %v1267, 0.0
      %v1270 = vmax.f32 %v1268, 0.0
      %1271 = vst [vmem:[%s170] sm:$0xff] %v1269
      %1272 = vst [vmem:[%s170 + $0x8] sm:$0x1f] %v1270
      %p1273 = scmp.lt.s32.totalorder %s14, 1
      %s1274 = scalar_select %p1273, %s14, 1
      %s1275 = smul.addr %s1274, 2
      %s1276 = smul.addr %s1275, 8
      %s1277 = scalar_lea.vmem %s3, %s1276
      // Predicated region
      $region33: #{dqn_image_block.5} parent=31 // pred_check
        %p1278 = pneg %p100
      $region34: #{dqn_image_block.5} parent=31 // pred_check_branch
        %1280 = sbr.rel (%p1278) target = $region36
      $region35: #{dqn_image_block.5} parent=31 // pred_region
        _
      $region36: #{dqn_image_block.5} parent=31 // pred_fallthru
        _
    $region32: #{dqn_image_block.5} parent=5 // pred_fallthru
      _
    %p1281 = scmp.le.s32.totalorder 2, %s9
    // Predicated region
    $region37: #{dqn_image_block.5} parent=5 // pred_check
      %p1282 = pneg %p1281
    $region38: #{dqn_image_block.5} parent=5 // pred_check_branch
      %1284 = sbr.rel (%p1282) target = $region40
    $region39: #{dqn_image_block.5} parent=5 // pred_region
      %s1285 = ssub.s32 %s9, 2
      // Predicated region
      $region41: #{dqn_image_block.5} parent=39 // pred_check
        %p1286 = pneg %p106
      $region42: #{dqn_image_block.5} parent=39 // pred_check_branch
        %1288 = sbr.rel (%p1286) target = $region44
      $region43: #{dqn_image_block.5} parent=39 // pred_region
        %p1289 = scmp.lt.s32.totalorder %s15, 1
        %s1290 = scalar_select %p1289, %s15, 1
        %s1291 = smul.addr %s1290, 2
        %s1292 = smul.addr %s1291, 8
        %s1293 = scalar_lea.vmem %s3, %s1292
      $region44: #{dqn_image_block.5} parent=39 // pred_fallthru
        _
    $region40: #{dqn_image_block.5} parent=5 // pred_fallthru
      _
  $region6: #{dqn_image_block.5} parent=0 // loop_footer
    %s13 = sadd.s32 1, %s9
  $region7: #{dqn_image_block.5} parent=0 // loop_footer_branch
    %8 = sbr.rel target = $region3
  $region8: #{dqn_image_block.5} parent=0 // loop_exit
    _

</llo_original>
